<compile_context>
chip_gen: v7x
topology: tpu7x:2x2x1
jax: 0.10.0
libtpu: 0.0.40
codegen_flags: <defaults>
</compile_context>

<pallas_src>
import functools

import jax
import jax.numpy as jnp
from jax.experimental import pallas as pl
from jax.experimental.pallas import tpu as pltpu

LANES = 128


def _round_up(x, m):
    return (x + m - 1) // m * m


# ----------------------------- Pallas kernel -------------------------------

def _basic_block_kernel(x_ref, w1_ref, b1_ref, w2_ref, b2_ref, *rest,
                        stride, Ho, Wo, PH, S2, proj):
    """Fused conv1+bn1+relu -> shortcut -> conv2+bn2+add+relu for one image.

    x_ref    : (s*s*PH, Ci_p) bf16 flat phase planes (plane width = Wo+2).
    w1_ref   : (9*Ci_p, cp) bf16, BN1 scale folded.   b1_ref: (1, cp) f32.
    w2_ref   : (9*cp,  cp) bf16, BN2 scale folded.    b2_ref: (1, cp) f32.
    wsc/bsc  : projection shortcut weights (only when proj=True).
    o1p_ref  : (S2, cp) bf16 VMEM scratch = flattened halo plane for conv2.
    """
    if proj:
        wsc_ref, bsc_ref, o_ref, o1p_ref = rest
    else:
        o_ref, o1p_ref = rest

    s = stride
    Wp = Wo + 2                       # unified plane width
    M = Ho * Wp                       # flat output rows (incl. wrap columns)
    cp = o_ref.shape[-1]

    def tap_start(dy, dx):            # flat row offset of tap (dy, dx)
        p = (dy % s) * s + (dx % s)   # space-to-depth phase index
        return p * PH + (dy // s) * Wp + (dx // s)

    # ---- conv1 (+bn1 folded) + relu: a single K = 9*Ci_p MXU matmul ---------
    lhs1 = jnp.concatenate(
        [x_ref[pl.ds(tap_start(dy, dx), M), :] for dy in range(3) for dx in range(3)],
        axis=-1)
    acc1 = jnp.dot(lhs1, w1_ref[...], preferred_element_type=jnp.float32) + b1_ref[...]
    # Mask the width-wrap garbage columns (x >= Wo): they land exactly on the
    # conv2 halo positions, which must stay zero.
    col = jax.lax.broadcasted_iota(jnp.int32, (M, 1), 0) % Wp
    out1 = jnp.where(col < Wo, jnp.maximum(acc1, 0.0), 0.0).astype(jnp.bfloat16)

    # ---- bf16 halo plane in VMEM: zero only the border strips each step -----
    head = Wp + 1                                       # top halo row + first left halo
    o1p_ref[pl.ds(0, head), :] = jnp.zeros((head, cp), jnp.bfloat16)
    tail = S2 - (head + M)                              # bottom halo + slack rows
    o1p_ref[pl.ds(head + M, tail), :] = jnp.zeros((tail, cp), jnp.bfloat16)
    o1p_ref[pl.ds(head, M), :] = out1                   # interior (out1 never hits HBM)

    # ---- shortcut ------------------------------------------------------------
    ctr = x_ref[pl.ds(tap_start(1, 1), M), :]           # center-tap input window
    if proj:                                            # 1x1 conv (stride s) + bn
        sc = jnp.dot(ctr, wsc_ref[...], preferred_element_type=jnp.float32) + bsc_ref[...]
    else:                                               # identity: add input directly
        sc = ctr.astype(jnp.float32)

    # ---- conv2 (+bn2 folded) + add + relu: a single K = 9*cp MXU matmul -----
    lhs2 = jnp.concatenate(
        [o1p_ref[pl.ds(dy * Wp + dx, M), :] for dy in range(3) for dx in range(3)],
        axis=-1)
    out = jnp.dot(lhs2, w2_ref[...], preferred_element_type=jnp.float32) + b2_ref[...] + sc
    o_ref[...] = jnp.maximum(out, 0.0).astype(o_ref.dtype)


# ------------------------------ JAX glue ------------------------------------

def _bn_fold(bn, eps=1e-5):
    gamma, beta, mean, var = bn
    scale = gamma / jnp.sqrt(var + eps)
    return scale, beta - mean * scale


def _phase_split_flat(x_nhwc, stride, pad=1, kh=3):
    """Zero-pad + space-to-depth + flatten so every conv tap is a row shift.

    Returns (N, s*s*PH, C) with per-phase flat planes of width Wp = Wo + 2 and
    one extra zero row (PH = (Hq+1)*Wp), so tap (dy,dx) of a kh x kh / stride-s
    conv is the contiguous row range [p*PH + (dy//s)*Wp + dx//s, ... + Ho*Wp).
    """
    N, H, W, C = x_nhwc.shape
    s = stride
    Ho = (H + 2 * pad - kh) // s + 1
    Wo = (W + 2 * pad - kh) // s + 1
    q = -(-kh // s)                                     # ceil(kh / s)
    Hq, Wq = Ho - 1 + q, Wo - 1 + q
    Wp = Wo + 2                                         # unified plane width (>= Wq)
    xp = jnp.pad(x_nhwc, ((0, 0), (pad, s * Hq - H - pad),
                          (pad, s * Wq - W - pad), (0, 0)))
    phases = [xp[:, py::s, px::s, :] for py in range(s) for px in range(s)]
    xph = jnp.stack(phases, axis=1)                     # (N, s*s, Hq, Wq, C)
    xph = jnp.pad(xph, ((0, 0), (0, 0), (0, 1), (0, Wp - Wq), (0, 0)))
    PH = (Hq + 1) * Wp
    return xph.reshape(N, s * s * PH, C), (Ho, Wo, PH)


def _layout_bytes(shape, dtype):
    """Rough Mosaic (sublane x lane)-padded VMEM footprint of one buffer."""
    itemsize = jnp.dtype(dtype).itemsize
    shape = (1,) * max(0, 2 - len(shape)) + tuple(shape)
    sublanes = 8 * (4 // itemsize)
    lead = 1
    for d in shape[:-2]:
        lead *= d
    return lead * _round_up(shape[-2], sublanes) * _round_up(shape[-1], LANES) * itemsize


def basic_block_forward(x_nchw, params, stride, *, out_dtype=jnp.bfloat16):
    """Pallas implementation of BasicBlock.forward (inference-mode BN)."""
    x = jnp.transpose(x_nchw, (0, 2, 3, 1))                      # NCHW -> NHWC
    w1_oihw = params["conv1_w"]
    w2_oihw = params["conv2_w"]
    planes, in_planes, kh, _ = w1_oihw.shape
    assert kh == 3, "BasicBlock uses 3x3 convs"
    N = x.shape[0]
    cp = _round_up(planes, LANES)                                # lane-dense out channels
    cip = _round_up(in_planes, LANES)                            # lane-dense in channels

    xflat, (Ho, Wo, PH) = _phase_split_flat(x, stride)
    Wp = Wo + 2
    M = Ho * Wp
    S2 = (Ho + 3) * Wp                                           # halo-plane scratch rows
    xflat = jnp.pad(xflat, ((0, 0), (0, 0), (0, cip - in_planes))).astype(jnp.bfloat16)

    s1, b1 = _bn_fold(params["bn1"])
    s2, b2 = _bn_fold(params["bn2"])

    # BN scales folded into conv weights; K layout = [tap0 | tap1 | ... | tap8].
    w1 = jnp.transpose(w1_oihw, (2, 3, 1, 0)).reshape(9, in_planes, planes) * s1[None, None, :]
    w1 = jnp.pad(w1, ((0, 0), (0, cip - in_planes), (0, cp - planes)))
    w1 = w1.reshape(9 * cip, cp).astype(jnp.bfloat16)
    w2 = jnp.transpose(w2_oihw, (2, 3, 1, 0)).reshape(9, planes, planes) * s2[None, None, :]
    w2 = jnp.pad(w2, ((0, 0), (0, cp - planes), (0, cp - planes)))
    w2 = w2.reshape(9 * cp, cp).astype(jnp.bfloat16)

    vec = lambda v: jnp.pad(v.reshape(1, -1).astype(jnp.float32),
                            ((0, 0), (0, cp - planes)))
    b1p, b2p = vec(b1), vec(b2)

    proj = (stride != 1) or (in_planes != planes)
    args = [xflat, w1, b1p, w2, b2p]
    if proj:                                                     # projection shortcut
        ssc, bsc = _bn_fold(params["sc_bn"])
        wsc = jnp.transpose(params["sc_w"], (2, 3, 1, 0)).reshape(in_planes, planes)
        wsc = wsc * ssc[None, :]
        wsc = jnp.pad(wsc, ((0, cip - in_planes), (0, cp - planes))).astype(jnp.bfloat16)
        args += [wsc, vec(bsc)]

    kernel = functools.partial(_basic_block_kernel, stride=stride, Ho=Ho, Wo=Wo,
                               PH=PH, S2=S2, proj=proj)

    def full(a):                       # whole (small) array resident in VMEM
        nd = a.ndim
        return pl.BlockSpec(a.shape, lambda n: (0,) * nd)

    in_specs = [pl.BlockSpec((None,) + tuple(xflat.shape[1:]), lambda n: (n, 0, 0))]
    in_specs += [full(a) for a in args[1:]]

    # Explicit VMEM budget: double-buffered I/O + weights + halo scratch + the
    # concatenated LHS / accumulator temporaries, capped per device generation.
    bufs = [(tuple(xflat.shape[1:]), jnp.bfloat16)] + \
           [(a.shape, a.dtype) for a in args[1:]] + [((M, cp), out_dtype)]
    work = 2 * sum(_layout_bytes(shp, dt) for shp, dt in bufs)
    work += _layout_bytes((S2, cp), jnp.bfloat16)
    work += _layout_bytes((M, 9 * cip), jnp.bfloat16) + _layout_bytes((M, 9 * cp), jnp.bfloat16)
    work += 4 * _layout_bytes((M, cp), jnp.float32)
    try:
        phys = int(getattr(pltpu.get_tpu_info(), "vmem_capacity_bytes", 128 << 20))
    except Exception:
        phys = 64 << 20
    cap = (48 << 20) if phys <= (64 << 20) else (100 << 20)      # v7x vs v5e/v6e
    vmem_limit = int(min(max(2 * work, 32 << 20), cap))

    out = pl.pallas_call(
        kernel,
        out_shape=jax.ShapeDtypeStruct((N, M, cp), out_dtype),
        grid=(N,),
        in_specs=in_specs,
        out_specs=pl.BlockSpec((None, M, cp), lambda n: (n, 0, 0)),
        scratch_shapes=[pltpu.VMEM((S2, cp), jnp.bfloat16)],
        compiler_params=pltpu.CompilerParams(
            dimension_semantics=("parallel",),
            vmem_limit_bytes=vmem_limit),
    )(*args)

    # Slice / transpose in bf16; cast to f32 only at the very end.
    out = out.reshape(N, Ho, Wp, cp)[:, :, :Wo, :planes]
    out = jnp.transpose(out, (0, 3, 1, 2))                       # NHWC -> NCHW
    return out.astype(jnp.float32)


# -------------------------- pure-JAX reference ------------------------------

def _ref_conv(x, w, stride, padding):
    return jax.lax.conv_general_dilated(
        x, w, (stride, stride), [(padding, padding)] * 2,
        dimension_numbers=("NCHW", "OIHW", "NCHW"))


def _ref_bn(x, bn, eps=1e-5):
    gamma, beta, mean, var = bn
    return ((x - mean.reshape(1, -1, 1, 1)) / jnp.sqrt(var.reshape(1, -1, 1, 1) + eps)
            * gamma.reshape(1, -1, 1, 1) + beta.reshape(1, -1, 1, 1))


def basic_block_ref(x, params, stride):
    out = jax.nn.relu(_ref_bn(_ref_conv(x, params["conv1_w"], stride, 1), params["bn1"]))
    out = _ref_bn(_ref_conv(out, params["conv2_w"], 1, 1), params["bn2"])
    planes, in_planes = params["conv1_w"].shape[:2]
    if stride != 1 or in_planes != planes:
        sc = _ref_bn(_ref_conv(x, params["sc_w"], stride, 0), params["sc_bn"])
    else:
        sc = x
    return jax.nn.relu(out + sc)


# --------------------------------- main --------------------------------------

def _init_params(key, in_planes, planes, with_proj):
    ks = jax.random.split(key, 6)

    def bn(k, c):
        k1, k2, k3, k4 = jax.random.split(k, 4)
        return (1.0 + 0.1 * jax.random.normal(k1, (c,), jnp.float32),
                0.1 * jax.random.normal(k2, (c,), jnp.float32),
                0.1 * jax.random.normal(k3, (c,), jnp.float32),
                0.5 + jax.random.uniform(k4, (c,), jnp.float32))

    p = {"conv1_w": 0.1 * jax.random.normal(ks[0], (planes, in_planes, 3, 3), jnp.float32),
         "bn1": bn(ks[1], planes),
         "conv2_w": 0.1 * jax.random.normal(ks[2], (planes, planes, 3, 3), jnp.float32),
         "bn2": bn(ks[3], planes)}
    if with_proj:
        p["sc_w"] = 0.1 * jax.random.normal(ks[4], (planes, in_planes, 1, 1), jnp.float32)
        p["sc_bn"] = bn(ks[5], planes)
    return p


def _check(out, ref, shape):
    assert out.shape == shape, (out.shape, shape)
    err = float(jnp.max(jnp.abs(out - ref)))
    # bf16 operands + bf16 output -> relaxed tolerance vs. the f32 reference.
    assert jnp.allclose(out, ref, rtol=5e-2, atol=5e-2), f"max abs err {err}"


if __name__ == "__main__":
    key = jax.random.PRNGKey(0)
    kx1, kp1, kx2, kp2 = jax.random.split(key, 4)
    fwd = jax.jit(basic_block_forward, static_argnums=2)

    # Config 1: projection shortcut (stride 2, channel expansion).
    N, in_planes, H, W = 2, 4, 16, 16
    planes, stride = 8, 2
    x1 = jax.random.normal(kx1, (N, in_planes, H, W), jnp.float32)   # NCHW like PyTorch
    p1 = _init_params(kp1, in_planes, planes, with_proj=True)
    out1 = jax.block_until_ready(fwd(x1, p1, stride))
    ref1 = jax.block_until_ready(basic_block_ref(x1, p1, stride))
    _check(out1, ref1, (N, planes, H // stride, W // stride))

    # Config 2: identity shortcut (stride 1, in_planes == planes).
    x2 = jax.random.normal(kx2, (N, planes, H, W), jnp.float32)
    p2 = _init_params(kp2, planes, planes, with_proj=False)
    out2 = jax.block_until_ready(fwd(x2, p2, 1))
    ref2 = jax.block_until_ready(basic_block_ref(x2, p2, 1))
    _check(out2, ref2, (N, planes, H, W))

    print("KERNEL_OK")
</pallas_src>

<mosaic_0001>
module attributes {stable_mosaic.version = 11 : i64} {
  func.func @_basic_block_kernel(%arg0: i32, %arg1: memref<1x400x128xbf16, #tpu.memory_space<vmem>>, %arg2: memref<1152x128xbf16, #tpu.memory_space<vmem>>, %arg3: memref<1x128xf32, #tpu.memory_space<vmem>>, %arg4: memref<1152x128xbf16, #tpu.memory_space<vmem>>, %arg5: memref<1x128xf32, #tpu.memory_space<vmem>>, %arg6: memref<128x128xbf16, #tpu.memory_space<vmem>>, %arg7: memref<1x128xf32, #tpu.memory_space<vmem>>, %arg8: memref<1x80x128xbf16, #tpu.memory_space<vmem>>, %arg9: memref<110x128xbf16, #tpu.memory_space<vmem>>) attributes {dimension_semantics = [#tpu.dimension_semantics<parallel>], iteration_bounds = array<i64: 2>, scalar_prefetch = 0 : i64, scratch_operands = 1 : i64, tpu.core_type = #tpu.core_type<tc>, window_params = [{transform_indices = @transform_0, window_bounds = array<i64: 1, 400, 128>}, {pipeline_mode = #tpu.pipeline_mode<synchronous>, transform_indices = @transform_1, window_bounds = array<i64: 1152, 128>}, {pipeline_mode = #tpu.pipeline_mode<synchronous>, transform_indices = @transform_2, window_bounds = array<i64: 1, 128>}, {pipeline_mode = #tpu.pipeline_mode<synchronous>, transform_indices = @transform_3, window_bounds = array<i64: 1152, 128>}, {pipeline_mode = #tpu.pipeline_mode<synchronous>, transform_indices = @transform_4, window_bounds = array<i64: 1, 128>}, {pipeline_mode = #tpu.pipeline_mode<synchronous>, transform_indices = @transform_5, window_bounds = array<i64: 128, 128>}, {pipeline_mode = #tpu.pipeline_mode<synchronous>, transform_indices = @transform_6, window_bounds = array<i64: 1, 128>}, {transform_indices = @transform_7, window_bounds = array<i64: 1, 80, 128>}]} {
    %c0 = arith.constant 0 : index
    %c0_0 = arith.constant 0 : index
    %c0_1 = arith.constant 0 : index
    %0 = vector.load %arg1[%c0, %c0_0, %c0_1] : memref<1x400x128xbf16, #tpu.memory_space<vmem>>, vector<1x80x128xbf16>
    %1 = vector.shape_cast %0 : vector<1x80x128xbf16> to vector<80x128xbf16>
    %c0_2 = arith.constant 0 : index
    %c100 = arith.constant 100 : index
    %c0_3 = arith.constant 0 : index
    %2 = vector.load %arg1[%c0_2, %c100, %c0_3] : memref<1x400x128xbf16, #tpu.memory_space<vmem>>, vector<1x80x128xbf16>
    %3 = vector.shape_cast %2 : vector<1x80x128xbf16> to vector<80x128xbf16>
    %c0_4 = arith.constant 0 : index
    %c1 = arith.constant 1 : index
    %c0_5 = arith.constant 0 : index
    %4 = vector.load %arg1[%c0_4, %c1, %c0_5] : memref<1x400x128xbf16, #tpu.memory_space<vmem>>, vector<1x80x128xbf16>
    %5 = vector.shape_cast %4 : vector<1x80x128xbf16> to vector<80x128xbf16>
    %c0_6 = arith.constant 0 : index
    %c200 = arith.constant 200 : index
    %c0_7 = arith.constant 0 : index
    %6 = vector.load %arg1[%c0_6, %c200, %c0_7] : memref<1x400x128xbf16, #tpu.memory_space<vmem>>, vector<1x80x128xbf16>
    %7 = vector.shape_cast %6 : vector<1x80x128xbf16> to vector<80x128xbf16>
    %c0_8 = arith.constant 0 : index
    %c300 = arith.constant 300 : index
    %c0_9 = arith.constant 0 : index
    %8 = vector.load %arg1[%c0_8, %c300, %c0_9] : memref<1x400x128xbf16, #tpu.memory_space<vmem>>, vector<1x80x128xbf16>
    %9 = vector.shape_cast %8 : vector<1x80x128xbf16> to vector<80x128xbf16>
    %c0_10 = arith.constant 0 : index
    %c201 = arith.constant 201 : index
    %c0_11 = arith.constant 0 : index
    %10 = vector.load %arg1[%c0_10, %c201, %c0_11] : memref<1x400x128xbf16, #tpu.memory_space<vmem>>, vector<1x80x128xbf16>
    %11 = vector.shape_cast %10 : vector<1x80x128xbf16> to vector<80x128xbf16>
    %c0_12 = arith.constant 0 : index
    %c10 = arith.constant 10 : index
    %c0_13 = arith.constant 0 : index
    %12 = vector.load %arg1[%c0_12, %c10, %c0_13] : memref<1x400x128xbf16, #tpu.memory_space<vmem>>, vector<1x80x128xbf16>
    %13 = vector.shape_cast %12 : vector<1x80x128xbf16> to vector<80x128xbf16>
    %c0_14 = arith.constant 0 : index
    %c110 = arith.constant 110 : index
    %c0_15 = arith.constant 0 : index
    %14 = vector.load %arg1[%c0_14, %c110, %c0_15] : memref<1x400x128xbf16, #tpu.memory_space<vmem>>, vector<1x80x128xbf16>
    %15 = vector.shape_cast %14 : vector<1x80x128xbf16> to vector<80x128xbf16>
    %c0_16 = arith.constant 0 : index
    %c11 = arith.constant 11 : index
    %c0_17 = arith.constant 0 : index
    %16 = vector.load %arg1[%c0_16, %c11, %c0_17] : memref<1x400x128xbf16, #tpu.memory_space<vmem>>, vector<1x80x128xbf16>
    %17 = vector.shape_cast %16 : vector<1x80x128xbf16> to vector<80x128xbf16>
    %18 = tpu.concatenate %1, %3, %5, %7, %9, %11, %13, %15, %17 in 1 : vector<80x128xbf16>, vector<80x128xbf16>, vector<80x128xbf16>, vector<80x128xbf16>, vector<80x128xbf16>, vector<80x128xbf16>, vector<80x128xbf16>, vector<80x128xbf16>, vector<80x128xbf16> -> vector<80x1152xbf16>
    %c0_18 = arith.constant 0 : index
    %c0_19 = arith.constant 0 : index
    %19 = vector.load %arg2[%c0_18, %c0_19] : memref<1152x128xbf16, #tpu.memory_space<vmem>>, vector<1152x128xbf16>
    %cst = arith.constant dense<0.000000e+00> : vector<80x128xf32>
    %20 = tpu.matmul %18, %19, %cst {dimension_numbers = #tpu.dot_dimension_numbers<[1], [0], [0], [1], [0, 0, 1, 1], [], []>} : vector<80x1152xbf16>, vector<1152x128xbf16>, vector<80x128xf32> -> vector<80x128xf32>
    %c0_20 = arith.constant 0 : index
    %c0_21 = arith.constant 0 : index
    %21 = vector.load %arg3[%c0_20, %c0_21] : memref<1x128xf32, #tpu.memory_space<vmem>>, vector<1x128xf32>
    %22 = vector.broadcast %21 : vector<1x128xf32> to vector<80x128xf32>
    %23 = arith.addf %20, %22 : vector<80x128xf32>
    %24 = tpu.iota {dimensions = array<i32: 0>} : vector<80x1xi32>
    %c10_i32 = arith.constant 10 : i32
    %c0_i32 = arith.constant 0 : i32
    %25 = arith.cmpi eq, %c10_i32, %c0_i32 : i32
    %c1_i32 = arith.constant 1 : i32
    %26 = arith.select %25, %c1_i32, %c10_i32 : i32
    %27 = vector.broadcast %26 : i32 to vector<80x1xi32>
    %28 = arith.remsi %24, %27 : vector<80x1xi32>
    %c0_i32_22 = arith.constant 0 : i32
    %29 = vector.broadcast %c0_i32_22 : i32 to vector<80x1xi32>
    %30 = arith.cmpi ne, %28, %29 : vector<80x1xi32>
    %c0_i32_23 = arith.constant 0 : i32
    %31 = vector.broadcast %c0_i32_23 : i32 to vector<80x1xi32>
    %32 = arith.cmpi slt, %28, %31 : vector<80x1xi32>
    %c0_i32_24 = arith.constant 0 : i32
    %33 = arith.cmpi slt, %26, %c0_i32_24 : i32
    %34 = vector.broadcast %33 : i1 to vector<80x1xi1>
    %35 = vector.broadcast %34 : vector<80x1xi1> to vector<80x1xi1>
    %36 = arith.xori %32, %35 : vector<80x1xi1>
    %37 = arith.andi %36, %30 : vector<80x1xi1>
    %38 = vector.broadcast %26 : i32 to vector<80x1xi32>
    %39 = arith.addi %28, %38 : vector<80x1xi32>
    %40 = arith.select %37, %39, %28 : vector<80x1xi1>, vector<80x1xi32>
    %c8_i32 = arith.constant 8 : i32
    %41 = vector.broadcast %c8_i32 : i32 to vector<80x1xi32>
    %42 = arith.cmpi slt, %40, %41 : vector<80x1xi32>
    %cst_25 = arith.constant 0.000000e+00 : f32
    %43 = vector.broadcast %cst_25 : f32 to vector<80x128xf32>
    %44 = arith.maximumf %23, %43 : vector<80x128xf32>
    %cst_26 = arith.constant 0.000000e+00 : f32
    %45 = vector.shape_cast %42 : vector<80x1xi1> to vector<80x1xi1>
    %46 = vector.broadcast %45 : vector<80x1xi1> to vector<80x128xi1>
    %47 = vector.broadcast %cst_26 : f32 to vector<80x128xf32>
    %48 = arith.select %46, %44, %47 : vector<80x128xi1>, vector<80x128xf32>
    %49 = arith.truncf %48 : vector<80x128xf32> to vector<80x128xbf16>
    %cst_27 = arith.constant 0.000000e+00 : bf16
    %50 = vector.broadcast %cst_27 : bf16 to vector<11x128xbf16>
    %c0_28 = arith.constant 0 : index
    %c0_29 = arith.constant 0 : index
    %51 = vector.load %arg9[%c0_28, %c0_29] : memref<110x128xbf16, #tpu.memory_space<vmem>>, vector<11x128xbf16>
    tpu.vector_store %arg9[%c0_28, %c0_29], %50 {strides = array<i32>} : memref<110x128xbf16, #tpu.memory_space<vmem>>, vector<11x128xbf16>,
    %cst_30 = arith.constant 0.000000e+00 : bf16
    %52 = vector.broadcast %cst_30 : bf16 to vector<19x128xbf16>
    %c91 = arith.constant 91 : index
    %c0_31 = arith.constant 0 : index
    %53 = vector.load %arg9[%c91, %c0_31] : memref<110x128xbf16, #tpu.memory_space<vmem>>, vector<19x128xbf16>
    tpu.vector_store %arg9[%c91, %c0_31], %52 {strides = array<i32>} : memref<110x128xbf16, #tpu.memory_space<vmem>>, vector<19x128xbf16>,
    %c11_32 = arith.constant 11 : index
    %c0_33 = arith.constant 0 : index
    %54 = vector.load %arg9[%c11_32, %c0_33] : memref<110x128xbf16, #tpu.memory_space<vmem>>, vector<80x128xbf16>
    tpu.vector_store %arg9[%c11_32, %c0_33], %49 {strides = array<i32>} : memref<110x128xbf16, #tpu.memory_space<vmem>>, vector<80x128xbf16>,
    %c0_34 = arith.constant 0 : index
    %c300_35 = arith.constant 300 : index
    %c0_36 = arith.constant 0 : index
    %55 = vector.load %arg1[%c0_34, %c300_35, %c0_36] : memref<1x400x128xbf16, #tpu.memory_space<vmem>>, vector<1x80x128xbf16>
    %56 = vector.shape_cast %55 : vector<1x80x128xbf16> to vector<80x128xbf16>
    %c0_37 = arith.constant 0 : index
    %c0_38 = arith.constant 0 : index
    %57 = vector.load %arg6[%c0_37, %c0_38] : memref<128x128xbf16, #tpu.memory_space<vmem>>, vector<128x128xbf16>
    %cst_39 = arith.constant dense<0.000000e+00> : vector<80x128xf32>
    %58 = tpu.matmul %56, %57, %cst_39 {dimension_numbers = #tpu.dot_dimension_numbers<[1], [0], [0], [1], [0, 0, 1, 1], [], []>} : vector<80x128xbf16>, vector<128x128xbf16>, vector<80x128xf32> -> vector<80x128xf32>
    %c0_40 = arith.constant 0 : index
    %c0_41 = arith.constant 0 : index
    %59 = vector.load %arg7[%c0_40, %c0_41] : memref<1x128xf32, #tpu.memory_space<vmem>>, vector<1x128xf32>
    %60 = vector.broadcast %59 : vector<1x128xf32> to vector<80x128xf32>
    %61 = arith.addf %58, %60 : vector<80x128xf32>
    %c0_42 = arith.constant 0 : index
    %c0_43 = arith.constant 0 : index
    %62 = vector.load %arg9[%c0_42, %c0_43] : memref<110x128xbf16, #tpu.memory_space<vmem>>, vector<80x128xbf16>
    %c1_44 = arith.constant 1 : index
    %c0_45 = arith.constant 0 : index
    %63 = vector.load %arg9[%c1_44, %c0_45] : memref<110x128xbf16, #tpu.memory_space<vmem>>, vector<80x128xbf16>
    %c2 = arith.constant 2 : index
    %c0_46 = arith.constant 0 : index
    %64 = vector.load %arg9[%c2, %c0_46] : memref<110x128xbf16, #tpu.memory_space<vmem>>, vector<80x128xbf16>
    %c10_47 = arith.constant 10 : index
    %c0_48 = arith.constant 0 : index
    %65 = vector.load %arg9[%c10_47, %c0_48] : memref<110x128xbf16, #tpu.memory_space<vmem>>, vector<80x128xbf16>
    %c11_49 = arith.constant 11 : index
    %c0_50 = arith.constant 0 : index
    %66 = vector.load %arg9[%c11_49, %c0_50] : memref<110x128xbf16, #tpu.memory_space<vmem>>, vector<80x128xbf16>
    %c12 = arith.constant 12 : index
    %c0_51 = arith.constant 0 : index
    %67 = vector.load %arg9[%c12, %c0_51] : memref<110x128xbf16, #tpu.memory_space<vmem>>, vector<80x128xbf16>
    %c20 = arith.constant 20 : index
    %c0_52 = arith.constant 0 : index
    %68 = vector.load %arg9[%c20, %c0_52] : memref<110x128xbf16, #tpu.memory_space<vmem>>, vector<80x128xbf16>
    %c21 = arith.constant 21 : index
    %c0_53 = arith.constant 0 : index
    %69 = vector.load %arg9[%c21, %c0_53] : memref<110x128xbf16, #tpu.memory_space<vmem>>, vector<80x128xbf16>
    %c22 = arith.constant 22 : index
    %c0_54 = arith.constant 0 : index
    %70 = vector.load %arg9[%c22, %c0_54] : memref<110x128xbf16, #tpu.memory_space<vmem>>, vector<80x128xbf16>
    %71 = tpu.concatenate %62, %63, %64, %65, %66, %67, %68, %69, %70 in 1 : vector<80x128xbf16>, vector<80x128xbf16>, vector<80x128xbf16>, vector<80x128xbf16>, vector<80x128xbf16>, vector<80x128xbf16>, vector<80x128xbf16>, vector<80x128xbf16>, vector<80x128xbf16> -> vector<80x1152xbf16>
    %c0_55 = arith.constant 0 : index
    %c0_56 = arith.constant 0 : index
    %72 = vector.load %arg4[%c0_55, %c0_56] : memref<1152x128xbf16, #tpu.memory_space<vmem>>, vector<1152x128xbf16>
    %cst_57 = arith.constant dense<0.000000e+00> : vector<80x128xf32>
    %73 = tpu.matmul %71, %72, %cst_57 {dimension_numbers = #tpu.dot_dimension_numbers<[1], [0], [0], [1], [0, 0, 1, 1], [], []>} : vector<80x1152xbf16>, vector<1152x128xbf16>, vector<80x128xf32> -> vector<80x128xf32>
    %c0_58 = arith.constant 0 : index
    %c0_59 = arith.constant 0 : index
    %74 = vector.load %arg5[%c0_58, %c0_59] : memref<1x128xf32, #tpu.memory_space<vmem>>, vector<1x128xf32>
    %75 = vector.broadcast %74 : vector<1x128xf32> to vector<80x128xf32>
    %76 = arith.addf %73, %75 : vector<80x128xf32>
    %77 = arith.addf %76, %61 : vector<80x128xf32>
    %cst_60 = arith.constant 0.000000e+00 : f32
    %78 = vector.broadcast %cst_60 : f32 to vector<80x128xf32>
    %79 = arith.maximumf %77, %78 : vector<80x128xf32>
    %80 = arith.truncf %79 : vector<80x128xf32> to vector<80x128xbf16>
    %c0_61 = arith.constant 0 : index
    %c0_62 = arith.constant 0 : index
    %c0_63 = arith.constant 0 : index
    %81 = vector.load %arg8[%c0_61, %c0_62, %c0_63] : memref<1x80x128xbf16, #tpu.memory_space<vmem>>, vector<1x80x128xbf16>
    %82 = vector.shape_cast %81 : vector<1x80x128xbf16> to vector<80x128xbf16>
    %83 = vector.shape_cast %80 : vector<80x128xbf16> to vector<1x80x128xbf16>
    tpu.vector_store %arg8[%c0_61, %c0_62, %c0_63], %83 {strides = array<i32>} : memref<1x80x128xbf16, #tpu.memory_space<vmem>>, vector<1x80x128xbf16>,
    return
  }
  func.func @transform_0(%arg0: i32) -> (i32, i32, i32) {
    %c0_i32 = arith.constant 0 : i32
    %c0_i32_0 = arith.constant 0 : i32
    %c0_i32_1 = arith.constant 0 : i32
    return %arg0, %c0_i32, %c0_i32_0 : i32, i32, i32
  }
  func.func @transform_1(%arg0: i32) -> (i32, i32) {
    %c0_i32 = arith.constant 0 : i32
    %c0_i32_0 = arith.constant 0 : i32
    %c0_i32_1 = arith.constant 0 : i32
    return %c0_i32, %c0_i32_0 : i32, i32
  }
  func.func @transform_2(%arg0: i32) -> (i32, i32) {
    %c0_i32 = arith.constant 0 : i32
    %c0_i32_0 = arith.constant 0 : i32
    %c0_i32_1 = arith.constant 0 : i32
    return %c0_i32, %c0_i32_0 : i32, i32
  }
  func.func @transform_3(%arg0: i32) -> (i32, i32) {
    %c0_i32 = arith.constant 0 : i32
    %c0_i32_0 = arith.constant 0 : i32
    %c0_i32_1 = arith.constant 0 : i32
    return %c0_i32, %c0_i32_0 : i32, i32
  }
  func.func @transform_4(%arg0: i32) -> (i32, i32) {
    %c0_i32 = arith.constant 0 : i32
    %c0_i32_0 = arith.constant 0 : i32
    %c0_i32_1 = arith.constant 0 : i32
    return %c0_i32, %c0_i32_0 : i32, i32
  }
  func.func @transform_5(%arg0: i32) -> (i32, i32) {
    %c0_i32 = arith.constant 0 : i32
    %c0_i32_0 = arith.constant 0 : i32
    %c0_i32_1 = arith.constant 0 : i32
    return %c0_i32, %c0_i32_0 : i32, i32
  }
  func.func @transform_6(%arg0: i32) -> (i32, i32) {
    %c0_i32 = arith.constant 0 : i32
    %c0_i32_0 = arith.constant 0 : i32
    %c0_i32_1 = arith.constant 0 : i32
    return %c0_i32, %c0_i32_0 : i32, i32
  }
  func.func @transform_7(%arg0: i32) -> (i32, i32, i32) {
    %c0_i32 = arith.constant 0 : i32
    %c0_i32_0 = arith.constant 0 : i32
    %c0_i32_1 = arith.constant 0 : i32
    return %arg0, %c0_i32, %c0_i32_0 : i32, i32, i32
  }
}

</mosaic_0001>

<llo_original>
// kernel: basic_block_forward.1
$region0: #{basic_block_forward.1}
  #allocation0 [shape = 'u32[]', space=smem, size = 0x4, offset = 0x4, fixed_abs, tag = 'smem constant byte address 0x4 - core index']
  #allocation1 [shape = 'u32[144,128]{1,0:T(1,128)}', space=vmem, size = 0x12000, scoped, tag = 'internal scratch']
  #allocation2 [shape = 'bf16[110,128]{1,0:T(8,128)(2,1)}', space=vmem, size = 0x7000, scoped, tag = 'scratch operand']
  %s0 = inlined_call_operand.vmem [shape: bf16[2,400,128], index: 0, kind: input, shape index: {}]
  %s1 = inlined_call_operand.vmem [shape: bf16[1152,128], index: 1, kind: input, shape index: {}]
  %s2 = inlined_call_operand.vmem [shape: f32[1,128], index: 2, kind: input, shape index: {}]
  %s3 = inlined_call_operand.vmem [shape: bf16[1152,128], index: 3, kind: input, shape index: {}]
  %s4 = inlined_call_operand.vmem [shape: f32[1,128], index: 4, kind: input, shape index: {}]
  %s5 = inlined_call_operand.vmem [shape: bf16[128,128], index: 5, kind: input, shape index: {}]
  %s6 = inlined_call_operand.vmem [shape: f32[1,128], index: 6, kind: input, shape index: {}]
  %s7 = inlined_call_operand.vmem [shape: bf16[2,80,128], index: 7, kind: output, shape index: {}]
  %s8 = sld [smem:[#allocation0]]
  $region61: #{basic_block_forward.1} parent=0
    _
  %s10 = ssub.s32 1, %s8
  %s11 = scalar_select 0, %s10, %s8
  loop: start=0, step=1, limit=4
  $region2: #{basic_block_forward.1} parent=0 // loop_pre_header
    _
  $region3: #{basic_block_forward.1} parent=0 // loop_header
    %s13 = sphi 0, %s17
    %p14 = scmp.ge.s32.totalorder %s13, 4
    %s23 = sphi 0, %s25
    %s26 = sphi 0, %s23
    %s27 = sphi 0, %s26
    %s43 = sphi 0, %s27
    %s47 = sphi 0, %s47
    %s49 = sphi 0, %s47
    %s50 = sphi 0, %s49
    %s64 = sphi 0, %s50
    %s68 = sphi 0, %s68
    %s70 = sphi 0, %s68
    %s71 = sphi 0, %s70
    %s85 = sphi 0, %s71
    %s89 = sphi 0, %s89
    %s91 = sphi 0, %s89
    %s92 = sphi 0, %s91
    %s106 = sphi 0, %s92
    %s110 = sphi 0, %s110
    %s112 = sphi 0, %s110
    %s113 = sphi 0, %s112
    %s127 = sphi 0, %s113
    %s131 = sphi 0, %s131
    %s133 = sphi 0, %s131
    %s134 = sphi 0, %s133
    %s148 = sphi 0, %s134
    %s152 = sphi 0, %s152
    %s154 = sphi 0, %s152
    %s155 = sphi 0, %s154
    %s169 = sphi 0, %s155
    %s175 = sphi 0, %s177
    %s178 = sphi 0, %s175
    %s179 = sphi 0, %s178
    %s195 = sphi 0, %s179
  $region4: #{basic_block_forward.1} parent=0 // loop_header_branch
    %16 = sbr.rel (%p14) target = $region8
  $region5: #{basic_block_forward.1} parent=0 // loop_body
    %s18 = ssub.s32 %s13, 1
    %s19 = ssub.s32 %s13, 2
    %s20 = sadd.s32 %s13, 1
    %s21 = ssub.s32 %s13, %s20
    %p22 = scmp.eq.s32.totalorder %s21, 0
    %s24 = sadd.s32 %s23, 1
    %s25 = scalar_select %p22, %s23, %s24
    %p28 = pneg %p22
    %p29 = scmp.eq.s32.totalorder %s13, 1
    %p30 = por %p28, %p29
    %p31 = scmp.ne.s32.totalorder %s23, %s26
    %p32 = scmp.eq.s32.totalorder %s13, 0
    %p33 = por %p31, %p32
    %p34 = scmp.ne.s32.totalorder %s23, %s26
    %p35 = scmp.eq.s32.totalorder %s18, 1
    %p36 = por %p34, %p35
    %p37 = scmp.ne.s32.totalorder %s26, %s27
    %p38 = scmp.eq.s32.totalorder %s18, 0
    %p39 = por %p37, %p38
    %p40 = scmp.ne.s32.totalorder %s26, %s27
    %p41 = scmp.eq.s32.totalorder %s19, 1
    %p42 = por %p40, %p41
    %p44 = scmp.ne.s32.totalorder %s27, %s43
    %p45 = scmp.eq.s32.totalorder %s19, 0
    %p46 = por %p44, %p45
    %s48 = sadd.s32 %s47, 1
    %p51 = scmp.eq.s32.totalorder %s13, 1
    %p52 = scmp.ne.s32.totalorder %s47, %s49
    %p53 = scmp.eq.s32.totalorder %s13, 0
    %p54 = por %p52, %p53
    %p55 = scmp.ne.s32.totalorder %s47, %s49
    %p56 = scmp.eq.s32.totalorder %s18, 1
    %p57 = por %p55, %p56
    %p58 = scmp.ne.s32.totalorder %s49, %s50
    %p59 = scmp.eq.s32.totalorder %s18, 0
    %p60 = por %p58, %p59
    %p61 = scmp.ne.s32.totalorder %s49, %s50
    %p62 = scmp.eq.s32.totalorder %s19, 1
    %p63 = por %p61, %p62
    %p65 = scmp.ne.s32.totalorder %s50, %s64
    %p66 = scmp.eq.s32.totalorder %s19, 0
    %p67 = por %p65, %p66
    %s69 = sadd.s32 %s68, 1
    %p72 = scmp.eq.s32.totalorder %s13, 1
    %p73 = scmp.ne.s32.totalorder %s68, %s70
    %p74 = scmp.eq.s32.totalorder %s13, 0
    %p75 = por %p73, %p74
    %p76 = scmp.ne.s32.totalorder %s68, %s70
    %p77 = scmp.eq.s32.totalorder %s18, 1
    %p78 = por %p76, %p77
    %p79 = scmp.ne.s32.totalorder %s70, %s71
    %p80 = scmp.eq.s32.totalorder %s18, 0
    %p81 = por %p79, %p80
    %p82 = scmp.ne.s32.totalorder %s70, %s71
    %p83 = scmp.eq.s32.totalorder %s19, 1
    %p84 = por %p82, %p83
    %p86 = scmp.ne.s32.totalorder %s71, %s85
    %p87 = scmp.eq.s32.totalorder %s19, 0
    %p88 = por %p86, %p87
    %s90 = sadd.s32 %s89, 1
    %p93 = scmp.eq.s32.totalorder %s13, 1
    %p94 = scmp.ne.s32.totalorder %s89, %s91
    %p95 = scmp.eq.s32.totalorder %s13, 0
    %p96 = por %p94, %p95
    %p97 = scmp.ne.s32.totalorder %s89, %s91
    %p98 = scmp.eq.s32.totalorder %s18, 1
    %p99 = por %p97, %p98
    %p100 = scmp.ne.s32.totalorder %s91, %s92
    %p101 = scmp.eq.s32.totalorder %s18, 0
    %p102 = por %p100, %p101
    %p103 = scmp.ne.s32.totalorder %s91, %s92
    %p104 = scmp.eq.s32.totalorder %s19, 1
    %p105 = por %p103, %p104
    %p107 = scmp.ne.s32.totalorder %s92, %s106
    %p108 = scmp.eq.s32.totalorder %s19, 0
    %p109 = por %p107, %p108
    %s111 = sadd.s32 %s110, 1
    %p114 = scmp.eq.s32.totalorder %s13, 1
    %p115 = scmp.ne.s32.totalorder %s110, %s112
    %p116 = scmp.eq.s32.totalorder %s13, 0
    %p117 = por %p115, %p116
    %p118 = scmp.ne.s32.totalorder %s110, %s112
    %p119 = scmp.eq.s32.totalorder %s18, 1
    %p120 = por %p118, %p119
    %p121 = scmp.ne.s32.totalorder %s112, %s113
    %p122 = scmp.eq.s32.totalorder %s18, 0
    %p123 = por %p121, %p122
    %p124 = scmp.ne.s32.totalorder %s112, %s113
    %p125 = scmp.eq.s32.totalorder %s19, 1
    %p126 = por %p124, %p125
    %p128 = scmp.ne.s32.totalorder %s113, %s127
    %p129 = scmp.eq.s32.totalorder %s19, 0
    %p130 = por %p128, %p129
    %s132 = sadd.s32 %s131, 1
    %p135 = scmp.eq.s32.totalorder %s13, 1
    %p136 = scmp.ne.s32.totalorder %s131, %s133
    %p137 = scmp.eq.s32.totalorder %s13, 0
    %p138 = por %p136, %p137
    %p139 = scmp.ne.s32.totalorder %s131, %s133
    %p140 = scmp.eq.s32.totalorder %s18, 1
    %p141 = por %p139, %p140
    %p142 = scmp.ne.s32.totalorder %s133, %s134
    %p143 = scmp.eq.s32.totalorder %s18, 0
    %p144 = por %p142, %p143
    %p145 = scmp.ne.s32.totalorder %s133, %s134
    %p146 = scmp.eq.s32.totalorder %s19, 1
    %p147 = por %p145, %p146
    %p149 = scmp.ne.s32.totalorder %s134, %s148
    %p150 = scmp.eq.s32.totalorder %s19, 0
    %p151 = por %p149, %p150
    %s153 = sadd.s32 %s152, 1
    %p156 = scmp.eq.s32.totalorder %s13, 1
    %p157 = scmp.ne.s32.totalorder %s152, %s154
    %p158 = scmp.eq.s32.totalorder %s13, 0
    %p159 = por %p157, %p158
    %p160 = scmp.ne.s32.totalorder %s152, %s154
    %p161 = scmp.eq.s32.totalorder %s18, 1
    %p162 = por %p160, %p161
    %p163 = scmp.ne.s32.totalorder %s154, %s155
    %p164 = scmp.eq.s32.totalorder %s18, 0
    %p165 = por %p163, %p164
    %p166 = scmp.ne.s32.totalorder %s154, %s155
    %p167 = scmp.eq.s32.totalorder %s19, 1
    %p168 = por %p166, %p167
    %p170 = scmp.ne.s32.totalorder %s155, %s169
    %p171 = scmp.eq.s32.totalorder %s19, 0
    %p172 = por %p170, %p171
    %s173 = ssub.s32 %s13, %s20
    %p174 = scmp.eq.s32.totalorder %s173, 0
    %s176 = sadd.s32 %s175, 1
    %s177 = scalar_select %p174, %s175, %s176
    %p180 = pneg %p174
    %p181 = scmp.eq.s32.totalorder %s13, 1
    %p182 = por %p180, %p181
    %p183 = scmp.ne.s32.totalorder %s175, %s178
    %p184 = scmp.eq.s32.totalorder %s13, 0
    %p185 = por %p183, %p184
    %p186 = scmp.ne.s32.totalorder %s175, %s178
    %p187 = scmp.eq.s32.totalorder %s18, 1
    %p188 = por %p186, %p187
    %p189 = scmp.ne.s32.totalorder %s178, %s179
    %p190 = scmp.eq.s32.totalorder %s18, 0
    %p191 = por %p189, %p190
    %p192 = scmp.ne.s32.totalorder %s178, %s179
    %p193 = scmp.eq.s32.totalorder %s19, 1
    %p194 = por %p192, %p193
    %p196 = scmp.ne.s32.totalorder %s179, %s195
    %p197 = scmp.eq.s32.totalorder %s19, 0
    %p198 = por %p196, %p197
    %p199 = scmp.le.s32.totalorder 1, %s13
    %p200 = scmp.lt.s32.totalorder %s13, 3
    %p201 = pnand %p199, %p200
    %p202 = pneg %p201
    // Predicated region
    $region9: #{basic_block_forward.1} parent=5 // pred_check
      _
    $region10: #{basic_block_forward.1} parent=5 // pred_check_branch
      %204 = sbr.rel (%p201) target = $region12
    $region11: #{basic_block_forward.1} parent=5 // pred_region
      %s205 = ssub.s32 %s13, 1
      // Predicated region
      $region13: #{basic_block_forward.1} parent=11 // pred_check
        %p206 = pneg %p60
      $region14: #{basic_block_forward.1} parent=11 // pred_check_branch
        %208 = sbr.rel (%p206) target = $region16
      $region15: #{basic_block_forward.1} parent=11 // pred_region
        _
      $region16: #{basic_block_forward.1} parent=11 // pred_fallthru
        _
      // Predicated region
      $region17: #{basic_block_forward.1} parent=11 // pred_check
        %p209 = pneg %p81
      $region18: #{basic_block_forward.1} parent=11 // pred_check_branch
        %211 = sbr.rel (%p209) target = $region20
      $region19: #{basic_block_forward.1} parent=11 // pred_region
        _
      $region20: #{basic_block_forward.1} parent=11 // pred_fallthru
        _
      // Predicated region
      $region21: #{basic_block_forward.1} parent=11 // pred_check
        %p212 = pneg %p102
      $region22: #{basic_block_forward.1} parent=11 // pred_check_branch
        %214 = sbr.rel (%p212) target = $region24
      $region23: #{basic_block_forward.1} parent=11 // pred_region
        _
      $region24: #{basic_block_forward.1} parent=11 // pred_fallthru
        _
      // Predicated region
      $region25: #{basic_block_forward.1} parent=11 // pred_check
        %p215 = pneg %p123
      $region26: #{basic_block_forward.1} parent=11 // pred_check_branch
        %217 = sbr.rel (%p215) target = $region28
      $region27: #{basic_block_forward.1} parent=11 // pred_region
        _
      $region28: #{basic_block_forward.1} parent=11 // pred_fallthru
        _
      // Predicated region
      $region29: #{basic_block_forward.1} parent=11 // pred_check
        %p218 = pneg %p144
      $region30: #{basic_block_forward.1} parent=11 // pred_check_branch
        %220 = sbr.rel (%p218) target = $region32
      $region31: #{basic_block_forward.1} parent=11 // pred_region
        _
      $region32: #{basic_block_forward.1} parent=11 // pred_fallthru
        _
      // Predicated region
      $region33: #{basic_block_forward.1} parent=11 // pred_check
        %p221 = pneg %p165
      $region34: #{basic_block_forward.1} parent=11 // pred_check_branch
        %223 = sbr.rel (%p221) target = $region36
      $region35: #{basic_block_forward.1} parent=11 // pred_region
        _
      $region36: #{basic_block_forward.1} parent=11 // pred_fallthru
        _
    $region12: #{basic_block_forward.1} parent=5 // pred_fallthru
      _
    %p224 = scmp.lt.s32.totalorder %s13, 2
    // Predicated region
    $region37: #{basic_block_forward.1} parent=5 // pred_check
      %p225 = pneg %p224
    $region38: #{basic_block_forward.1} parent=5 // pred_check_branch
      %227 = sbr.rel (%p225) target = $region40
    $region39: #{basic_block_forward.1} parent=5 // pred_region
      // Predicated region
      $region41: #{basic_block_forward.1} parent=39 // pred_check
        %p228 = pneg %p33
      $region42: #{basic_block_forward.1} parent=39 // pred_check_branch
        %230 = sbr.rel (%p228) target = $region44
      $region43: #{basic_block_forward.1} parent=39 // pred_region
        %p231 = scmp.lt.s32.totalorder %s13, 1
        %s232 = scalar_select %p231, %s13, 1
        %s233 = smul.addr %s232, 50
        %s234 = smul.addr %s233, 4
        %s235 = scalar_lea.vmem %s0, %s234
      $region44: #{basic_block_forward.1} parent=39 // pred_fallthru
        _
    $region40: #{basic_block_forward.1} parent=5 // pred_fallthru
      _
    %p236 = scmp.le.s32.totalorder 1, %s13
    %p237 = scmp.lt.s32.totalorder %s13, 3
    %p238 = pnand %p236, %p237
    %p239 = pneg %p238
    // Predicated region
    $region45: #{basic_block_forward.1} parent=5 // pred_check
      _
    $region46: #{basic_block_forward.1} parent=5 // pred_check_branch
      %241 = sbr.rel (%p238) target = $region48
    $region47: #{basic_block_forward.1} parent=5 // pred_region
      %s242 = ssub.s32 %s13, 1
      %p243 = scmp.lt.s32.totalorder %s18, 1
      %s244 = scalar_select %p243, %s18, 1
      %s245 = smul.addr %s244, 50
      %s246 = smul.addr %s245, 4
      %s247 = scalar_lea.vmem %s0, %s246
      %p248 = pneg %p39
      %p249 = pneg %p36
      %p250 = pneg %p60
      %p251 = pneg %p57
      %p252 = pneg %p81
      %p253 = pneg %p78
      %p254 = pneg %p102
      %p255 = pneg %p99
      %p256 = pneg %p123
      %p257 = pneg %p120
      %p258 = pneg %p144
      %p259 = pneg %p141
      %p260 = pneg %p165
      %p261 = pneg %p162
      %p262 = pneg %p191
      %p263 = pneg %p188
      %p264 = scmp.lt.s32.totalorder %s18, 1
      %s265 = scalar_select %p264, %s18, 1
      %s266 = smul.addr %s265, 10
      %s267 = smul.addr %s266, 4
      %s268 = scalar_lea.vmem %s7, %s267
      %p269 = scmp.lt.s32.totalorder %s18, 1
      %s270 = scalar_select %p269, %s18, 1
      %s271 = smul.addr %s270, 50
      %s272 = smul.addr %s271, 4
      %s273 = scalar_lea.vmem %s0, %s272
      %p274 = scmp.lt.s32.totalorder %s18, 1
      %s275 = scalar_select %p274, %s18, 1
      %s276 = smul.addr %s275, 10
      %s277 = smul.addr %s276, 4
      %s278 = scalar_lea.vmem %s7, %s277
      %v280 = vld [vmem:[%s273] sm:$0xf]
      %v281 = vld [vmem:[%s273 + $0x4] sm:$0xf]
      %v282 = vld [vmem:[%s273 + $0x8] sm:$0xf]
      %v283 = vld [vmem:[%s273 + $0xc] sm:$0xf]
      %v284 = vld [vmem:[%s273 + $0x10] sm:$0xf]
      %v285 = vld [vmem:[%s273 + $0x14] sm:$0xf]
      %v286 = vld [vmem:[%s273 + $0x18] sm:$0xf]
      %v287 = vld [vmem:[%s273 + $0x1c] sm:$0xf]
      %v288 = vld [vmem:[%s273 + $0x20] sm:$0xf]
      %v289 = vld [vmem:[%s273 + $0x24] sm:$0xf]
      %v290 = vld [vmem:[%s273 + $0x30] sm:$0xc]
      %v291 = vld [vmem:[%s273 + $0x34] sm:$0xf]
      %v292 = vld [vmem:[%s273 + $0x38] sm:$0xf]
      %v293 = vld [vmem:[%s273 + $0x3c] sm:$0xf]
      %v294 = vld [vmem:[%s273 + $0x40] sm:$0xf]
      %v295 = vld [vmem:[%s273 + $0x44] sm:$0xf]
      %v296 = vld [vmem:[%s273 + $0x48] sm:$0xf]
      %v297 = vld [vmem:[%s273 + $0x4c] sm:$0xf]
      %v298 = vld [vmem:[%s273 + $0x50] sm:$0xf]
      %v299 = vld [vmem:[%s273 + $0x54] sm:$0xf]
      %v300 = vld [vmem:[%s273 + $0x58] sm:$0x3]
      %v301 = vld [vmem:[%s273 + $0x28] sm:$0x1]
      %v302 = vld [vmem:[%s273 + $0x64] sm:$0xf]
      %v303 = vld [vmem:[%s273 + $0x68] sm:$0xf]
      %v304 = vld [vmem:[%s273 + $0x6c] sm:$0xf]
      %v305 = vld [vmem:[%s273 + $0x70] sm:$0xf]
      %v306 = vld [vmem:[%s273 + $0x74] sm:$0xf]
      %v307 = vld [vmem:[%s273 + $0x78] sm:$0xf]
      %v308 = vld [vmem:[%s273 + $0x7c] sm:$0xf]
      %v309 = vld [vmem:[%s273 + $0x80] sm:$0xf]
      %v310 = vld [vmem:[%s273 + $0x84] sm:$0xf]
      %v311 = vld [vmem:[%s273 + $0x88] sm:$0xf]
      %v312 = vld [vmem:[%s273 + $0x94] sm:$0xc]
      %v313 = vld [vmem:[%s273 + $0x98] sm:$0xf]
      %v314 = vld [vmem:[%s273 + $0x9c] sm:$0xf]
      %v315 = vld [vmem:[%s273 + $0xa0] sm:$0xf]
      %v316 = vld [vmem:[%s273 + $0xa4] sm:$0xf]
      %v317 = vld [vmem:[%s273 + $0xa8] sm:$0xf]
      %v318 = vld [vmem:[%s273 + $0xac] sm:$0xf]
      %v319 = vld [vmem:[%s273 + $0xb0] sm:$0xf]
      %v320 = vld [vmem:[%s273 + $0xb4] sm:$0xf]
      %v321 = vld [vmem:[%s273 + $0xb8] sm:$0xf]
      %v322 = vld [vmem:[%s273 + $0xbc] sm:$0x3]
      %v323 = vld [vmem:[%s273 + $0x8c] sm:$0x1]
      %v324 = vld [vmem:[%s273 + $0x4] sm:$0xe]
      %v325 = vld [vmem:[%s273 + $0x28] sm:$0xf]
      %v326 = vld [vmem:[%s273 + $0x2c] sm:$0x1]
      %v327 = vld [vmem:[%s273 + $0x34] sm:$0x8]
      %v328 = vld [vmem:[%s273 + $0x58] sm:$0xf]
      %v329 = vld [vmem:[%s273 + $0x5c] sm:$0x7]
      %v330 = vld [vmem:[%s273 + $0x2c] sm:$0x3]
      %v341 = vunpack.c.l.b16 %v280
      %v342 = vunpack.c.l.b16 %v281
      %v343 = vunpack.c.l.b16 %v282
      %v344 = vunpack.c.l.b16 %v283
      %v345 = vunpack.c.l.b16 %v284
      %v346 = vunpack.c.l.b16 %v285
      %v347 = vunpack.c.l.b16 %v286
      %v348 = vunpack.c.l.b16 %v287
      %v349 = vunpack.c.l.b16 %v288
      %v350 = vunpack.c.l.b16 %v289
      %v351 = vpack.c.b16 %v342, %v341
      %v352 = vpack.c.b16 %v344, %v343
      %v353 = vpack.c.b16 %v346, %v345
      %v354 = vpack.c.b16 %v348, %v347
      %v355 = vpack.c.b16 %v350, %v349
      %v372 = vunpack.c.l.b16 %v290
      %v373 = vunpack.c.l.b16 %v291
      %v374 = vunpack.c.l.b16 %v292
      %v375 = vunpack.c.l.b16 %v293
      %v376 = vunpack.c.l.b16 %v294
      %v377 = vunpack.c.l.b16 %v295
      %v378 = vunpack.c.l.b16 %v296
      %v379 = vunpack.c.l.b16 %v297
      %v380 = vunpack.c.l.b16 %v298
      %v381 = vunpack.c.l.b16 %v299
      %v382 = vunpack.c.l.b16 %v300
      %v383 = vpack.c.b16 %v373, %v372
      %v384 = vpack.c.b16 %v375, %v374
      %v385 = vpack.c.b16 %v377, %v376
      %v386 = vpack.c.b16 %v379, %v378
      %v387 = vpack.c.b16 %v381, %v380
      %v388 = vpack.c.b16 %v382, %v382
      %vm389 = vcmask 1045504
      %v390 = vrot.slane %v383, 2
      %v391 = vrot.slane %v384, 2
      %v392 = vsel %vm389, %v390, %v391
      %v393 = vrot.slane %v385, 2
      %v394 = vsel %vm389, %v391, %v393
      %v395 = vrot.slane %v386, 2
      %v396 = vsel %vm389, %v393, %v395
      %v397 = vrot.slane %v387, 2
      %v398 = vsel %vm389, %v395, %v397
      %v399 = vrot.slane %v388, 2
      %v400 = vsel %vm389, %v397, %v399
      %v407 = vunpack.c.l.b16 %v301
      %v408 = vpack.c.b16 %v407, %v407
      %vm409 = vsmask.f32 7424
      %v411 = vshrl.u32 %v351, 16
      %v413 = vshll.u32 %v351, 16
      %v415 = vrot.slane %v413, 1
      %v416 = vor.u32 %v411, %v415
      %v418 = vshll.u32 %v352, 16
      %v420 = vrot.slane %v418, 1
      %v421 = vsel %vm409, %v416, %v420
      %v422 = vshrl.u32 %v352, 16
      %v424 = vor.u32 %v422, %v420
      %v426 = vshll.u32 %v353, 16
      %v428 = vrot.slane %v426, 1
      %v429 = vsel %vm409, %v424, %v428
      %v430 = vshrl.u32 %v353, 16
      %v432 = vor.u32 %v430, %v428
      %v434 = vshll.u32 %v354, 16
      %v436 = vrot.slane %v434, 1
      %v437 = vsel %vm409, %v432, %v436
      %v438 = vshrl.u32 %v354, 16
      %v440 = vor.u32 %v438, %v436
      %v442 = vshll.u32 %v355, 16
      %v444 = vrot.slane %v442, 1
      %v445 = vsel %vm409, %v440, %v444
      %v446 = vshrl.u32 %v355, 16
      %v448 = vor.u32 %v446, %v444
      %v450 = vshll.u32 %v408, 16
      %v452 = vrot.slane %v450, 1
      %v453 = vsel %vm409, %v448, %v452
      %v469 = vunpack.c.l.b16 %v302
      %v470 = vunpack.c.l.b16 %v303
      %v471 = vunpack.c.l.b16 %v304
      %v472 = vunpack.c.l.b16 %v305
      %v473 = vunpack.c.l.b16 %v306
      %v474 = vunpack.c.l.b16 %v307
      %v475 = vunpack.c.l.b16 %v308
      %v476 = vunpack.c.l.b16 %v309
      %v477 = vunpack.c.l.b16 %v310
      %v478 = vunpack.c.l.b16 %v311
      %v479 = vpack.c.b16 %v470, %v469
      %v480 = vpack.c.b16 %v472, %v471
      %v481 = vpack.c.b16 %v474, %v473
      %v482 = vpack.c.b16 %v476, %v475
      %v483 = vpack.c.b16 %v478, %v477
      %v500 = vunpack.c.l.b16 %v312
      %v501 = vunpack.c.l.b16 %v313
      %v502 = vunpack.c.l.b16 %v314
      %v503 = vunpack.c.l.b16 %v315
      %v504 = vunpack.c.l.b16 %v316
      %v505 = vunpack.c.l.b16 %v317
      %v506 = vunpack.c.l.b16 %v318
      %v507 = vunpack.c.l.b16 %v319
      %v508 = vunpack.c.l.b16 %v320
      %v509 = vunpack.c.l.b16 %v321
      %v510 = vunpack.c.l.b16 %v322
      %v511 = vpack.c.b16 %v501, %v500
      %v512 = vpack.c.b16 %v503, %v502
      %v513 = vpack.c.b16 %v505, %v504
      %v514 = vpack.c.b16 %v507, %v506
      %v515 = vpack.c.b16 %v509, %v508
      %v516 = vpack.c.b16 %v510, %v510
      %v517 = vrot.slane %v511, 2
      %v518 = vrot.slane %v512, 2
      %v519 = vsel %vm389, %v517, %v518
      %v520 = vrot.slane %v513, 2
      %v521 = vsel %vm389, %v518, %v520
      %v522 = vrot.slane %v514, 2
      %v523 = vsel %vm389, %v520, %v522
      %v524 = vrot.slane %v515, 2
      %v525 = vsel %vm389, %v522, %v524
      %v526 = vrot.slane %v516, 2
      %v527 = vsel %vm389, %v524, %v526
      %v534 = vunpack.c.l.b16 %v323
      %v535 = vpack.c.b16 %v534, %v534
      %v537 = vshrl.u32 %v479, 16
      %v539 = vshll.u32 %v479, 16
      %v541 = vrot.slane %v539, 1
      %v542 = vor.u32 %v537, %v541
      %v544 = vshll.u32 %v480, 16
      %v546 = vrot.slane %v544, 1
      %v547 = vsel %vm409, %v542, %v546
      %v548 = vshrl.u32 %v480, 16
      %v550 = vor.u32 %v548, %v546
      %v552 = vshll.u32 %v481, 16
      %v554 = vrot.slane %v552, 1
      %v555 = vsel %vm409, %v550, %v554
      %v556 = vshrl.u32 %v481, 16
      %v558 = vor.u32 %v556, %v554
      %v560 = vshll.u32 %v482, 16
      %v562 = vrot.slane %v560, 1
      %v563 = vsel %vm409, %v558, %v562
      %v564 = vshrl.u32 %v482, 16
      %v566 = vor.u32 %v564, %v562
      %v568 = vshll.u32 %v483, 16
      %v570 = vrot.slane %v568, 1
      %v571 = vsel %vm409, %v566, %v570
      %v572 = vshrl.u32 %v483, 16
      %v574 = vor.u32 %v572, %v570
      %v576 = vshll.u32 %v535, 16
      %v578 = vrot.slane %v576, 1
      %v579 = vsel %vm409, %v574, %v578
      %v588 = vunpack.c.l.b16 %v324
      %v589 = vunpack.c.l.b16 %v325
      %v590 = vunpack.c.l.b16 %v326
      %v591 = vpack.c.b16 %v343, %v588
      %v592 = vpack.c.b16 %v345, %v344
      %v593 = vpack.c.b16 %v347, %v346
      %v594 = vpack.c.b16 %v349, %v348
      %v595 = vpack.c.b16 %v589, %v350
      %v596 = vpack.c.b16 %v590, %v590
      %vm597 = vcmask 1046528
      %v598 = vrot.slane %v591, 1
      %v599 = vrot.slane %v592, 1
      %v600 = vsel %vm597, %v598, %v599
      %v601 = vrot.slane %v593, 1
      %v602 = vsel %vm597, %v599, %v601
      %v603 = vrot.slane %v594, 1
      %v604 = vsel %vm597, %v601, %v603
      %v605 = vrot.slane %v595, 1
      %v606 = vsel %vm597, %v603, %v605
      %v607 = vrot.slane %v596, 1
      %v608 = vsel %vm597, %v605, %v607
      %v617 = vunpack.c.l.b16 %v327
      %v618 = vunpack.c.l.b16 %v328
      %v619 = vunpack.c.l.b16 %v329
      %v620 = vpack.c.b16 %v374, %v617
      %v621 = vpack.c.b16 %v376, %v375
      %v622 = vpack.c.b16 %v378, %v377
      %v623 = vpack.c.b16 %v380, %v379
      %v624 = vpack.c.b16 %v618, %v381
      %v625 = vpack.c.b16 %v619, %v619
      %vm626 = vcmask 1044480
      %v627 = vrot.slane %v620, 3
      %v628 = vrot.slane %v621, 3
      %v629 = vsel %vm626, %v627, %v628
      %v630 = vrot.slane %v622, 3
      %v631 = vsel %vm626, %v628, %v630
      %v632 = vrot.slane %v623, 3
      %v633 = vsel %vm626, %v630, %v632
      %v634 = vrot.slane %v624, 3
      %v635 = vsel %vm626, %v632, %v634
      %v636 = vrot.slane %v625, 3
      %v637 = vsel %vm626, %v634, %v636
      %v644 = vunpack.c.l.b16 %v330
      %v645 = vpack.c.b16 %v644, %v644
      %vm646 = vsmask.f32 6400
      %v648 = vshrl.u32 %v591, 16
      %v650 = vrot.slane %v648, 1
      %v651 = vshll.u32 %v591, 16
      %v653 = vrot.slane %v651, 2
      %v654 = vor.u32 %v650, %v653
      %v656 = vshrl.u32 %v592, 16
      %v658 = vrot.slane %v656, 1
      %v659 = vshll.u32 %v592, 16
      %v661 = vrot.slane %v659, 2
      %v662 = vor.u32 %v658, %v661
      %v663 = vsel %vm646, %v654, %v662
      %v665 = vshrl.u32 %v593, 16
      %v667 = vrot.slane %v665, 1
      %v668 = vshll.u32 %v593, 16
      %v670 = vrot.slane %v668, 2
      %v671 = vor.u32 %v667, %v670
      %v672 = vsel %vm646, %v662, %v671
      %v674 = vshrl.u32 %v594, 16
      %v676 = vrot.slane %v674, 1
      %v677 = vshll.u32 %v594, 16
      %v679 = vrot.slane %v677, 2
      %v680 = vor.u32 %v676, %v679
      %v681 = vsel %vm646, %v671, %v680
      %v683 = vshrl.u32 %v595, 16
      %v685 = vrot.slane %v683, 1
      %v686 = vshll.u32 %v595, 16
      %v688 = vrot.slane %v686, 2
      %v689 = vor.u32 %v685, %v688
      %v690 = vsel %vm646, %v680, %v689
      %v692 = vshrl.u32 %v645, 16
      %v694 = vrot.slane %v692, 1
      %v695 = vshll.u32 %v645, 16
      %v697 = vrot.slane %v695, 2
      %v698 = vor.u32 %v694, %v697
      %v699 = vsel %vm646, %v689, %v698
      %v705 = vld [vmem:[%s1] sm:$0xf]
      %v706 = vld [vmem:[%s1 + $0x4] sm:$0xf]
      %v707 = vld [vmem:[%s1 + $0x8] sm:$0xf]
      %v708 = vld [vmem:[%s1 + $0xc] sm:$0xf]
      %v709 = vld [vmem:[%s1 + $0x10] sm:$0xf]
      %v710 = vld [vmem:[%s1 + $0x14] sm:$0xf]
      %v711 = vld [vmem:[%s1 + $0x18] sm:$0xf]
      %v712 = vld [vmem:[%s1 + $0x1c] sm:$0xf]
      %v713 = vld [vmem:[%s1 + $0x20] sm:$0xf]
      %v714 = vld [vmem:[%s1 + $0x24] sm:$0xf]
      %v715 = vld [vmem:[%s1 + $0x28] sm:$0xf]
      %v716 = vld [vmem:[%s1 + $0x2c] sm:$0xf]
      %v717 = vld [vmem:[%s1 + $0x30] sm:$0xf]
      %v718 = vld [vmem:[%s1 + $0x34] sm:$0xf]
      %v719 = vld [vmem:[%s1 + $0x38] sm:$0xf]
      %v720 = vld [vmem:[%s1 + $0x3c] sm:$0xf]
      %v721 = vld [vmem:[%s1 + $0x40] sm:$0xf]
      %v722 = vld [vmem:[%s1 + $0x44] sm:$0xf]
      %v723 = vld [vmem:[%s1 + $0x48] sm:$0xf]
      %v724 = vld [vmem:[%s1 + $0x4c] sm:$0xf]
      %v725 = vld [vmem:[%s1 + $0x50] sm:$0xf]
      %v726 = vld [vmem:[%s1 + $0x54] sm:$0xf]
      %v727 = vld [vmem:[%s1 + $0x58] sm:$0xf]
      %v728 = vld [vmem:[%s1 + $0x5c] sm:$0xf]
      %v729 = vld [vmem:[%s1 + $0x60] sm:$0xf]
      %v730 = vld [vmem:[%s1 + $0x64] sm:$0xf]
      %v731 = vld [vmem:[%s1 + $0x68] sm:$0xf]
      %v732 = vld [vmem:[%s1 + $0x6c] sm:$0xf]
      %v733 = vld [vmem:[%s1 + $0x70] sm:$0xf]
      %v734 = vld [vmem:[%s1 + $0x74] sm:$0xf]
      %v735 = vld [vmem:[%s1 + $0x78] sm:$0xf]
      %v736 = vld [vmem:[%s1 + $0x7c] sm:$0xf]
      %v737 = vld [vmem:[%s1 + $0x80] sm:$0xf]
      %v738 = vld [vmem:[%s1 + $0x84] sm:$0xf]
      %v739 = vld [vmem:[%s1 + $0x88] sm:$0xf]
      %v740 = vld [vmem:[%s1 + $0x8c] sm:$0xf]
      %v741 = vld [vmem:[%s1 + $0x90] sm:$0xf]
      %v742 = vld [vmem:[%s1 + $0x94] sm:$0xf]
      %v743 = vld [vmem:[%s1 + $0x98] sm:$0xf]
      %v744 = vld [vmem:[%s1 + $0x9c] sm:$0xf]
      %v745 = vld [vmem:[%s1 + $0xa0] sm:$0xf]
      %v746 = vld [vmem:[%s1 + $0xa4] sm:$0xf]
      %v747 = vld [vmem:[%s1 + $0xa8] sm:$0xf]
      %v748 = vld [vmem:[%s1 + $0xac] sm:$0xf]
      %v749 = vld [vmem:[%s1 + $0xb0] sm:$0xf]
      %v750 = vld [vmem:[%s1 + $0xb4] sm:$0xf]
      %v751 = vld [vmem:[%s1 + $0xb8] sm:$0xf]
      %v752 = vld [vmem:[%s1 + $0xbc] sm:$0xf]
      %v753 = vld [vmem:[%s1 + $0xc0] sm:$0xf]
      %v754 = vld [vmem:[%s1 + $0xc4] sm:$0xf]
      %v755 = vld [vmem:[%s1 + $0xc8] sm:$0xf]
      %v756 = vld [vmem:[%s1 + $0xcc] sm:$0xf]
      %v757 = vld [vmem:[%s1 + $0xd0] sm:$0xf]
      %v758 = vld [vmem:[%s1 + $0xd4] sm:$0xf]
      %v759 = vld [vmem:[%s1 + $0xd8] sm:$0xf]
      %v760 = vld [vmem:[%s1 + $0xdc] sm:$0xf]
      %v761 = vld [vmem:[%s1 + $0xe0] sm:$0xf]
      %v762 = vld [vmem:[%s1 + $0xe4] sm:$0xf]
      %v763 = vld [vmem:[%s1 + $0xe8] sm:$0xf]
      %v764 = vld [vmem:[%s1 + $0xec] sm:$0xf]
      %v765 = vld [vmem:[%s1 + $0xf0] sm:$0xf]
      %v766 = vld [vmem:[%s1 + $0xf4] sm:$0xf]
      %v767 = vld [vmem:[%s1 + $0xf8] sm:$0xf]
      %v768 = vld [vmem:[%s1 + $0xfc] sm:$0xf]
      %v769 = vld [vmem:[%s1 + $0x100] sm:$0xf]
      %v770 = vld [vmem:[%s1 + $0x104] sm:$0xf]
      %v771 = vld [vmem:[%s1 + $0x108] sm:$0xf]
      %v772 = vld [vmem:[%s1 + $0x10c] sm:$0xf]
      %v773 = vld [vmem:[%s1 + $0x110] sm:$0xf]
      %v774 = vld [vmem:[%s1 + $0x114] sm:$0xf]
      %v775 = vld [vmem:[%s1 + $0x118] sm:$0xf]
      %v776 = vld [vmem:[%s1 + $0x11c] sm:$0xf]
      %v777 = vld [vmem:[%s1 + $0x120] sm:$0xf]
      %v778 = vld [vmem:[%s1 + $0x124] sm:$0xf]
      %v779 = vld [vmem:[%s1 + $0x128] sm:$0xf]
      %v780 = vld [vmem:[%s1 + $0x12c] sm:$0xf]
      %v781 = vld [vmem:[%s1 + $0x130] sm:$0xf]
      %v782 = vld [vmem:[%s1 + $0x134] sm:$0xf]
      %v783 = vld [vmem:[%s1 + $0x138] sm:$0xf]
      %v784 = vld [vmem:[%s1 + $0x13c] sm:$0xf]
      %v785 = vld [vmem:[%s1 + $0x140] sm:$0xf]
      %v786 = vld [vmem:[%s1 + $0x144] sm:$0xf]
      %v787 = vld [vmem:[%s1 + $0x148] sm:$0xf]
      %v788 = vld [vmem:[%s1 + $0x14c] sm:$0xf]
      %v789 = vld [vmem:[%s1 + $0x150] sm:$0xf]
      %v790 = vld [vmem:[%s1 + $0x154] sm:$0xf]
      %v791 = vld [vmem:[%s1 + $0x158] sm:$0xf]
      %v792 = vld [vmem:[%s1 + $0x15c] sm:$0xf]
      %v793 = vld [vmem:[%s1 + $0x160] sm:$0xf]
      %v794 = vld [vmem:[%s1 + $0x164] sm:$0xf]
      %v795 = vld [vmem:[%s1 + $0x168] sm:$0xf]
      %v796 = vld [vmem:[%s1 + $0x16c] sm:$0xf]
      %v797 = vld [vmem:[%s1 + $0x170] sm:$0xf]
      %v798 = vld [vmem:[%s1 + $0x174] sm:$0xf]
      %v799 = vld [vmem:[%s1 + $0x178] sm:$0xf]
      %v800 = vld [vmem:[%s1 + $0x17c] sm:$0xf]
      %v801 = vld [vmem:[%s1 + $0x180] sm:$0xf]
      %v802 = vld [vmem:[%s1 + $0x184] sm:$0xf]
      %v803 = vld [vmem:[%s1 + $0x188] sm:$0xf]
      %v804 = vld [vmem:[%s1 + $0x18c] sm:$0xf]
      %v805 = vld [vmem:[%s1 + $0x190] sm:$0xf]
      %v806 = vld [vmem:[%s1 + $0x194] sm:$0xf]
      %v807 = vld [vmem:[%s1 + $0x198] sm:$0xf]
      %v808 = vld [vmem:[%s1 + $0x19c] sm:$0xf]
      %v809 = vld [vmem:[%s1 + $0x1a0] sm:$0xf]
      %v810 = vld [vmem:[%s1 + $0x1a4] sm:$0xf]
      %v811 = vld [vmem:[%s1 + $0x1a8] sm:$0xf]
      %v812 = vld [vmem:[%s1 + $0x1ac] sm:$0xf]
      %v813 = vld [vmem:[%s1 + $0x1b0] sm:$0xf]
      %v814 = vld [vmem:[%s1 + $0x1b4] sm:$0xf]
      %v815 = vld [vmem:[%s1 + $0x1b8] sm:$0xf]
      %v816 = vld [vmem:[%s1 + $0x1bc] sm:$0xf]
      %v817 = vld [vmem:[%s1 + $0x1c0] sm:$0xf]
      %v818 = vld [vmem:[%s1 + $0x1c4] sm:$0xf]
      %v819 = vld [vmem:[%s1 + $0x1c8] sm:$0xf]
      %v820 = vld [vmem:[%s1 + $0x1cc] sm:$0xf]
      %v821 = vld [vmem:[%s1 + $0x1d0] sm:$0xf]
      %v822 = vld [vmem:[%s1 + $0x1d4] sm:$0xf]
      %v823 = vld [vmem:[%s1 + $0x1d8] sm:$0xf]
      %v824 = vld [vmem:[%s1 + $0x1dc] sm:$0xf]
      %v825 = vld [vmem:[%s1 + $0x1e0] sm:$0xf]
      %v826 = vld [vmem:[%s1 + $0x1e4] sm:$0xf]
      %v827 = vld [vmem:[%s1 + $0x1e8] sm:$0xf]
      %v828 = vld [vmem:[%s1 + $0x1ec] sm:$0xf]
      %v829 = vld [vmem:[%s1 + $0x1f0] sm:$0xf]
      %v830 = vld [vmem:[%s1 + $0x1f4] sm:$0xf]
      %v831 = vld [vmem:[%s1 + $0x1f8] sm:$0xf]
      %v832 = vld [vmem:[%s1 + $0x1fc] sm:$0xf]
      %v833 = vld [vmem:[%s1 + $0x200] sm:$0xf]
      %v834 = vld [vmem:[%s1 + $0x204] sm:$0xf]
      %v835 = vld [vmem:[%s1 + $0x208] sm:$0xf]
      %v836 = vld [vmem:[%s1 + $0x20c] sm:$0xf]
      %v837 = vld [vmem:[%s1 + $0x210] sm:$0xf]
      %v838 = vld [vmem:[%s1 + $0x214] sm:$0xf]
      %v839 = vld [vmem:[%s1 + $0x218] sm:$0xf]
      %v840 = vld [vmem:[%s1 + $0x21c] sm:$0xf]
      %v841 = vld [vmem:[%s1 + $0x220] sm:$0xf]
      %v842 = vld [vmem:[%s1 + $0x224] sm:$0xf]
      %v843 = vld [vmem:[%s1 + $0x228] sm:$0xf]
      %v844 = vld [vmem:[%s1 + $0x22c] sm:$0xf]
      %v845 = vld [vmem:[%s1 + $0x230] sm:$0xf]
      %v846 = vld [vmem:[%s1 + $0x234] sm:$0xf]
      %v847 = vld [vmem:[%s1 + $0x238] sm:$0xf]
      %v848 = vld [vmem:[%s1 + $0x23c] sm:$0xf]
      %v849 = vld [vmem:[%s2] sm:$0x1]
      %v851 = vlaneseq
      %v852 = vshrl.u32 %v851, 7
      %v853 = vsub.s32 0, %v852
      %v854 = vrot.slane %v849, %v853
      %v1000 = vunpack.c.l.b16 %v705
      %v1001 = vunpack.c.l.b16 %v706
      %v1002 = vunpack.c.l.b16 %v707
      %v1003 = vunpack.c.l.b16 %v708
      %v1004 = vunpack.c.l.b16 %v709
      %v1005 = vunpack.c.l.b16 %v710
      %v1006 = vunpack.c.l.b16 %v711
      %v1007 = vunpack.c.l.b16 %v712
      %v1008 = vunpack.c.l.b16 %v713
      %v1009 = vunpack.c.l.b16 %v714
      %v1010 = vunpack.c.l.b16 %v715
      %v1011 = vunpack.c.l.b16 %v716
      %v1012 = vunpack.c.l.b16 %v717
      %v1013 = vunpack.c.l.b16 %v718
      %v1014 = vunpack.c.l.b16 %v719
      %v1015 = vunpack.c.l.b16 %v720
      %v1016 = vunpack.c.l.b16 %v721
      %v1017 = vunpack.c.l.b16 %v722
      %v1018 = vunpack.c.l.b16 %v723
      %v1019 = vunpack.c.l.b16 %v724
      %v1020 = vunpack.c.l.b16 %v725
      %v1021 = vunpack.c.l.b16 %v726
      %v1022 = vunpack.c.l.b16 %v727
      %v1023 = vunpack.c.l.b16 %v728
      %v1024 = vunpack.c.l.b16 %v729
      %v1025 = vunpack.c.l.b16 %v730
      %v1026 = vunpack.c.l.b16 %v731
      %v1027 = vunpack.c.l.b16 %v732
      %v1028 = vunpack.c.l.b16 %v733
      %v1029 = vunpack.c.l.b16 %v734
      %v1030 = vunpack.c.l.b16 %v735
      %v1031 = vunpack.c.l.b16 %v736
      %v1032 = vunpack.c.l.b16 %v737
      %v1033 = vunpack.c.l.b16 %v738
      %v1034 = vunpack.c.l.b16 %v739
      %v1035 = vunpack.c.l.b16 %v740
      %v1036 = vunpack.c.l.b16 %v741
      %v1037 = vunpack.c.l.b16 %v742
      %v1038 = vunpack.c.l.b16 %v743
      %v1039 = vunpack.c.l.b16 %v744
      %v1040 = vunpack.c.l.b16 %v745
      %v1041 = vunpack.c.l.b16 %v746
      %v1042 = vunpack.c.l.b16 %v747
      %v1043 = vunpack.c.l.b16 %v748
      %v1044 = vunpack.c.l.b16 %v749
      %v1045 = vunpack.c.l.b16 %v750
      %v1046 = vunpack.c.l.b16 %v751
      %v1047 = vunpack.c.l.b16 %v752
      %v1048 = vunpack.c.l.b16 %v753
      %v1049 = vunpack.c.l.b16 %v754
      %v1050 = vunpack.c.l.b16 %v755
      %v1051 = vunpack.c.l.b16 %v756
      %v1052 = vunpack.c.l.b16 %v757
      %v1053 = vunpack.c.l.b16 %v758
      %v1054 = vunpack.c.l.b16 %v759
      %v1055 = vunpack.c.l.b16 %v760
      %v1056 = vunpack.c.l.b16 %v761
      %v1057 = vunpack.c.l.b16 %v762
      %v1058 = vunpack.c.l.b16 %v763
      %v1059 = vunpack.c.l.b16 %v764
      %v1060 = vunpack.c.l.b16 %v765
      %v1061 = vunpack.c.l.b16 %v766
      %v1062 = vunpack.c.l.b16 %v767
      %v1063 = vunpack.c.l.b16 %v768
      %v1064 = vunpack.c.l.b16 %v769
      %v1065 = vunpack.c.l.b16 %v770
      %v1066 = vunpack.c.l.b16 %v771
      %v1067 = vunpack.c.l.b16 %v772
      %v1068 = vunpack.c.l.b16 %v773
      %v1069 = vunpack.c.l.b16 %v774
      %v1070 = vunpack.c.l.b16 %v775
      %v1071 = vunpack.c.l.b16 %v776
      %v1072 = vunpack.c.l.b16 %v777
      %v1073 = vunpack.c.l.b16 %v778
      %v1074 = vunpack.c.l.b16 %v779
      %v1075 = vunpack.c.l.b16 %v780
      %v1076 = vunpack.c.l.b16 %v781
      %v1077 = vunpack.c.l.b16 %v782
      %v1078 = vunpack.c.l.b16 %v783
      %v1079 = vunpack.c.l.b16 %v784
      %v1080 = vunpack.c.l.b16 %v785
      %v1081 = vunpack.c.l.b16 %v786
      %v1082 = vunpack.c.l.b16 %v787
      %v1083 = vunpack.c.l.b16 %v788
      %v1084 = vunpack.c.l.b16 %v789
      %v1085 = vunpack.c.l.b16 %v790
      %v1086 = vunpack.c.l.b16 %v791
      %v1087 = vunpack.c.l.b16 %v792
      %v1088 = vunpack.c.l.b16 %v793
      %v1089 = vunpack.c.l.b16 %v794
      %v1090 = vunpack.c.l.b16 %v795
      %v1091 = vunpack.c.l.b16 %v796
      %v1092 = vunpack.c.l.b16 %v797
      %v1093 = vunpack.c.l.b16 %v798
      %v1094 = vunpack.c.l.b16 %v799
      %v1095 = vunpack.c.l.b16 %v800
      %v1096 = vunpack.c.l.b16 %v801
      %v1097 = vunpack.c.l.b16 %v802
      %v1098 = vunpack.c.l.b16 %v803
      %v1099 = vunpack.c.l.b16 %v804
      %v1100 = vunpack.c.l.b16 %v805
      %v1101 = vunpack.c.l.b16 %v806
      %v1102 = vunpack.c.l.b16 %v807
      %v1103 = vunpack.c.l.b16 %v808
      %v1104 = vunpack.c.l.b16 %v809
      %v1105 = vunpack.c.l.b16 %v810
      %v1106 = vunpack.c.l.b16 %v811
      %v1107 = vunpack.c.l.b16 %v812
      %v1108 = vunpack.c.l.b16 %v813
      %v1109 = vunpack.c.l.b16 %v814
      %v1110 = vunpack.c.l.b16 %v815
      %v1111 = vunpack.c.l.b16 %v816
      %v1112 = vunpack.c.l.b16 %v817
      %v1113 = vunpack.c.l.b16 %v818
      %v1114 = vunpack.c.l.b16 %v819
      %v1115 = vunpack.c.l.b16 %v820
      %v1116 = vunpack.c.l.b16 %v821
      %v1117 = vunpack.c.l.b16 %v822
      %v1118 = vunpack.c.l.b16 %v823
      %v1119 = vunpack.c.l.b16 %v824
      %v1120 = vunpack.c.l.b16 %v825
      %v1121 = vunpack.c.l.b16 %v826
      %v1122 = vunpack.c.l.b16 %v827
      %v1123 = vunpack.c.l.b16 %v828
      %v1124 = vunpack.c.l.b16 %v829
      %v1125 = vunpack.c.l.b16 %v830
      %v1126 = vunpack.c.l.b16 %v831
      %v1127 = vunpack.c.l.b16 %v832
      %v1128 = vunpack.c.l.b16 %v833
      %v1129 = vunpack.c.l.b16 %v834
      %v1130 = vunpack.c.l.b16 %v835
      %v1131 = vunpack.c.l.b16 %v836
      %v1132 = vunpack.c.l.b16 %v837
      %v1133 = vunpack.c.l.b16 %v838
      %v1134 = vunpack.c.l.b16 %v839
      %v1135 = vunpack.c.l.b16 %v840
      %v1136 = vunpack.c.l.b16 %v841
      %v1137 = vunpack.c.l.b16 %v842
      %v1138 = vunpack.c.l.b16 %v843
      %v1139 = vunpack.c.l.b16 %v844
      %v1140 = vunpack.c.l.b16 %v845
      %v1141 = vunpack.c.l.b16 %v846
      %v1142 = vunpack.c.l.b16 %v847
      %v1143 = vunpack.c.l.b16 %v848
      %v1144 = vpack.c.b16 %v1001, %v1000
      %v1145 = vpack.c.b16 %v1003, %v1002
      %v1146 = vpack.c.b16 %v1005, %v1004
      %v1147 = vpack.c.b16 %v1007, %v1006
      %v1148 = vpack.c.b16 %v1009, %v1008
      %v1149 = vpack.c.b16 %v1011, %v1010
      %v1150 = vpack.c.b16 %v1013, %v1012
      %v1151 = vpack.c.b16 %v1015, %v1014
      %v1152 = vpack.c.b16 %v1017, %v1016
      %v1153 = vpack.c.b16 %v1019, %v1018
      %v1154 = vpack.c.b16 %v1021, %v1020
      %v1155 = vpack.c.b16 %v1023, %v1022
      %v1156 = vpack.c.b16 %v1025, %v1024
      %v1157 = vpack.c.b16 %v1027, %v1026
      %v1158 = vpack.c.b16 %v1029, %v1028
      %v1159 = vpack.c.b16 %v1031, %v1030
      %v1160 = vpack.c.b16 %v1033, %v1032
      %v1161 = vpack.c.b16 %v1035, %v1034
      %v1162 = vpack.c.b16 %v1037, %v1036
      %v1163 = vpack.c.b16 %v1039, %v1038
      %v1164 = vpack.c.b16 %v1041, %v1040
      %v1165 = vpack.c.b16 %v1043, %v1042
      %v1166 = vpack.c.b16 %v1045, %v1044
      %v1167 = vpack.c.b16 %v1047, %v1046
      %v1168 = vpack.c.b16 %v1049, %v1048
      %v1169 = vpack.c.b16 %v1051, %v1050
      %v1170 = vpack.c.b16 %v1053, %v1052
      %v1171 = vpack.c.b16 %v1055, %v1054
      %v1172 = vpack.c.b16 %v1057, %v1056
      %v1173 = vpack.c.b16 %v1059, %v1058
      %v1174 = vpack.c.b16 %v1061, %v1060
      %v1175 = vpack.c.b16 %v1063, %v1062
      %v1176 = vpack.c.b16 %v1065, %v1064
      %v1177 = vpack.c.b16 %v1067, %v1066
      %v1178 = vpack.c.b16 %v1069, %v1068
      %v1179 = vpack.c.b16 %v1071, %v1070
      %v1180 = vpack.c.b16 %v1073, %v1072
      %v1181 = vpack.c.b16 %v1075, %v1074
      %v1182 = vpack.c.b16 %v1077, %v1076
      %v1183 = vpack.c.b16 %v1079, %v1078
      %v1184 = vpack.c.b16 %v1081, %v1080
      %v1185 = vpack.c.b16 %v1083, %v1082
      %v1186 = vpack.c.b16 %v1085, %v1084
      %v1187 = vpack.c.b16 %v1087, %v1086
      %v1188 = vpack.c.b16 %v1089, %v1088
      %v1189 = vpack.c.b16 %v1091, %v1090
      %v1190 = vpack.c.b16 %v1093, %v1092
      %v1191 = vpack.c.b16 %v1095, %v1094
      %v1192 = vpack.c.b16 %v1097, %v1096
      %v1193 = vpack.c.b16 %v1099, %v1098
      %v1194 = vpack.c.b16 %v1101, %v1100
      %v1195 = vpack.c.b16 %v1103, %v1102
      %v1196 = vpack.c.b16 %v1105, %v1104
      %v1197 = vpack.c.b16 %v1107, %v1106
      %v1198 = vpack.c.b16 %v1109, %v1108
      %v1199 = vpack.c.b16 %v1111, %v1110
      %v1200 = vpack.c.b16 %v1113, %v1112
      %v1201 = vpack.c.b16 %v1115, %v1114
      %v1202 = vpack.c.b16 %v1117, %v1116
      %v1203 = vpack.c.b16 %v1119, %v1118
      %v1204 = vpack.c.b16 %v1121, %v1120
      %v1205 = vpack.c.b16 %v1123, %v1122
      %v1206 = vpack.c.b16 %v1125, %v1124
      %v1207 = vpack.c.b16 %v1127, %v1126
      %v1208 = vpack.c.b16 %v1129, %v1128
      %v1209 = vpack.c.b16 %v1131, %v1130
      %v1210 = vpack.c.b16 %v1133, %v1132
      %v1211 = vpack.c.b16 %v1135, %v1134
      %v1212 = vpack.c.b16 %v1137, %v1136
      %v1213 = vpack.c.b16 %v1139, %v1138
      %v1214 = vpack.c.b16 %v1141, %v1140
      %v1215 = vpack.c.b16 %v1143, %v1142
      %1288 = vmatprep.subr.bf16.mxu0 0
      %1289 = vmatpush1.bf16.msra.mxu0 %v1144
      %1290 = vmatprep.subr.bf16.mxu0 0
      %1291 = vmatpush1.bf16.msra.mxu0 %v1145
      %1292 = vmatprep.subr.bf16.mxu0 0
      %1293 = vmatpush1.bf16.msra.mxu0 %v1146
      %1294 = vmatprep.subr.bf16.mxu0 0
      %1295 = vmatpush1.bf16.msra.mxu0 %v1147
      %1296 = vmatprep.subr.bf16.mxu0 0
      %1297 = vmatpush1.bf16.msra.mxu0 %v1148
      %1298 = vmatprep.subr.bf16.mxu0 0
      %1299 = vmatpush1.bf16.msra.mxu0 %v1149
      %1300 = vmatprep.subr.bf16.mxu0 0
      %1301 = vmatpush1.bf16.msra.mxu0 %v1150
      %1302 = vmatprep.subr.bf16.mxu0 0
      %1303 = vmatpush1.bf16.msra.mxu0 %v1151
      %1304 = vmatprep.subr.bf16.mxu0 0
      %1305 = vmatpush1.bf16.msra.mxu0 %v1152
      %1306 = vmatprep.subr.bf16.mxu0 0
      %1307 = vmatpush1.bf16.msra.mxu0 %v1153
      %1308 = vmatprep.subr.bf16.mxu0 0
      %1309 = vmatpush1.bf16.msra.mxu0 %v1154
      %1310 = vmatprep.subr.bf16.mxu0 0
      %1311 = vmatpush1.bf16.msra.mxu0 %v1155
      %1312 = vmatprep.subr.bf16.mxu0 0
      %1313 = vmatpush1.bf16.msra.mxu0 %v1156
      %1314 = vmatprep.subr.bf16.mxu0 0
      %1315 = vmatpush1.bf16.msra.mxu0 %v1157
      %1316 = vmatprep.subr.bf16.mxu0 0
      %1317 = vmatpush1.bf16.msra.mxu0 %v1158
      %1318 = vmatprep.subr.bf16.mxu0 0
      %1319 = vmatpush1.bf16.msra.mxu0 %v1159
      %1320 = vmatprep.mubr.bf16.mxu0 %v392
      %1321 = vmatmul.mubr.bf16.gmra.mrb[0].mxu0 %v351
      %v1322 = vpop.f32.mrb[0].mxu0
      %v1323 = vadd.f32 %v854, %v1322
      %v1324 = vpop.f32.mrb[0].mxu0
      %v1325 = vpop.f32.mrb[0].mxu0
      %v1326 = vadd.f32 %v854, %v1325
      %v1327 = vpop.f32.mrb[0].mxu0
      %1328 = vmatprep.mubr.bf16.mxu0 %v394
      %1329 = vmatmul.mubr.bf16.gmra.mrb[0].mxu0 %v352
      %v1330 = vpop.f32.mrb[0].mxu0
      %v1331 = vadd.f32 %v854, %v1330
      %v1332 = vpop.f32.mrb[0].mxu0
      %v1333 = vpop.f32.mrb[0].mxu0
      %v1334 = vadd.f32 %v854, %v1333
      %v1335 = vpop.f32.mrb[0].mxu0
      %1336 = vmatprep.mubr.bf16.mxu0 %v396
      %1337 = vmatmul.mubr.bf16.gmra.mrb[0].mxu0 %v353
      %v1338 = vpop.f32.mrb[0].mxu0
      %v1339 = vadd.f32 %v854, %v1338
      %v1340 = vpop.f32.mrb[0].mxu0
      %v1341 = vpop.f32.mrb[0].mxu0
      %v1342 = vadd.f32 %v854, %v1341
      %v1343 = vpop.f32.mrb[0].mxu0
      %1344 = vmatprep.mubr.bf16.mxu0 %v398
      %1345 = vmatmul.mubr.bf16.gmra.mrb[0].mxu0 %v354
      %v1346 = vpop.f32.mrb[0].mxu0
      %v1347 = vadd.f32 %v854, %v1346
      %v1348 = vpop.f32.mrb[0].mxu0
      %v1349 = vpop.f32.mrb[0].mxu0
      %v1350 = vadd.f32 %v854, %v1349
      %v1351 = vpop.f32.mrb[0].mxu0
      %1352 = vmatprep.mubr.bf16.mxu0 %v400
      %1353 = vmatmul.mubr.bf16.gmra.mrb[0].mxu0 %v355
      %v1354 = vpop.f32.mrb[0].mxu0
      %v1355 = vadd.f32 %v854, %v1354
      %v1356 = vpop.f32.mrb[0].mxu0
      %v1357 = vpop.f32.mrb[0].mxu0
      %v1358 = vadd.f32 %v854, %v1357
      %v1359 = vpop.f32.mrb[0].mxu0
      %1360 = vdwg.mxu0
      %1361 = vmatprep.subr.bf16.mxu0 0
      %1362 = vmatpush1.bf16.msra.mxu0 %v1160
      %1363 = vmatprep.subr.bf16.mxu0 0
      %1364 = vmatpush1.bf16.msra.mxu0 %v1161
      %1365 = vmatprep.subr.bf16.mxu0 0
      %1366 = vmatpush1.bf16.msra.mxu0 %v1162
      %1367 = vmatprep.subr.bf16.mxu0 0
      %1368 = vmatpush1.bf16.msra.mxu0 %v1163
      %1369 = vmatprep.subr.bf16.mxu0 0
      %1370 = vmatpush1.bf16.msra.mxu0 %v1164
      %1371 = vmatprep.subr.bf16.mxu0 0
      %1372 = vmatpush1.bf16.msra.mxu0 %v1165
      %1373 = vmatprep.subr.bf16.mxu0 0
      %1374 = vmatpush1.bf16.msra.mxu0 %v1166
      %1375 = vmatprep.subr.bf16.mxu0 0
      %1376 = vmatpush1.bf16.msra.mxu0 %v1167
      %1377 = vmatprep.subr.bf16.mxu0 0
      %1378 = vmatpush1.bf16.msra.mxu0 %v1168
      %1379 = vmatprep.subr.bf16.mxu0 0
      %1380 = vmatpush1.bf16.msra.mxu0 %v1169
      %1381 = vmatprep.subr.bf16.mxu0 0
      %1382 = vmatpush1.bf16.msra.mxu0 %v1170
      %1383 = vmatprep.subr.bf16.mxu0 0
      %1384 = vmatpush1.bf16.msra.mxu0 %v1171
      %1385 = vmatprep.subr.bf16.mxu0 0
      %1386 = vmatpush1.bf16.msra.mxu0 %v1172
      %1387 = vmatprep.subr.bf16.mxu0 0
      %1388 = vmatpush1.bf16.msra.mxu0 %v1173
      %1389 = vmatprep.subr.bf16.mxu0 0
      %1390 = vmatpush1.bf16.msra.mxu0 %v1174
      %1391 = vmatprep.subr.bf16.mxu0 0
      %1392 = vmatpush1.bf16.msra.mxu0 %v1175
      %1393 = vmatprep.mubr.bf16.mxu0 %v479
      %1394 = vmatmul.mubr.bf16.gmra.mrb[0].mxu0 %v421
      %v1395 = vpop.f32.mrb[0].mxu0
      %v1396 = vadd.f32 %v1323, %v1395
      %v1397 = vpop.f32.mrb[0].mxu0
      %v1398 = vpop.f32.mrb[0].mxu0
      %v1399 = vadd.f32 %v1326, %v1398
      %v1400 = vpop.f32.mrb[0].mxu0
      %1401 = vmatprep.mubr.bf16.mxu0 %v480
      %1402 = vmatmul.mubr.bf16.gmra.mrb[0].mxu0 %v429
      %v1403 = vpop.f32.mrb[0].mxu0
      %v1404 = vadd.f32 %v1331, %v1403
      %v1405 = vpop.f32.mrb[0].mxu0
      %v1406 = vpop.f32.mrb[0].mxu0
      %v1407 = vadd.f32 %v1334, %v1406
      %v1408 = vpop.f32.mrb[0].mxu0
      %1409 = vmatprep.mubr.bf16.mxu0 %v481
      %1410 = vmatmul.mubr.bf16.gmra.mrb[0].mxu0 %v437
      %v1411 = vpop.f32.mrb[0].mxu0
      %v1412 = vadd.f32 %v1339, %v1411
      %v1413 = vpop.f32.mrb[0].mxu0
      %v1414 = vpop.f32.mrb[0].mxu0
      %v1415 = vadd.f32 %v1342, %v1414
      %v1416 = vpop.f32.mrb[0].mxu0
      %1417 = vmatprep.mubr.bf16.mxu0 %v482
      %1418 = vmatmul.mubr.bf16.gmra.mrb[0].mxu0 %v445
      %v1419 = vpop.f32.mrb[0].mxu0
      %v1420 = vadd.f32 %v1347, %v1419
      %v1421 = vpop.f32.mrb[0].mxu0
      %v1422 = vpop.f32.mrb[0].mxu0
      %v1423 = vadd.f32 %v1350, %v1422
      %v1424 = vpop.f32.mrb[0].mxu0
      %1425 = vmatprep.mubr.bf16.mxu0 %v483
      %1426 = vmatmul.mubr.bf16.gmra.mrb[0].mxu0 %v453
      %v1427 = vpop.f32.mrb[0].mxu0
      %v1428 = vadd.f32 %v1355, %v1427
      %v1429 = vpop.f32.mrb[0].mxu0
      %v1430 = vpop.f32.mrb[0].mxu0
      %v1431 = vadd.f32 %v1358, %v1430
      %v1432 = vpop.f32.mrb[0].mxu0
      %1433 = vdwg.mxu0
      %1434 = vmatprep.subr.bf16.mxu0 0
      %1435 = vmatpush1.bf16.msra.mxu0 %v1176
      %1436 = vmatprep.subr.bf16.mxu0 0
      %1437 = vmatpush1.bf16.msra.mxu0 %v1177
      %1438 = vmatprep.subr.bf16.mxu0 0
      %1439 = vmatpush1.bf16.msra.mxu0 %v1178
      %1440 = vmatprep.subr.bf16.mxu0 0
      %1441 = vmatpush1.bf16.msra.mxu0 %v1179
      %1442 = vmatprep.subr.bf16.mxu0 0
      %1443 = vmatpush1.bf16.msra.mxu0 %v1180
      %1444 = vmatprep.subr.bf16.mxu0 0
      %1445 = vmatpush1.bf16.msra.mxu0 %v1181
      %1446 = vmatprep.subr.bf16.mxu0 0
      %1447 = vmatpush1.bf16.msra.mxu0 %v1182
      %1448 = vmatprep.subr.bf16.mxu0 0
      %1449 = vmatpush1.bf16.msra.mxu0 %v1183
      %1450 = vmatprep.subr.bf16.mxu0 0
      %1451 = vmatpush1.bf16.msra.mxu0 %v1184
      %1452 = vmatprep.subr.bf16.mxu0 0
      %1453 = vmatpush1.bf16.msra.mxu0 %v1185
      %1454 = vmatprep.subr.bf16.mxu0 0
      %1455 = vmatpush1.bf16.msra.mxu0 %v1186
      %1456 = vmatprep.subr.bf16.mxu0 0
      %1457 = vmatpush1.bf16.msra.mxu0 %v1187
      %1458 = vmatprep.subr.bf16.mxu0 0
      %1459 = vmatpush1.bf16.msra.mxu0 %v1188
      %1460 = vmatprep.subr.bf16.mxu0 0
      %1461 = vmatpush1.bf16.msra.mxu0 %v1189
      %1462 = vmatprep.subr.bf16.mxu0 0
      %1463 = vmatpush1.bf16.msra.mxu0 %v1190
      %1464 = vmatprep.subr.bf16.mxu0 0
      %1465 = vmatpush1.bf16.msra.mxu0 %v1191
      %1466 = vmatprep.mubr.bf16.mxu0 %v547
      %1467 = vmatmul.mubr.bf16.gmra.mrb[0].mxu0 %v519
      %v1468 = vpop.f32.mrb[0].mxu0
      %v1469 = vadd.f32 %v1396, %v1468
      %v1470 = vpop.f32.mrb[0].mxu0
      %v1471 = vpop.f32.mrb[0].mxu0
      %v1472 = vadd.f32 %v1399, %v1471
      %v1473 = vpop.f32.mrb[0].mxu0
      %1474 = vmatprep.mubr.bf16.mxu0 %v555
      %1475 = vmatmul.mubr.bf16.gmra.mrb[0].mxu0 %v521
      %v1476 = vpop.f32.mrb[0].mxu0
      %v1477 = vadd.f32 %v1404, %v1476
      %v1478 = vpop.f32.mrb[0].mxu0
      %v1479 = vpop.f32.mrb[0].mxu0
      %v1480 = vadd.f32 %v1407, %v1479
      %v1481 = vpop.f32.mrb[0].mxu0
      %1482 = vmatprep.mubr.bf16.mxu0 %v563
      %1483 = vmatmul.mubr.bf16.gmra.mrb[0].mxu0 %v523
      %v1484 = vpop.f32.mrb[0].mxu0
      %v1485 = vadd.f32 %v1412, %v1484
      %v1486 = vpop.f32.mrb[0].mxu0
      %v1487 = vpop.f32.mrb[0].mxu0
      %v1488 = vadd.f32 %v1415, %v1487
      %v1489 = vpop.f32.mrb[0].mxu0
      %1490 = vmatprep.mubr.bf16.mxu0 %v571
      %1491 = vmatmul.mubr.bf16.gmra.mrb[0].mxu0 %v525
      %v1492 = vpop.f32.mrb[0].mxu0
      %v1493 = vadd.f32 %v1420, %v1492
      %v1494 = vpop.f32.mrb[0].mxu0
      %v1495 = vpop.f32.mrb[0].mxu0
      %v1496 = vadd.f32 %v1423, %v1495
      %v1497 = vpop.f32.mrb[0].mxu0
      %1498 = vmatprep.mubr.bf16.mxu0 %v579
      %1499 = vmatmul.mubr.bf16.gmra.mrb[0].mxu0 %v527
      %v1500 = vpop.f32.mrb[0].mxu0
      %v1501 = vadd.f32 %v1428, %v1500
      %v1502 = vpop.f32.mrb[0].mxu0
      %v1503 = vpop.f32.mrb[0].mxu0
      %v1504 = vadd.f32 %v1431, %v1503
      %v1505 = vpop.f32.mrb[0].mxu0
      %1506 = vdwg.mxu0
      %1507 = vmatprep.subr.bf16.mxu0 0
      %1508 = vmatpush1.bf16.msra.mxu0 %v1192
      %1509 = vmatprep.subr.bf16.mxu0 0
      %1510 = vmatpush1.bf16.msra.mxu0 %v1193
      %1511 = vmatprep.subr.bf16.mxu0 0
      %1512 = vmatpush1.bf16.msra.mxu0 %v1194
      %1513 = vmatprep.subr.bf16.mxu0 0
      %1514 = vmatpush1.bf16.msra.mxu0 %v1195
      %1515 = vmatprep.subr.bf16.mxu0 0
      %1516 = vmatpush1.bf16.msra.mxu0 %v1196
      %1517 = vmatprep.subr.bf16.mxu0 0
      %1518 = vmatpush1.bf16.msra.mxu0 %v1197
      %1519 = vmatprep.subr.bf16.mxu0 0
      %1520 = vmatpush1.bf16.msra.mxu0 %v1198
      %1521 = vmatprep.subr.bf16.mxu0 0
      %1522 = vmatpush1.bf16.msra.mxu0 %v1199
      %1523 = vmatprep.subr.bf16.mxu0 0
      %1524 = vmatpush1.bf16.msra.mxu0 %v1200
      %1525 = vmatprep.subr.bf16.mxu0 0
      %1526 = vmatpush1.bf16.msra.mxu0 %v1201
      %1527 = vmatprep.subr.bf16.mxu0 0
      %1528 = vmatpush1.bf16.msra.mxu0 %v1202
      %1529 = vmatprep.subr.bf16.mxu0 0
      %1530 = vmatpush1.bf16.msra.mxu0 %v1203
      %1531 = vmatprep.subr.bf16.mxu0 0
      %1532 = vmatpush1.bf16.msra.mxu0 %v1204
      %1533 = vmatprep.subr.bf16.mxu0 0
      %1534 = vmatpush1.bf16.msra.mxu0 %v1205
      %1535 = vmatprep.subr.bf16.mxu0 0
      %1536 = vmatpush1.bf16.msra.mxu0 %v1206
      %1537 = vmatprep.subr.bf16.mxu0 0
      %1538 = vmatpush1.bf16.msra.mxu0 %v1207
      %1539 = vmatprep.mubr.bf16.mxu0 %v629
      %1540 = vmatmul.mubr.bf16.gmra.mrb[0].mxu0 %v600
      %v1541 = vpop.f32.mrb[0].mxu0
      %v1542 = vadd.f32 %v1469, %v1541
      %v1543 = vpop.f32.mrb[0].mxu0
      %v1544 = vpop.f32.mrb[0].mxu0
      %v1545 = vadd.f32 %v1472, %v1544
      %v1546 = vpop.f32.mrb[0].mxu0
      %1547 = vmatprep.mubr.bf16.mxu0 %v631
      %1548 = vmatmul.mubr.bf16.gmra.mrb[0].mxu0 %v602
      %v1549 = vpop.f32.mrb[0].mxu0
      %v1550 = vadd.f32 %v1477, %v1549
      %v1551 = vpop.f32.mrb[0].mxu0
      %v1552 = vpop.f32.mrb[0].mxu0
      %v1553 = vadd.f32 %v1480, %v1552
      %v1554 = vpop.f32.mrb[0].mxu0
      %1555 = vmatprep.mubr.bf16.mxu0 %v633
      %1556 = vmatmul.mubr.bf16.gmra.mrb[0].mxu0 %v604
      %v1557 = vpop.f32.mrb[0].mxu0
      %v1558 = vadd.f32 %v1485, %v1557
      %v1559 = vpop.f32.mrb[0].mxu0
      %v1560 = vpop.f32.mrb[0].mxu0
      %v1561 = vadd.f32 %v1488, %v1560
      %v1562 = vpop.f32.mrb[0].mxu0
      %1563 = vmatprep.mubr.bf16.mxu0 %v635
      %1564 = vmatmul.mubr.bf16.gmra.mrb[0].mxu0 %v606
      %v1565 = vpop.f32.mrb[0].mxu0
      %v1566 = vadd.f32 %v1493, %v1565
      %v1567 = vpop.f32.mrb[0].mxu0
      %v1568 = vpop.f32.mrb[0].mxu0
      %v1569 = vadd.f32 %v1496, %v1568
      %v1570 = vpop.f32.mrb[0].mxu0
      %1571 = vmatprep.mubr.bf16.mxu0 %v637
      %1572 = vmatmul.mubr.bf16.gmra.mrb[0].mxu0 %v608
      %v1573 = vpop.f32.mrb[0].mxu0
      %v1574 = vadd.f32 %v1501, %v1573
      %v1575 = vpop.f32.mrb[0].mxu0
      %v1576 = vpop.f32.mrb[0].mxu0
      %v1577 = vadd.f32 %v1504, %v1576
      %v1578 = vpop.f32.mrb[0].mxu0
      %1579 = vdwg.mxu0
      %1580 = vmatprep.subr.bf16.mxu0 0
      %1581 = vmatpush1.bf16.msra.mxu0 %v1208
      %1582 = vmatprep.subr.bf16.mxu0 0
      %1583 = vmatpush1.bf16.msra.mxu0 %v1209
      %1584 = vmatprep.subr.bf16.mxu0 0
      %1585 = vmatpush1.bf16.msra.mxu0 %v1210
      %1586 = vmatprep.subr.bf16.mxu0 0
      %1587 = vmatpush1.bf16.msra.mxu0 %v1211
      %1588 = vmatprep.subr.bf16.mxu0 0
      %1589 = vmatpush1.bf16.msra.mxu0 %v1212
      %1590 = vmatprep.subr.bf16.mxu0 0
      %1591 = vmatpush1.bf16.msra.mxu0 %v1213
      %1592 = vmatprep.subr.bf16.mxu0 0
      %1593 = vmatpush1.bf16.msra.mxu0 %v1214
      %1594 = vmatprep.subr.bf16.mxu0 0
      %1595 = vmatpush1.bf16.msra.mxu0 %v1215
      %1596 = vmatprep.subr.bf16.mxu0 0
      %1597 = vmatpush1.bf16.msra.mxu0 0
      %1598 = vmatprep.subr.bf16.mxu0 0
      %1599 = vmatpush1.bf16.msra.mxu0 0
      %1600 = vmatprep.subr.bf16.mxu0 0
      %1601 = vmatpush1.bf16.msra.mxu0 0
      %1602 = vmatprep.subr.bf16.mxu0 0
      %1603 = vmatpush1.bf16.msra.mxu0 0
      %1604 = vmatprep.subr.bf16.mxu0 0
      %1605 = vmatpush1.bf16.msra.mxu0 0
      %1606 = vmatprep.subr.bf16.mxu0 0
      %1607 = vmatpush1.bf16.msra.mxu0 0
      %1608 = vmatprep.subr.bf16.mxu0 0
      %1609 = vmatpush1.bf16.msra.mxu0 0
      %1610 = vmatprep.subr.bf16.mxu0 0
      %1611 = vmatpush1.bf16.msra.mxu0 0
      %1612 = vmatprep.mubr.bf16.mxu0 0
      %1613 = vmatmul.mubr.bf16.gmra.mrb[0].mxu0 %v663
      %v1614 = vpop.f32.mrb[0].mxu0
      %v1615 = vadd.f32 %v1542, %v1614
      %v1616 = vpop.f32.mrb[0].mxu0
      %v1617 = vpop.f32.mrb[0].mxu0
      %v1618 = vadd.f32 %v1545, %v1617
      %v1619 = vpop.f32.mrb[0].mxu0
      %1620 = vmatprep.mubr.bf16.mxu0 0
      %1621 = vmatmul.mubr.bf16.gmra.mrb[0].mxu0 %v672
      %v1622 = vpop.f32.mrb[0].mxu0
      %v1623 = vadd.f32 %v1550, %v1622
      %v1624 = vpop.f32.mrb[0].mxu0
      %v1625 = vpop.f32.mrb[0].mxu0
      %v1626 = vadd.f32 %v1553, %v1625
      %v1627 = vpop.f32.mrb[0].mxu0
      %1628 = vmatprep.mubr.bf16.mxu0 0
      %1629 = vmatmul.mubr.bf16.gmra.mrb[0].mxu0 %v681
      %v1630 = vpop.f32.mrb[0].mxu0
      %v1631 = vadd.f32 %v1558, %v1630
      %v1632 = vpop.f32.mrb[0].mxu0
      %v1633 = vpop.f32.mrb[0].mxu0
      %v1634 = vadd.f32 %v1561, %v1633
      %v1635 = vpop.f32.mrb[0].mxu0
      %1636 = vmatprep.mubr.bf16.mxu0 0
      %1637 = vmatmul.mubr.bf16.gmra.mrb[0].mxu0 %v690
      %v1638 = vpop.f32.mrb[0].mxu0
      %v1639 = vadd.f32 %v1566, %v1638
      %v1640 = vpop.f32.mrb[0].mxu0
      %v1641 = vpop.f32.mrb[0].mxu0
      %v1642 = vadd.f32 %v1569, %v1641
      %v1643 = vpop.f32.mrb[0].mxu0
      %1644 = vmatprep.mubr.bf16.mxu0 0
      %1645 = vmatmul.mubr.bf16.gmra.mrb[0].mxu0 %v699
      %v1646 = vpop.f32.mrb[0].mxu0
      %v1647 = vadd.f32 %v1574, %v1646
      %v1648 = vpop.f32.mrb[0].mxu0
      %v1649 = vpop.f32.mrb[0].mxu0
      %v1650 = vadd.f32 %v1577, %v1649
      %v1651 = vpop.f32.mrb[0].mxu0
      %1652 = vdwg.mxu0
      %v1653 = vlaneseq
      %v1654 = vshrl.u32 %v1653, 7
      %v1655 = vadd.s32 %v1654, 8
      %v1656 = vadd.s32 %v1654, 16
      %v1657 = vadd.s32 %v1654, 24
      %v1658 = vadd.s32 %v1654, 32
      %v1659 = vadd.s32 %v1654, 40
      %v1660 = vadd.s32 %v1654, 48
      %v1661 = vadd.s32 %v1654, 56
      %v1662 = vadd.s32 %v1654, 64
      %v1663 = vadd.s32 %v1654, 72
      %vm1664 = vcmp.lt.s32.totalorder %v1654, 0
      %v1665 = vsub.s32 0, %v1654
      %v1666 = vsel %vm1664, %v1665, %v1654
      %v1667 = vmul.u32.u64.compose %v1666, 3435973837
      %v1668 = vextract.low.u32 %v1667
      %v1669 = vextract.high.u32 %v1667
      %v1670 = vshrl.u32 %v1669, 3
      %v1671 = vmul.u32 %v1670, 10
      %v1672 = vsub.s32 %v1666, %v1671
      %v1673 = vsub.s32 0, %v1672
      %v1674 = vsel %vm1664, %v1673, %v1672
      %vm1675 = vcmp.lt.s32.totalorder %v1655, 0
      %v1676 = vsub.s32 0, %v1655
      %v1677 = vsel %vm1675, %v1676, %v1655
      %v1678 = vmul.u32.u64.compose %v1677, 3435973837
      %v1679 = vextract.low.u32 %v1678
      %v1680 = vextract.high.u32 %v1678
      %v1681 = vshrl.u32 %v1680, 3
      %v1682 = vmul.u32 %v1681, 10
      %v1683 = vsub.s32 %v1677, %v1682
      %v1684 = vsub.s32 0, %v1683
      %v1685 = vsel %vm1675, %v1684, %v1683
      %vm1686 = vcmp.lt.s32.totalorder %v1656, 0
      %v1687 = vsub.s32 0, %v1656
      %v1688 = vsel %vm1686, %v1687, %v1656
      %v1689 = vmul.u32.u64.compose %v1688, 3435973837
      %v1690 = vextract.low.u32 %v1689
      %v1691 = vextract.high.u32 %v1689
      %v1692 = vshrl.u32 %v1691, 3
      %v1693 = vmul.u32 %v1692, 10
      %v1694 = vsub.s32 %v1688, %v1693
      %v1695 = vsub.s32 0, %v1694
      %v1696 = vsel %vm1686, %v1695, %v1694
      %vm1697 = vcmp.lt.s32.totalorder %v1657, 0
      %v1698 = vsub.s32 0, %v1657
      %v1699 = vsel %vm1697, %v1698, %v1657
      %v1700 = vmul.u32.u64.compose %v1699, 3435973837
      %v1701 = vextract.low.u32 %v1700
      %v1702 = vextract.high.u32 %v1700
      %v1703 = vshrl.u32 %v1702, 3
      %v1704 = vmul.u32 %v1703, 10
      %v1705 = vsub.s32 %v1699, %v1704
      %v1706 = vsub.s32 0, %v1705
      %v1707 = vsel %vm1697, %v1706, %v1705
      %vm1708 = vcmp.lt.s32.totalorder %v1658, 0
      %v1709 = vsub.s32 0, %v1658
      %v1710 = vsel %vm1708, %v1709, %v1658
      %v1711 = vmul.u32.u64.compose %v1710, 3435973837
      %v1712 = vextract.low.u32 %v1711
      %v1713 = vextract.high.u32 %v1711
      %v1714 = vshrl.u32 %v1713, 3
      %v1715 = vmul.u32 %v1714, 10
      %v1716 = vsub.s32 %v1710, %v1715
      %v1717 = vsub.s32 0, %v1716
      %v1718 = vsel %vm1708, %v1717, %v1716
      %vm1719 = vcmp.lt.s32.totalorder %v1659, 0
      %v1720 = vsub.s32 0, %v1659
      %v1721 = vsel %vm1719, %v1720, %v1659
      %v1722 = vmul.u32.u64.compose %v1721, 3435973837
      %v1723 = vextract.low.u32 %v1722
      %v1724 = vextract.high.u32 %v1722
      %v1725 = vshrl.u32 %v1724, 3
      %v1726 = vmul.u32 %v1725, 10
      %v1727 = vsub.s32 %v1721, %v1726
      %v1728 = vsub.s32 0, %v1727
      %v1729 = vsel %vm1719, %v1728, %v1727
      %vm1730 = vcmp.lt.s32.totalorder %v1660, 0
      %v1731 = vsub.s32 0, %v1660
      %v1732 = vsel %vm1730, %v1731, %v1660
      %v1733 = vmul.u32.u64.compose %v1732, 3435973837
      %v1734 = vextract.low.u32 %v1733
      %v1735 = vextract.high.u32 %v1733
      %v1736 = vshrl.u32 %v1735, 3
      %v1737 = vmul.u32 %v1736, 10
      %v1738 = vsub.s32 %v1732, %v1737
      %v1739 = vsub.s32 0, %v1738
      %v1740 = vsel %vm1730, %v1739, %v1738
      %vm1741 = vcmp.lt.s32.totalorder %v1661, 0
      %v1742 = vsub.s32 0, %v1661
      %v1743 = vsel %vm1741, %v1742, %v1661
      %v1744 = vmul.u32.u64.compose %v1743, 3435973837
      %v1745 = vextract.low.u32 %v1744
      %v1746 = vextract.high.u32 %v1744
      %v1747 = vshrl.u32 %v1746, 3
      %v1748 = vmul.u32 %v1747, 10
      %v1749 = vsub.s32 %v1743, %v1748
      %v1750 = vsub.s32 0, %v1749
      %v1751 = vsel %vm1741, %v1750, %v1749
      %vm1752 = vcmp.lt.s32.totalorder %v1662, 0
      %v1753 = vsub.s32 0, %v1662
      %v1754 = vsel %vm1752, %v1753, %v1662
      %v1755 = vmul.u32.u64.compose %v1754, 3435973837
      %v1756 = vextract.low.u32 %v1755
      %v1757 = vextract.high.u32 %v1755
      %v1758 = vshrl.u32 %v1757, 3
      %v1759 = vmul.u32 %v1758, 10
      %v1760 = vsub.s32 %v1754, %v1759
      %v1761 = vsub.s32 0, %v1760
      %v1762 = vsel %vm1752, %v1761, %v1760
      %vm1763 = vcmp.lt.s32.totalorder %v1663, 0
      %v1764 = vsub.s32 0, %v1663
      %v1765 = vsel %vm1763, %v1764, %v1663
      %v1766 = vmul.u32.u64.compose %v1765, 3435973837
      %v1767 = vextract.low.u32 %v1766
      %v1768 = vextract.high.u32 %v1766
      %v1769 = vshrl.u32 %v1768, 3
      %v1770 = vmul.u32 %v1769, 10
      %v1771 = vsub.s32 %v1765, %v1770
      %v1772 = vsub.s32 0, %v1771
      %v1773 = vsel %vm1763, %v1772, %v1771
      %vm1774 = vcmp.ne.s32.totalorder %v1674, 0
      %vm1775 = vcmp.ne.s32.totalorder %v1685, 0
      %vm1776 = vcmp.ne.s32.totalorder %v1696, 0
      %vm1777 = vcmp.ne.s32.totalorder %v1707, 0
      %vm1778 = vcmp.ne.s32.totalorder %v1718, 0
      %vm1779 = vcmp.ne.s32.totalorder %v1729, 0
      %vm1780 = vcmp.ne.s32.totalorder %v1740, 0
      %vm1781 = vcmp.ne.s32.totalorder %v1751, 0
      %vm1782 = vcmp.ne.s32.totalorder %v1762, 0
      %vm1783 = vcmp.ne.s32.totalorder %v1773, 0
      %vm1784 = vcmp.lt.s32.totalorder %v1674, 0
      %vm1785 = vcmp.lt.s32.totalorder %v1685, 0
      %vm1786 = vcmp.lt.s32.totalorder %v1696, 0
      %vm1787 = vcmp.lt.s32.totalorder %v1707, 0
      %vm1788 = vcmp.lt.s32.totalorder %v1718, 0
      %vm1789 = vcmp.lt.s32.totalorder %v1729, 0
      %vm1790 = vcmp.lt.s32.totalorder %v1740, 0
      %vm1791 = vcmp.lt.s32.totalorder %v1751, 0
      %vm1792 = vcmp.lt.s32.totalorder %v1762, 0
      %vm1793 = vcmp.lt.s32.totalorder %v1773, 0
      %vm1794 = vmand %vm1784, %vm1774
      %vm1795 = vmand %vm1785, %vm1775
      %vm1796 = vmand %vm1786, %vm1776
      %vm1797 = vmand %vm1787, %vm1777
      %vm1798 = vmand %vm1788, %vm1778
      %vm1799 = vmand %vm1789, %vm1779
      %vm1800 = vmand %vm1790, %vm1780
      %vm1801 = vmand %vm1791, %vm1781
      %vm1802 = vmand %vm1792, %vm1782
      %vm1803 = vmand %vm1793, %vm1783
      %v1804 = vadd.s32 %v1674, 10
      %v1805 = vadd.s32 %v1685, 10
      %v1806 = vadd.s32 %v1696, 10
      %v1807 = vadd.s32 %v1707, 10
      %v1808 = vadd.s32 %v1718, 10
      %v1809 = vadd.s32 %v1729, 10
      %v1810 = vadd.s32 %v1740, 10
      %v1811 = vadd.s32 %v1751, 10
      %v1812 = vadd.s32 %v1762, 10
      %v1813 = vadd.s32 %v1773, 10
      %v1814 = vsel %vm1794, %v1804, %v1674
      %v1815 = vsel %vm1795, %v1805, %v1685
      %v1816 = vsel %vm1796, %v1806, %v1696
      %v1817 = vsel %vm1797, %v1807, %v1707
      %v1818 = vsel %vm1798, %v1808, %v1718
      %v1819 = vsel %vm1799, %v1809, %v1729
      %v1820 = vsel %vm1800, %v1810, %v1740
      %v1821 = vsel %vm1801, %v1811, %v1751
      %v1822 = vsel %vm1802, %v1812, %v1762
      %v1823 = vsel %vm1803, %v1813, %v1773
      %vm1824 = vcmp.lt.s32.totalorder %v1814, 8
      %vm1825 = vcmp.lt.s32.totalorder %v1815, 8
      %vm1826 = vcmp.lt.s32.totalorder %v1816, 8
      %vm1827 = vcmp.lt.s32.totalorder %v1817, 8
      %vm1828 = vcmp.lt.s32.totalorder %v1818, 8
      %vm1829 = vcmp.lt.s32.totalorder %v1819, 8
      %vm1830 = vcmp.lt.s32.totalorder %v1820, 8
      %vm1831 = vcmp.lt.s32.totalorder %v1821, 8
      %vm1832 = vcmp.lt.s32.totalorder %v1822, 8
      %vm1833 = vcmp.lt.s32.totalorder %v1823, 8
      %v1834 = vmax.f32 %v1615, 0.0
      %v1835 = vmax.f32 %v1618, 0.0
      %v1836 = vmax.f32 %v1623, 0.0
      %v1837 = vmax.f32 %v1626, 0.0
      %v1838 = vmax.f32 %v1631, 0.0
      %v1839 = vmax.f32 %v1634, 0.0
      %v1840 = vmax.f32 %v1639, 0.0
      %v1841 = vmax.f32 %v1642, 0.0
      %v1842 = vmax.f32 %v1647, 0.0
      %v1843 = vmax.f32 %v1650, 0.0
      %v1844 = vsel %vm1824, 1, 0
      %v1845 = vsel %vm1825, 1, 0
      %v1846 = vsel %vm1826, 1, 0
      %v1847 = vsel %vm1827, 1, 0
      %v1848 = vsel %vm1828, 1, 0
      %v1849 = vsel %vm1829, 1, 0
      %v1850 = vsel %vm1830, 1, 0
      %v1851 = vsel %vm1831, 1, 0
      %v1852 = vsel %vm1832, 1, 0
      %v1853 = vsel %vm1833, 1, 0
      %vm1854 = vcmp.eq.s32.totalorder %v1844, 1
      %vm1855 = vcmp.eq.s32.totalorder %v1845, 1
      %vm1856 = vcmp.eq.s32.totalorder %v1846, 1
      %vm1857 = vcmp.eq.s32.totalorder %v1847, 1
      %vm1858 = vcmp.eq.s32.totalorder %v1848, 1
      %vm1859 = vcmp.eq.s32.totalorder %v1849, 1
      %vm1860 = vcmp.eq.s32.totalorder %v1850, 1
      %vm1861 = vcmp.eq.s32.totalorder %v1851, 1
      %vm1862 = vcmp.eq.s32.totalorder %v1852, 1
      %vm1863 = vcmp.eq.s32.totalorder %v1853, 1
      %v1864 = vsel %vm1854, %v1834, 0.0
      %v1865 = vsel %vm1855, %v1835, 0.0
      %v1866 = vsel %vm1856, %v1836, 0.0
      %v1867 = vsel %vm1857, %v1837, 0.0
      %v1868 = vsel %vm1858, %v1838, 0.0
      %v1869 = vsel %vm1859, %v1839, 0.0
      %v1870 = vsel %vm1860, %v1840, 0.0
      %v1871 = vsel %vm1861, %v1841, 0.0
      %v1872 = vsel %vm1862, %v1842, 0.0
      %v1873 = vsel %vm1863, %v1843, 0.0
      %v1874 = vpack.c.bf16 %v1865, %v1864
      %v1875 = vpack.c.bf16 %v1867, %v1866
      %v1876 = vpack.c.bf16 %v1869, %v1868
      %v1877 = vpack.c.bf16 %v1871, %v1870
      %v1878 = vpack.c.bf16 %v1873, %v1872
      %1879 = vst [vmem:[#allocation2] sm:$0xf] 0
      %vm1880 = vcmask 1041408
      %vm1881 = vsmask.f32 1280
      %vm1882 = vmand %vm1880, %vm1881
      %v1883 = vld [vmem:[#allocation2 + $0x4] sm:$0x3]
      %v1884 = vsel %vm1882, 0, %v1883
      %1885 = vst [vmem:[#allocation2 + $0x4] sm:$0x3] %v1884
      %vm1886 = vcmask 1043457
      %vm1887 = vsmask.f32 7942
      %vm1888 = vmand %vm1886, %vm1887
      %v1889 = vld [vmem:[#allocation2 + $0x2c] sm:$0xe]
      %v1890 = vsel %vm1888, 0, %v1889
      %1891 = vst [vmem:[#allocation2 + $0x2c] sm:$0xe] %v1890
      %1892 = vst [vmem:[#allocation2 + $0x30] sm:$0xf] 0
      %1893 = vst [vmem:[#allocation2 + $0x34] sm:$0x7] 0
      %v1899 = vunpack.c.l.b16 %v1874
      %v1900 = vunpack.c.h.b16 %v1874
      %v1901 = vunpack.c.l.b16 %v1875
      %v1902 = vunpack.c.h.b16 %v1875
      %v1903 = vunpack.c.l.b16 %v1876
      %v1904 = vunpack.c.h.b16 %v1876
      %v1905 = vunpack.c.l.b16 %v1877
      %v1906 = vunpack.c.h.b16 %v1877
      %v1907 = vunpack.c.l.b16 %v1878
      %v1908 = vunpack.c.h.b16 %v1878
      %v1909 = vpack.c.b16 %v1899, %v1899
      %v1910 = vpack.c.b16 %v1900, %v1900
      %v1911 = vpack.c.b16 %v1901, %v1901
      %v1912 = vpack.c.b16 %v1902, %v1902
      %v1913 = vpack.c.b16 %v1903, %v1903
      %v1914 = vpack.c.b16 %v1904, %v1904
      %v1915 = vpack.c.b16 %v1905, %v1905
      %v1916 = vpack.c.b16 %v1906, %v1906
      %v1917 = vpack.c.b16 %v1907, %v1907
      %v1918 = vpack.c.b16 %v1908, %v1908
      %vm1919 = vsmask.f32 5392
      %vm1920 = vmor %vm1881, %vm1919
      %v1922 = vshrl.u32 %v1909, 16
      %v1924 = vrot.slane %v1922, 6
      %v1925 = vshll.u32 %v1909, 16
      %v1927 = vrot.slane %v1925, 7
      %v1928 = vor.u32 %v1924, %v1927
      %v1929 = vrot.slane %v1928, 4
      %v1931 = vshrl.u32 %v1910, 16
      %v1933 = vrot.slane %v1931, 6
      %v1934 = vshll.u32 %v1910, 16
      %v1936 = vrot.slane %v1934, 7
      %v1937 = vor.u32 %v1933, %v1936
      %v1938 = vsel %vm1920, %v1929, %v1937
      %v1939 = vrot.slane %v1937, 4
      %v1941 = vshrl.u32 %v1911, 16
      %v1943 = vrot.slane %v1941, 6
      %v1944 = vshll.u32 %v1911, 16
      %v1946 = vrot.slane %v1944, 7
      %v1947 = vor.u32 %v1943, %v1946
      %v1948 = vsel %vm1920, %v1939, %v1947
      %v1949 = vrot.slane %v1947, 4
      %v1951 = vshrl.u32 %v1912, 16
      %v1953 = vrot.slane %v1951, 6
      %v1954 = vshll.u32 %v1912, 16
      %v1956 = vrot.slane %v1954, 7
      %v1957 = vor.u32 %v1953, %v1956
      %v1958 = vsel %vm1920, %v1949, %v1957
      %v1959 = vrot.slane %v1957, 4
      %v1961 = vshrl.u32 %v1913, 16
      %v1963 = vrot.slane %v1961, 6
      %v1964 = vshll.u32 %v1913, 16
      %v1966 = vrot.slane %v1964, 7
      %v1967 = vor.u32 %v1963, %v1966
      %v1968 = vsel %vm1920, %v1959, %v1967
      %v1969 = vrot.slane %v1967, 4
      %v1971 = vshrl.u32 %v1914, 16
      %v1973 = vrot.slane %v1971, 6
      %v1974 = vshll.u32 %v1914, 16
      %v1976 = vrot.slane %v1974, 7
      %v1977 = vor.u32 %v1973, %v1976
      %v1978 = vsel %vm1920, %v1969, %v1977
      %v1979 = vrot.slane %v1977, 4
      %v1981 = vshrl.u32 %v1915, 16
      %v1983 = vrot.slane %v1981, 6
      %v1984 = vshll.u32 %v1915, 16
      %v1986 = vrot.slane %v1984, 7
      %v1987 = vor.u32 %v1983, %v1986
      %v1988 = vsel %vm1920, %v1979, %v1987
      %v1989 = vrot.slane %v1987, 4
      %v1991 = vshrl.u32 %v1916, 16
      %v1993 = vrot.slane %v1991, 6
      %v1994 = vshll.u32 %v1916, 16
      %v1996 = vrot.slane %v1994, 7
      %v1997 = vor.u32 %v1993, %v1996
      %v1998 = vsel %vm1920, %v1989, %v1997
      %v1999 = vrot.slane %v1997, 4
      %v2001 = vshrl.u32 %v1917, 16
      %v2003 = vrot.slane %v2001, 6
      %v2004 = vshll.u32 %v1917, 16
      %v2006 = vrot.slane %v2004, 7
      %v2007 = vor.u32 %v2003, %v2006
      %v2008 = vsel %vm1920, %v1999, %v2007
      %v2009 = vrot.slane %v2007, 4
      %v2011 = vshrl.u32 %v1918, 16
      %v2013 = vrot.slane %v2011, 6
      %v2014 = vshll.u32 %v1918, 16
      %v2016 = vrot.slane %v2014, 7
      %v2017 = vor.u32 %v2013, %v2016
      %v2018 = vsel %vm1920, %v2009, %v2017
      %v2019 = vrot.slane %v2017, 4
      %v2031 = vld [vmem:[#allocation2 + $0x4] sm:$0xe]
      %v2032 = vsel %vm1888, %v1928, %v2031
      %2033 = vst [vmem:[#allocation2 + $0x4] sm:$0xe] %v2032
      %2034 = vst [vmem:[#allocation2 + $0x8] sm:$0xf] %v1938
      %2035 = vst [vmem:[#allocation2 + $0xc] sm:$0xf] %v1948
      %2036 = vst [vmem:[#allocation2 + $0x10] sm:$0xf] %v1958
      %2037 = vst [vmem:[#allocation2 + $0x14] sm:$0xf] %v1968
      %2038 = vst [vmem:[#allocation2 + $0x18] sm:$0xf] %v1978
      %2039 = vst [vmem:[#allocation2 + $0x1c] sm:$0xf] %v1988
      %2040 = vst [vmem:[#allocation2 + $0x20] sm:$0xf] %v1998
      %2041 = vst [vmem:[#allocation2 + $0x24] sm:$0xf] %v2008
      %2042 = vst [vmem:[#allocation2 + $0x28] sm:$0xf] %v2018
      %v2043 = vld [vmem:[#allocation2 + $0x2c] sm:$0x3]
      %v2044 = vsel %vm1882, %v2019, %v2043
      %2045 = vst [vmem:[#allocation2 + $0x2c] sm:$0x3] %v2044
      %v2046 = vld [vmem:[%s273 + $0x94] sm:$0xc]
      %v2047 = vld [vmem:[%s273 + $0x98] sm:$0xf]
      %v2048 = vld [vmem:[%s273 + $0x9c] sm:$0xf]
      %v2049 = vld [vmem:[%s273 + $0xa0] sm:$0xf]
      %v2050 = vld [vmem:[%s273 + $0xa4] sm:$0xf]
      %v2051 = vld [vmem:[%s273 + $0xa8] sm:$0xf]
      %v2052 = vld [vmem:[%s273 + $0xac] sm:$0xf]
      %v2053 = vld [vmem:[%s273 + $0xb0] sm:$0xf]
      %v2054 = vld [vmem:[%s273 + $0xb4] sm:$0xf]
      %v2055 = vld [vmem:[%s273 + $0xb8] sm:$0xf]
      %v2056 = vld [vmem:[%s273 + $0xbc] sm:$0x3]
      %v2057 = vld [vmem:[%s5] sm:$0xf]
      %v2058 = vld [vmem:[%s5 + $0x4] sm:$0xf]
      %v2059 = vld [vmem:[%s5 + $0x8] sm:$0xf]
      %v2060 = vld [vmem:[%s5 + $0xc] sm:$0xf]
      %v2061 = vld [vmem:[%s5 + $0x10] sm:$0xf]
      %v2062 = vld [vmem:[%s5 + $0x14] sm:$0xf]
      %v2063 = vld [vmem:[%s5 + $0x18] sm:$0xf]
      %v2064 = vld [vmem:[%s5 + $0x1c] sm:$0xf]
      %v2065 = vld [vmem:[%s5 + $0x20] sm:$0xf]
      %v2066 = vld [vmem:[%s5 + $0x24] sm:$0xf]
      %v2067 = vld [vmem:[%s5 + $0x28] sm:$0xf]
      %v2068 = vld [vmem:[%s5 + $0x2c] sm:$0xf]
      %v2069 = vld [vmem:[%s5 + $0x30] sm:$0xf]
      %v2070 = vld [vmem:[%s5 + $0x34] sm:$0xf]
      %v2071 = vld [vmem:[%s5 + $0x38] sm:$0xf]
      %v2072 = vld [vmem:[%s5 + $0x3c] sm:$0xf]
      %v2073 = vld [vmem:[%s6] sm:$0x1]
      %v2075 = vlaneseq
      %v2076 = vshrl.u32 %v2075, 7
      %v2077 = vsub.s32 0, %v2076
      %v2078 = vrot.slane %v2073, %v2077
      %v2091 = vunpack.c.l.b16 %v2046
      %v2092 = vunpack.c.l.b16 %v2047
      %v2093 = vunpack.c.l.b16 %v2048
      %v2094 = vunpack.c.l.b16 %v2049
      %v2095 = vunpack.c.l.b16 %v2050
      %v2096 = vunpack.c.l.b16 %v2051
      %v2097 = vunpack.c.l.b16 %v2052
      %v2098 = vunpack.c.l.b16 %v2053
      %v2099 = vunpack.c.l.b16 %v2054
      %v2100 = vunpack.c.l.b16 %v2055
      %v2101 = vunpack.c.l.b16 %v2056
      %v2102 = vpack.c.b16 %v2092, %v2091
      %v2103 = vpack.c.b16 %v2094, %v2093
      %v2104 = vpack.c.b16 %v2096, %v2095
      %v2105 = vpack.c.b16 %v2098, %v2097
      %v2106 = vpack.c.b16 %v2100, %v2099
      %v2107 = vpack.c.b16 %v2101, %v2101
      %v2108 = vrot.slane %v2102, 2
      %v2109 = vrot.slane %v2103, 2
      %v2110 = vsel %vm389, %v2108, %v2109
      %v2111 = vrot.slane %v2104, 2
      %v2112 = vsel %vm389, %v2109, %v2111
      %v2113 = vrot.slane %v2105, 2
      %v2114 = vsel %vm389, %v2111, %v2113
      %v2115 = vrot.slane %v2106, 2
      %v2116 = vsel %vm389, %v2113, %v2115
      %v2117 = vrot.slane %v2107, 2
      %v2118 = vsel %vm389, %v2115, %v2117
      %v2140 = vunpack.c.l.b16 %v2057
      %v2141 = vunpack.c.l.b16 %v2058
      %v2142 = vunpack.c.l.b16 %v2059
      %v2143 = vunpack.c.l.b16 %v2060
      %v2144 = vunpack.c.l.b16 %v2061
      %v2145 = vunpack.c.l.b16 %v2062
      %v2146 = vunpack.c.l.b16 %v2063
      %v2147 = vunpack.c.l.b16 %v2064
      %v2148 = vunpack.c.l.b16 %v2065
      %v2149 = vunpack.c.l.b16 %v2066
      %v2150 = vunpack.c.l.b16 %v2067
      %v2151 = vunpack.c.l.b16 %v2068
      %v2152 = vunpack.c.l.b16 %v2069
      %v2153 = vunpack.c.l.b16 %v2070
      %v2154 = vunpack.c.l.b16 %v2071
      %v2155 = vunpack.c.l.b16 %v2072
      %v2156 = vpack.c.b16 %v2141, %v2140
      %v2157 = vpack.c.b16 %v2143, %v2142
      %v2158 = vpack.c.b16 %v2145, %v2144
      %v2159 = vpack.c.b16 %v2147, %v2146
      %v2160 = vpack.c.b16 %v2149, %v2148
      %v2161 = vpack.c.b16 %v2151, %v2150
      %v2162 = vpack.c.b16 %v2153, %v2152
      %v2163 = vpack.c.b16 %v2155, %v2154
      %2172 = vmatprep.subr.bf16.mxu0 0
      %2173 = vmatpush1.bf16.msra.mxu0 %v2156
      %2174 = vmatprep.subr.bf16.mxu0 0
      %2175 = vmatpush1.bf16.msra.mxu0 %v2157
      %2176 = vmatprep.subr.bf16.mxu0 0
      %2177 = vmatpush1.bf16.msra.mxu0 %v2158
      %2178 = vmatprep.subr.bf16.mxu0 0
      %2179 = vmatpush1.bf16.msra.mxu0 %v2159
      %2180 = vmatprep.subr.bf16.mxu0 0
      %2181 = vmatpush1.bf16.msra.mxu0 %v2160
      %2182 = vmatprep.subr.bf16.mxu0 0
      %2183 = vmatpush1.bf16.msra.mxu0 %v2161
      %2184 = vmatprep.subr.bf16.mxu0 0
      %2185 = vmatpush1.bf16.msra.mxu0 %v2162
      %2186 = vmatprep.subr.bf16.mxu0 0
      %2187 = vmatpush1.bf16.msra.mxu0 %v2163
      %2188 = vmatprep.subr.bf16.mxu0 0
      %2189 = vmatpush1.bf16.msra.mxu0 0
      %2190 = vmatprep.subr.bf16.mxu0 0
      %2191 = vmatpush1.bf16.msra.mxu0 0
      %2192 = vmatprep.subr.bf16.mxu0 0
      %2193 = vmatpush1.bf16.msra.mxu0 0
      %2194 = vmatprep.subr.bf16.mxu0 0
      %2195 = vmatpush1.bf16.msra.mxu0 0
      %2196 = vmatprep.subr.bf16.mxu0 0
      %2197 = vmatpush1.bf16.msra.mxu0 0
      %2198 = vmatprep.subr.bf16.mxu0 0
      %2199 = vmatpush1.bf16.msra.mxu0 0
      %2200 = vmatprep.subr.bf16.mxu0 0
      %2201 = vmatpush1.bf16.msra.mxu0 0
      %2202 = vmatprep.subr.bf16.mxu0 0
      %2203 = vmatpush1.bf16.msra.mxu0 0
      %2204 = vmatprep.mubr.bf16.mxu0 0
      %2205 = vmatmul.mubr.bf16.gmra.mrb[0].mxu0 %v2110
      %v2206 = vpop.f32.mrb[0].mxu0
      %v2207 = vadd.f32 %v2078, %v2206
      %v2208 = vpop.f32.mrb[0].mxu0
      %v2209 = vpop.f32.mrb[0].mxu0
      %v2210 = vadd.f32 %v2078, %v2209
      %v2211 = vpop.f32.mrb[0].mxu0
      %2212 = vmatprep.mubr.bf16.mxu0 0
      %2213 = vmatmul.mubr.bf16.gmra.mrb[0].mxu0 %v2112
      %v2214 = vpop.f32.mrb[0].mxu0
      %v2215 = vadd.f32 %v2078, %v2214
      %v2216 = vpop.f32.mrb[0].mxu0
      %v2217 = vpop.f32.mrb[0].mxu0
      %v2218 = vadd.f32 %v2078, %v2217
      %v2219 = vpop.f32.mrb[0].mxu0
      %2220 = vmatprep.mubr.bf16.mxu0 0
      %2221 = vmatmul.mubr.bf16.gmra.mrb[0].mxu0 %v2114
      %v2222 = vpop.f32.mrb[0].mxu0
      %v2223 = vadd.f32 %v2078, %v2222
      %v2224 = vpop.f32.mrb[0].mxu0
      %v2225 = vpop.f32.mrb[0].mxu0
      %v2226 = vadd.f32 %v2078, %v2225
      %v2227 = vpop.f32.mrb[0].mxu0
      %2228 = vmatprep.mubr.bf16.mxu0 0
      %2229 = vmatmul.mubr.bf16.gmra.mrb[0].mxu0 %v2116
      %v2230 = vpop.f32.mrb[0].mxu0
      %v2231 = vadd.f32 %v2078, %v2230
      %v2232 = vpop.f32.mrb[0].mxu0
      %v2233 = vpop.f32.mrb[0].mxu0
      %v2234 = vadd.f32 %v2078, %v2233
      %v2235 = vpop.f32.mrb[0].mxu0
      %2236 = vmatprep.mubr.bf16.mxu0 0
      %2237 = vmatmul.mubr.bf16.gmra.mrb[0].mxu0 %v2118
      %v2238 = vpop.f32.mrb[0].mxu0
      %v2239 = vadd.f32 %v2078, %v2238
      %v2240 = vpop.f32.mrb[0].mxu0
      %v2241 = vpop.f32.mrb[0].mxu0
      %v2242 = vadd.f32 %v2078, %v2241
      %v2243 = vpop.f32.mrb[0].mxu0
      %2244 = vdwg.mxu0
      %v2245 = vld [vmem:[#allocation2] sm:$0xf]
      %v2246 = vld [vmem:[#allocation2 + $0x4] sm:$0xf]
      %v2247 = vld [vmem:[#allocation2 + $0x8] sm:$0xf]
      %v2248 = vld [vmem:[#allocation2 + $0xc] sm:$0xf]
      %v2249 = vld [vmem:[#allocation2 + $0x10] sm:$0xf]
      %v2250 = vld [vmem:[#allocation2 + $0x14] sm:$0xf]
      %v2251 = vld [vmem:[#allocation2 + $0x18] sm:$0xf]
      %v2252 = vld [vmem:[#allocation2 + $0x1c] sm:$0xf]
      %v2253 = vld [vmem:[#allocation2 + $0x20] sm:$0xf]
      %v2254 = vld [vmem:[#allocation2 + $0x24] sm:$0xf]
      %v2255 = vld [vmem:[#allocation2 + $0x28] sm:$0x1]
      %v2256 = vld [vmem:[#allocation2] sm:$0xe]
      %v2257 = vld [vmem:[#allocation2 + $0x4] sm:$0xe]
      %v2258 = vld [vmem:[#allocation2 + $0x28] sm:$0xf]
      %v2259 = vld [vmem:[#allocation2 + $0x2c] sm:$0x1]
      %v2260 = vld [vmem:[#allocation2 + $0x2c] sm:$0x3]
      %v2261 = vld [vmem:[#allocation2 + $0x4] sm:$0xc]
      %v2262 = vld [vmem:[#allocation2 + $0x8] sm:$0xc]
      %v2263 = vld [vmem:[#allocation2 + $0x2c] sm:$0xf]
      %v2264 = vld [vmem:[#allocation2 + $0x30] sm:$0x3]
      %v2265 = vld [vmem:[#allocation2 + $0x30] sm:$0x7]
      %v2266 = vld [vmem:[#allocation2 + $0x8] sm:$0x8]
      %v2277 = vunpack.c.l.b16 %v2245
      %v2278 = vunpack.c.l.b16 %v2246
      %v2279 = vunpack.c.l.b16 %v2247
      %v2280 = vunpack.c.l.b16 %v2248
      %v2281 = vunpack.c.l.b16 %v2249
      %v2282 = vunpack.c.l.b16 %v2250
      %v2283 = vunpack.c.l.b16 %v2251
      %v2284 = vunpack.c.l.b16 %v2252
      %v2285 = vunpack.c.l.b16 %v2253
      %v2286 = vunpack.c.l.b16 %v2254
      %v2287 = vpack.c.b16 %v2278, %v2277
      %v2288 = vpack.c.b16 %v2280, %v2279
      %v2289 = vpack.c.b16 %v2282, %v2281
      %v2290 = vpack.c.b16 %v2284, %v2283
      %v2291 = vpack.c.b16 %v2286, %v2285
      %v2298 = vunpack.c.l.b16 %v2255
      %v2299 = vpack.c.b16 %v2298, %v2298
      %v2301 = vshrl.u32 %v2287, 16
      %v2303 = vshll.u32 %v2287, 16
      %v2305 = vrot.slane %v2303, 1
      %v2306 = vor.u32 %v2301, %v2305
      %v2308 = vshll.u32 %v2288, 16
      %v2310 = vrot.slane %v2308, 1
      %v2311 = vsel %vm409, %v2306, %v2310
      %v2312 = vshrl.u32 %v2288, 16
      %v2314 = vor.u32 %v2312, %v2310
      %v2316 = vshll.u32 %v2289, 16
      %v2318 = vrot.slane %v2316, 1
      %v2319 = vsel %vm409, %v2314, %v2318
      %v2320 = vshrl.u32 %v2289, 16
      %v2322 = vor.u32 %v2320, %v2318
      %v2324 = vshll.u32 %v2290, 16
      %v2326 = vrot.slane %v2324, 1
      %v2327 = vsel %vm409, %v2322, %v2326
      %v2328 = vshrl.u32 %v2290, 16
      %v2330 = vor.u32 %v2328, %v2326
      %v2332 = vshll.u32 %v2291, 16
      %v2334 = vrot.slane %v2332, 1
      %v2335 = vsel %vm409, %v2330, %v2334
      %v2336 = vshrl.u32 %v2291, 16
      %v2338 = vor.u32 %v2336, %v2334
      %v2340 = vshll.u32 %v2299, 16
      %v2342 = vrot.slane %v2340, 1
      %v2343 = vsel %vm409, %v2338, %v2342
      %v2350 = vunpack.c.l.b16 %v2256
      %v2351 = vpack.c.b16 %v2278, %v2350
      %v2352 = vrot.slane %v2351, 1
      %v2353 = vrot.slane %v2288, 1
      %v2354 = vsel %vm597, %v2352, %v2353
      %v2355 = vrot.slane %v2289, 1
      %v2356 = vsel %vm597, %v2353, %v2355
      %v2357 = vrot.slane %v2290, 1
      %v2358 = vsel %vm597, %v2355, %v2357
      %v2359 = vrot.slane %v2291, 1
      %v2360 = vsel %vm597, %v2357, %v2359
      %v2361 = vrot.slane %v2299, 1
      %v2362 = vsel %vm597, %v2359, %v2361
      %v2371 = vunpack.c.l.b16 %v2257
      %v2372 = vunpack.c.l.b16 %v2258
      %v2373 = vunpack.c.l.b16 %v2259
      %v2374 = vpack.c.b16 %v2279, %v2371
      %v2375 = vpack.c.b16 %v2281, %v2280
      %v2376 = vpack.c.b16 %v2283, %v2282
      %v2377 = vpack.c.b16 %v2285, %v2284
      %v2378 = vpack.c.b16 %v2372, %v2286
      %v2379 = vpack.c.b16 %v2373, %v2373
      %v2380 = vrot.slane %v2374, 1
      %v2381 = vrot.slane %v2375, 1
      %v2382 = vsel %vm597, %v2380, %v2381
      %v2383 = vrot.slane %v2376, 1
      %v2384 = vsel %vm597, %v2381, %v2383
      %v2385 = vrot.slane %v2377, 1
      %v2386 = vsel %vm597, %v2383, %v2385
      %v2387 = vrot.slane %v2378, 1
      %v2388 = vsel %vm597, %v2385, %v2387
      %v2389 = vrot.slane %v2379, 1
      %v2390 = vsel %vm597, %v2387, %v2389
      %v2397 = vunpack.c.l.b16 %v2260
      %v2398 = vpack.c.b16 %v2397, %v2397
      %v2400 = vshrl.u32 %v2374, 16
      %v2402 = vrot.slane %v2400, 1
      %v2403 = vshll.u32 %v2374, 16
      %v2405 = vrot.slane %v2403, 2
      %v2406 = vor.u32 %v2402, %v2405
      %v2408 = vshrl.u32 %v2375, 16
      %v2410 = vrot.slane %v2408, 1
      %v2411 = vshll.u32 %v2375, 16
      %v2413 = vrot.slane %v2411, 2
      %v2414 = vor.u32 %v2410, %v2413
      %v2415 = vsel %vm646, %v2406, %v2414
      %v2417 = vshrl.u32 %v2376, 16
      %v2419 = vrot.slane %v2417, 1
      %v2420 = vshll.u32 %v2376, 16
      %v2422 = vrot.slane %v2420, 2
      %v2423 = vor.u32 %v2419, %v2422
      %v2424 = vsel %vm646, %v2414, %v2423
      %v2426 = vshrl.u32 %v2377, 16
      %v2428 = vrot.slane %v2426, 1
      %v2429 = vshll.u32 %v2377, 16
      %v2431 = vrot.slane %v2429, 2
      %v2432 = vor.u32 %v2428, %v2431
      %v2433 = vsel %vm646, %v2423, %v2432
      %v2435 = vshrl.u32 %v2378, 16
      %v2437 = vrot.slane %v2435, 1
      %v2438 = vshll.u32 %v2378, 16
      %v2440 = vrot.slane %v2438, 2
      %v2441 = vor.u32 %v2437, %v2440
      %v2442 = vsel %vm646, %v2432, %v2441
      %v2444 = vshrl.u32 %v2398, 16
      %v2446 = vrot.slane %v2444, 1
      %v2447 = vshll.u32 %v2398, 16
      %v2449 = vrot.slane %v2447, 2
      %v2450 = vor.u32 %v2446, %v2449
      %v2451 = vsel %vm646, %v2441, %v2450
      %v2458 = vunpack.c.l.b16 %v2261
      %v2459 = vpack.c.b16 %v2279, %v2458
      %v2460 = vrot.slane %v2459, 2
      %v2461 = vrot.slane %v2375, 2
      %v2462 = vsel %vm389, %v2460, %v2461
      %v2463 = vrot.slane %v2376, 2
      %v2464 = vsel %vm389, %v2461, %v2463
      %v2465 = vrot.slane %v2377, 2
      %v2466 = vsel %vm389, %v2463, %v2465
      %v2467 = vrot.slane %v2378, 2
      %v2468 = vsel %vm389, %v2465, %v2467
      %v2469 = vrot.slane %v2398, 2
      %v2470 = vsel %vm389, %v2467, %v2469
      %v2479 = vunpack.c.l.b16 %v2262
      %v2480 = vunpack.c.l.b16 %v2263
      %v2481 = vunpack.c.l.b16 %v2264
      %v2482 = vpack.c.b16 %v2280, %v2479
      %v2483 = vpack.c.b16 %v2480, %v2372
      %v2484 = vpack.c.b16 %v2481, %v2481
      %v2485 = vrot.slane %v2482, 2
      %v2486 = vrot.slane %v2289, 2
      %v2487 = vsel %vm389, %v2485, %v2486
      %v2488 = vrot.slane %v2290, 2
      %v2489 = vsel %vm389, %v2486, %v2488
      %v2490 = vrot.slane %v2291, 2
      %v2491 = vsel %vm389, %v2488, %v2490
      %v2492 = vrot.slane %v2483, 2
      %v2493 = vsel %vm389, %v2490, %v2492
      %v2494 = vrot.slane %v2484, 2
      %v2495 = vsel %vm389, %v2492, %v2494
      %v2502 = vunpack.c.l.b16 %v2265
      %v2503 = vpack.c.b16 %v2502, %v2502
      %vm2504 = vsmask.f32 5376
      %v2506 = vshrl.u32 %v2482, 16
      %v2508 = vrot.slane %v2506, 2
      %v2509 = vshll.u32 %v2482, 16
      %v2511 = vrot.slane %v2509, 3
      %v2512 = vor.u32 %v2508, %v2511
      %v2513 = vrot.slane %v2320, 2
      %v2514 = vrot.slane %v2316, 3
      %v2515 = vor.u32 %v2513, %v2514
      %v2516 = vsel %vm2504, %v2512, %v2515
      %v2517 = vrot.slane %v2328, 2
      %v2518 = vrot.slane %v2324, 3
      %v2519 = vor.u32 %v2517, %v2518
      %v2520 = vsel %vm2504, %v2515, %v2519
      %v2521 = vrot.slane %v2336, 2
      %v2522 = vrot.slane %v2332, 3
      %v2523 = vor.u32 %v2521, %v2522
      %v2524 = vsel %vm2504, %v2519, %v2523
      %v2526 = vshrl.u32 %v2483, 16
      %v2528 = vrot.slane %v2526, 2
      %v2529 = vshll.u32 %v2483, 16
      %v2531 = vrot.slane %v2529, 3
      %v2532 = vor.u32 %v2528, %v2531
      %v2533 = vsel %vm2504, %v2523, %v2532
      %v2535 = vshrl.u32 %v2503, 16
      %v2537 = vrot.slane %v2535, 2
      %v2538 = vshll.u32 %v2503, 16
      %v2540 = vrot.slane %v2538, 3
      %v2541 = vor.u32 %v2537, %v2540
      %v2542 = vsel %vm2504, %v2532, %v2541
      %v2549 = vunpack.c.l.b16 %v2266
      %v2550 = vpack.c.b16 %v2280, %v2549
      %v2551 = vrot.slane %v2550, 3
      %v2552 = vrot.slane %v2289, 3
      %v2553 = vsel %vm626, %v2551, %v2552
      %v2554 = vrot.slane %v2290, 3
      %v2555 = vsel %vm626, %v2552, %v2554
      %v2556 = vrot.slane %v2291, 3
      %v2557 = vsel %vm626, %v2554, %v2556
      %v2558 = vrot.slane %v2483, 3
      %v2559 = vsel %vm626, %v2556, %v2558
      %v2560 = vrot.slane %v2503, 3
      %v2561 = vsel %vm626, %v2558, %v2560
      %v2567 = vld [vmem:[%s3] sm:$0xf]
      %v2568 = vld [vmem:[%s3 + $0x4] sm:$0xf]
      %v2569 = vld [vmem:[%s3 + $0x8] sm:$0xf]
      %v2570 = vld [vmem:[%s3 + $0xc] sm:$0xf]
      %v2571 = vld [vmem:[%s3 + $0x10] sm:$0xf]
      %v2572 = vld [vmem:[%s3 + $0x14] sm:$0xf]
      %v2573 = vld [vmem:[%s3 + $0x18] sm:$0xf]
      %v2574 = vld [vmem:[%s3 + $0x1c] sm:$0xf]
      %v2575 = vld [vmem:[%s3 + $0x20] sm:$0xf]
      %v2576 = vld [vmem:[%s3 + $0x24] sm:$0xf]
      %v2577 = vld [vmem:[%s3 + $0x28] sm:$0xf]
      %v2578 = vld [vmem:[%s3 + $0x2c] sm:$0xf]
      %v2579 = vld [vmem:[%s3 + $0x30] sm:$0xf]
      %v2580 = vld [vmem:[%s3 + $0x34] sm:$0xf]
      %v2581 = vld [vmem:[%s3 + $0x38] sm:$0xf]
      %v2582 = vld [vmem:[%s3 + $0x3c] sm:$0xf]
      %v2583 = vld [vmem:[%s3 + $0x40] sm:$0xf]
      %v2584 = vld [vmem:[%s3 + $0x44] sm:$0xf]
      %v2585 = vld [vmem:[%s3 + $0x48] sm:$0xf]
      %v2586 = vld [vmem:[%s3 + $0x4c] sm:$0xf]
      %v2587 = vld [vmem:[%s3 + $0x50] sm:$0xf]
      %v2588 = vld [vmem:[%s3 + $0x54] sm:$0xf]
      %v2589 = vld [vmem:[%s3 + $0x58] sm:$0xf]
      %v2590 = vld [vmem:[%s3 + $0x5c] sm:$0xf]
      %v2591 = vld [vmem:[%s3 + $0x60] sm:$0xf]
      %v2592 = vld [vmem:[%s3 + $0x64] sm:$0xf]
      %v2593 = vld [vmem:[%s3 + $0x68] sm:$0xf]
      %v2594 = vld [vmem:[%s3 + $0x6c] sm:$0xf]
      %v2595 = vld [vmem:[%s3 + $0x70] sm:$0xf]
      %v2596 = vld [vmem:[%s3 + $0x74] sm:$0xf]
      %v2597 = vld [vmem:[%s3 + $0x78] sm:$0xf]
      %v2598 = vld [vmem:[%s3 + $0x7c] sm:$0xf]
      %v2599 = vld [vmem:[%s3 + $0x80] sm:$0xf]
      %v2600 = vld [vmem:[%s3 + $0x84] sm:$0xf]
      %v2601 = vld [vmem:[%s3 + $0x88] sm:$0xf]
      %v2602 = vld [vmem:[%s3 + $0x8c] sm:$0xf]
      %v2603 = vld [vmem:[%s3 + $0x90] sm:$0xf]
      %v2604 = vld [vmem:[%s3 + $0x94] sm:$0xf]
      %v2605 = vld [vmem:[%s3 + $0x98] sm:$0xf]
      %v2606 = vld [vmem:[%s3 + $0x9c] sm:$0xf]
      %v2607 = vld [vmem:[%s3 + $0xa0] sm:$0xf]
      %v2608 = vld [vmem:[%s3 + $0xa4] sm:$0xf]
      %v2609 = vld [vmem:[%s3 + $0xa8] sm:$0xf]
      %v2610 = vld [vmem:[%s3 + $0xac] sm:$0xf]
      %v2611 = vld [vmem:[%s3 + $0xb0] sm:$0xf]
      %v2612 = vld [vmem:[%s3 + $0xb4] sm:$0xf]
      %v2613 = vld [vmem:[%s3 + $0xb8] sm:$0xf]
      %v2614 = vld [vmem:[%s3 + $0xbc] sm:$0xf]
      %v2615 = vld [vmem:[%s3 + $0xc0] sm:$0xf]
      %v2616 = vld [vmem:[%s3 + $0xc4] sm:$0xf]
      %v2617 = vld [vmem:[%s3 + $0xc8] sm:$0xf]
      %v2618 = vld [vmem:[%s3 + $0xcc] sm:$0xf]
      %v2619 = vld [vmem:[%s3 + $0xd0] sm:$0xf]
      %v2620 = vld [vmem:[%s3 + $0xd4] sm:$0xf]
      %v2621 = vld [vmem:[%s3 + $0xd8] sm:$0xf]
      %v2622 = vld [vmem:[%s3 + $0xdc] sm:$0xf]
      %v2623 = vld [vmem:[%s3 + $0xe0] sm:$0xf]
      %v2624 = vld [vmem:[%s3 + $0xe4] sm:$0xf]
      %v2625 = vld [vmem:[%s3 + $0xe8] sm:$0xf]
      %v2626 = vld [vmem:[%s3 + $0xec] sm:$0xf]
      %v2627 = vld [vmem:[%s3 + $0xf0] sm:$0xf]
      %v2628 = vld [vmem:[%s3 + $0xf4] sm:$0xf]
      %v2629 = vld [vmem:[%s3 + $0xf8] sm:$0xf]
      %v2630 = vld [vmem:[%s3 + $0xfc] sm:$0xf]
      %v2631 = vld [vmem:[%s3 + $0x100] sm:$0xf]
      %v2632 = vld [vmem:[%s3 + $0x104] sm:$0xf]
      %v2633 = vld [vmem:[%s3 + $0x108] sm:$0xf]
      %v2634 = vld [vmem:[%s3 + $0x10c] sm:$0xf]
      %v2635 = vld [vmem:[%s3 + $0x110] sm:$0xf]
      %v2636 = vld [vmem:[%s3 + $0x114] sm:$0xf]
      %v2637 = vld [vmem:[%s3 + $0x118] sm:$0xf]
      %v2638 = vld [vmem:[%s3 + $0x11c] sm:$0xf]
      %v2639 = vld [vmem:[%s3 + $0x120] sm:$0xf]
      %v2640 = vld [vmem:[%s3 + $0x124] sm:$0xf]
      %v2641 = vld [vmem:[%s3 + $0x128] sm:$0xf]
      %v2642 = vld [vmem:[%s3 + $0x12c] sm:$0xf]
      %v2643 = vld [vmem:[%s3 + $0x130] sm:$0xf]
      %v2644 = vld [vmem:[%s3 + $0x134] sm:$0xf]
      %v2645 = vld [vmem:[%s3 + $0x138] sm:$0xf]
      %v2646 = vld [vmem:[%s3 + $0x13c] sm:$0xf]
      %v2647 = vld [vmem:[%s3 + $0x140] sm:$0xf]
      %v2648 = vld [vmem:[%s3 + $0x144] sm:$0xf]
      %v2649 = vld [vmem:[%s3 + $0x148] sm:$0xf]
      %v2650 = vld [vmem:[%s3 + $0x14c] sm:$0xf]
      %v2651 = vld [vmem:[%s3 + $0x150] sm:$0xf]
      %v2652 = vld [vmem:[%s3 + $0x154] sm:$0xf]
      %v2653 = vld [vmem:[%s3 + $0x158] sm:$0xf]
      %v2654 = vld [vmem:[%s3 + $0x15c] sm:$0xf]
      %v2655 = vld [vmem:[%s3 + $0x160] sm:$0xf]
      %v2656 = vld [vmem:[%s3 + $0x164] sm:$0xf]
      %v2657 = vld [vmem:[%s3 + $0x168] sm:$0xf]
      %v2658 = vld [vmem:[%s3 + $0x16c] sm:$0xf]
      %v2659 = vld [vmem:[%s3 + $0x170] sm:$0xf]
      %v2660 = vld [vmem:[%s3 + $0x174] sm:$0xf]
      %v2661 = vld [vmem:[%s3 + $0x178] sm:$0xf]
      %v2662 = vld [vmem:[%s3 + $0x17c] sm:$0xf]
      %v2663 = vld [vmem:[%s3 + $0x180] sm:$0xf]
      %v2664 = vld [vmem:[%s3 + $0x184] sm:$0xf]
      %v2665 = vld [vmem:[%s3 + $0x188] sm:$0xf]
      %v2666 = vld [vmem:[%s3 + $0x18c] sm:$0xf]
      %v2667 = vld [vmem:[%s3 + $0x190] sm:$0xf]
      %v2668 = vld [vmem:[%s3 + $0x194] sm:$0xf]
      %v2669 = vld [vmem:[%s3 + $0x198] sm:$0xf]
      %v2670 = vld [vmem:[%s3 + $0x19c] sm:$0xf]
      %v2671 = vld [vmem:[%s3 + $0x1a0] sm:$0xf]
      %v2672 = vld [vmem:[%s3 + $0x1a4] sm:$0xf]
      %v2673 = vld [vmem:[%s3 + $0x1a8] sm:$0xf]
      %v2674 = vld [vmem:[%s3 + $0x1ac] sm:$0xf]
      %v2675 = vld [vmem:[%s3 + $0x1b0] sm:$0xf]
      %v2676 = vld [vmem:[%s3 + $0x1b4] sm:$0xf]
      %v2677 = vld [vmem:[%s3 + $0x1b8] sm:$0xf]
      %v2678 = vld [vmem:[%s3 + $0x1bc] sm:$0xf]
      %v2679 = vld [vmem:[%s3 + $0x1c0] sm:$0xf]
      %v2680 = vld [vmem:[%s3 + $0x1c4] sm:$0xf]
      %v2681 = vld [vmem:[%s3 + $0x1c8] sm:$0xf]
      %v2682 = vld [vmem:[%s3 + $0x1cc] sm:$0xf]
      %v2683 = vld [vmem:[%s3 + $0x1d0] sm:$0xf]
      %v2684 = vld [vmem:[%s3 + $0x1d4] sm:$0xf]
      %v2685 = vld [vmem:[%s3 + $0x1d8] sm:$0xf]
      %v2686 = vld [vmem:[%s3 + $0x1dc] sm:$0xf]
      %v2687 = vld [vmem:[%s3 + $0x1e0] sm:$0xf]
      %v2688 = vld [vmem:[%s3 + $0x1e4] sm:$0xf]
      %v2689 = vld [vmem:[%s3 + $0x1e8] sm:$0xf]
      %v2690 = vld [vmem:[%s3 + $0x1ec] sm:$0xf]
      %v2691 = vld [vmem:[%s3 + $0x1f0] sm:$0xf]
      %v2692 = vld [vmem:[%s3 + $0x1f4] sm:$0xf]
      %v2693 = vld [vmem:[%s3 + $0x1f8] sm:$0xf]
      %v2694 = vld [vmem:[%s3 + $0x1fc] sm:$0xf]
      %v2695 = vld [vmem:[%s3 + $0x200] sm:$0xf]
      %v2696 = vld [vmem:[%s3 + $0x204] sm:$0xf]
      %v2697 = vld [vmem:[%s3 + $0x208] sm:$0xf]
      %v2698 = vld [vmem:[%s3 + $0x20c] sm:$0xf]
      %v2699 = vld [vmem:[%s3 + $0x210] sm:$0xf]
      %v2700 = vld [vmem:[%s3 + $0x214] sm:$0xf]
      %v2701 = vld [vmem:[%s3 + $0x218] sm:$0xf]
      %v2702 = vld [vmem:[%s3 + $0x21c] sm:$0xf]
      %v2703 = vld [vmem:[%s3 + $0x220] sm:$0xf]
      %v2704 = vld [vmem:[%s3 + $0x224] sm:$0xf]
      %v2705 = vld [vmem:[%s3 + $0x228] sm:$0xf]
      %v2706 = vld [vmem:[%s3 + $0x22c] sm:$0xf]
      %v2707 = vld [vmem:[%s3 + $0x230] sm:$0xf]
      %v2708 = vld [vmem:[%s3 + $0x234] sm:$0xf]
      %v2709 = vld [vmem:[%s3 + $0x238] sm:$0xf]
      %v2710 = vld [vmem:[%s3 + $0x23c] sm:$0xf]
      %v2711 = vld [vmem:[%s4] sm:$0x1]
      %v2713 = vlaneseq
      %v2714 = vshrl.u32 %v2713, 7
      %v2715 = vsub.s32 0, %v2714
      %v2716 = vrot.slane %v2711, %v2715
      %v2862 = vunpack.c.l.b16 %v2567
      %v2863 = vunpack.c.l.b16 %v2568
      %v2864 = vunpack.c.l.b16 %v2569
      %v2865 = vunpack.c.l.b16 %v2570
      %v2866 = vunpack.c.l.b16 %v2571
      %v2867 = vunpack.c.l.b16 %v2572
      %v2868 = vunpack.c.l.b16 %v2573
      %v2869 = vunpack.c.l.b16 %v2574
      %v2870 = vunpack.c.l.b16 %v2575
      %v2871 = vunpack.c.l.b16 %v2576
      %v2872 = vunpack.c.l.b16 %v2577
      %v2873 = vunpack.c.l.b16 %v2578
      %v2874 = vunpack.c.l.b16 %v2579
      %v2875 = vunpack.c.l.b16 %v2580
      %v2876 = vunpack.c.l.b16 %v2581
      %v2877 = vunpack.c.l.b16 %v2582
      %v2878 = vunpack.c.l.b16 %v2583
      %v2879 = vunpack.c.l.b16 %v2584
      %v2880 = vunpack.c.l.b16 %v2585
      %v2881 = vunpack.c.l.b16 %v2586
      %v2882 = vunpack.c.l.b16 %v2587
      %v2883 = vunpack.c.l.b16 %v2588
      %v2884 = vunpack.c.l.b16 %v2589
      %v2885 = vunpack.c.l.b16 %v2590
      %v2886 = vunpack.c.l.b16 %v2591
      %v2887 = vunpack.c.l.b16 %v2592
      %v2888 = vunpack.c.l.b16 %v2593
      %v2889 = vunpack.c.l.b16 %v2594
      %v2890 = vunpack.c.l.b16 %v2595
      %v2891 = vunpack.c.l.b16 %v2596
      %v2892 = vunpack.c.l.b16 %v2597
      %v2893 = vunpack.c.l.b16 %v2598
      %v2894 = vunpack.c.l.b16 %v2599
      %v2895 = vunpack.c.l.b16 %v2600
      %v2896 = vunpack.c.l.b16 %v2601
      %v2897 = vunpack.c.l.b16 %v2602
      %v2898 = vunpack.c.l.b16 %v2603
      %v2899 = vunpack.c.l.b16 %v2604
      %v2900 = vunpack.c.l.b16 %v2605
      %v2901 = vunpack.c.l.b16 %v2606
      %v2902 = vunpack.c.l.b16 %v2607
      %v2903 = vunpack.c.l.b16 %v2608
      %v2904 = vunpack.c.l.b16 %v2609
      %v2905 = vunpack.c.l.b16 %v2610
      %v2906 = vunpack.c.l.b16 %v2611
      %v2907 = vunpack.c.l.b16 %v2612
      %v2908 = vunpack.c.l.b16 %v2613
      %v2909 = vunpack.c.l.b16 %v2614
      %v2910 = vunpack.c.l.b16 %v2615
      %v2911 = vunpack.c.l.b16 %v2616
      %v2912 = vunpack.c.l.b16 %v2617
      %v2913 = vunpack.c.l.b16 %v2618
      %v2914 = vunpack.c.l.b16 %v2619
      %v2915 = vunpack.c.l.b16 %v2620
      %v2916 = vunpack.c.l.b16 %v2621
      %v2917 = vunpack.c.l.b16 %v2622
      %v2918 = vunpack.c.l.b16 %v2623
      %v2919 = vunpack.c.l.b16 %v2624
      %v2920 = vunpack.c.l.b16 %v2625
      %v2921 = vunpack.c.l.b16 %v2626
      %v2922 = vunpack.c.l.b16 %v2627
      %v2923 = vunpack.c.l.b16 %v2628
      %v2924 = vunpack.c.l.b16 %v2629
      %v2925 = vunpack.c.l.b16 %v2630
      %v2926 = vunpack.c.l.b16 %v2631
      %v2927 = vunpack.c.l.b16 %v2632
      %v2928 = vunpack.c.l.b16 %v2633
      %v2929 = vunpack.c.l.b16 %v2634
      %v2930 = vunpack.c.l.b16 %v2635
      %v2931 = vunpack.c.l.b16 %v2636
      %v2932 = vunpack.c.l.b16 %v2637
      %v2933 = vunpack.c.l.b16 %v2638
      %v2934 = vunpack.c.l.b16 %v2639
      %v2935 = vunpack.c.l.b16 %v2640
      %v2936 = vunpack.c.l.b16 %v2641
      %v2937 = vunpack.c.l.b16 %v2642
      %v2938 = vunpack.c.l.b16 %v2643
      %v2939 = vunpack.c.l.b16 %v2644
      %v2940 = vunpack.c.l.b16 %v2645
      %v2941 = vunpack.c.l.b16 %v2646
      %v2942 = vunpack.c.l.b16 %v2647
      %v2943 = vunpack.c.l.b16 %v2648
      %v2944 = vunpack.c.l.b16 %v2649
      %v2945 = vunpack.c.l.b16 %v2650
      %v2946 = vunpack.c.l.b16 %v2651
      %v2947 = vunpack.c.l.b16 %v2652
      %v2948 = vunpack.c.l.b16 %v2653
      %v2949 = vunpack.c.l.b16 %v2654
      %v2950 = vunpack.c.l.b16 %v2655
      %v2951 = vunpack.c.l.b16 %v2656
      %v2952 = vunpack.c.l.b16 %v2657
      %v2953 = vunpack.c.l.b16 %v2658
      %v2954 = vunpack.c.l.b16 %v2659
      %v2955 = vunpack.c.l.b16 %v2660
      %v2956 = vunpack.c.l.b16 %v2661
      %v2957 = vunpack.c.l.b16 %v2662
      %v2958 = vunpack.c.l.b16 %v2663
      %v2959 = vunpack.c.l.b16 %v2664
      %v2960 = vunpack.c.l.b16 %v2665
      %v2961 = vunpack.c.l.b16 %v2666
      %v2962 = vunpack.c.l.b16 %v2667
      %v2963 = vunpack.c.l.b16 %v2668
      %v2964 = vunpack.c.l.b16 %v2669
      %v2965 = vunpack.c.l.b16 %v2670
      %v2966 = vunpack.c.l.b16 %v2671
      %v2967 = vunpack.c.l.b16 %v2672
      %v2968 = vunpack.c.l.b16 %v2673
      %v2969 = vunpack.c.l.b16 %v2674
      %v2970 = vunpack.c.l.b16 %v2675
      %v2971 = vunpack.c.l.b16 %v2676
      %v2972 = vunpack.c.l.b16 %v2677
      %v2973 = vunpack.c.l.b16 %v2678
      %v2974 = vunpack.c.l.b16 %v2679
      %v2975 = vunpack.c.l.b16 %v2680
      %v2976 = vunpack.c.l.b16 %v2681
      %v2977 = vunpack.c.l.b16 %v2682
      %v2978 = vunpack.c.l.b16 %v2683
      %v2979 = vunpack.c.l.b16 %v2684
      %v2980 = vunpack.c.l.b16 %v2685
      %v2981 = vunpack.c.l.b16 %v2686
      %v2982 = vunpack.c.l.b16 %v2687
      %v2983 = vunpack.c.l.b16 %v2688
      %v2984 = vunpack.c.l.b16 %v2689
      %v2985 = vunpack.c.l.b16 %v2690
      %v2986 = vunpack.c.l.b16 %v2691
      %v2987 = vunpack.c.l.b16 %v2692
      %v2988 = vunpack.c.l.b16 %v2693
      %v2989 = vunpack.c.l.b16 %v2694
      %v2990 = vunpack.c.l.b16 %v2695
      %v2991 = vunpack.c.l.b16 %v2696
      %v2992 = vunpack.c.l.b16 %v2697
      %v2993 = vunpack.c.l.b16 %v2698
      %v2994 = vunpack.c.l.b16 %v2699
      %v2995 = vunpack.c.l.b16 %v2700
      %v2996 = vunpack.c.l.b16 %v2701
      %v2997 = vunpack.c.l.b16 %v2702
      %v2998 = vunpack.c.l.b16 %v2703
      %v2999 = vunpack.c.l.b16 %v2704
      %v3000 = vunpack.c.l.b16 %v2705
      %v3001 = vunpack.c.l.b16 %v2706
      %v3002 = vunpack.c.l.b16 %v2707
      %v3003 = vunpack.c.l.b16 %v2708
      %v3004 = vunpack.c.l.b16 %v2709
      %v3005 = vunpack.c.l.b16 %v2710
      %v3006 = vpack.c.b16 %v2863, %v2862
      %v3007 = vpack.c.b16 %v2865, %v2864
      %v3008 = vpack.c.b16 %v2867, %v2866
      %v3009 = vpack.c.b16 %v2869, %v2868
      %v3010 = vpack.c.b16 %v2871, %v2870
      %v3011 = vpack.c.b16 %v2873, %v2872
      %v3012 = vpack.c.b16 %v2875, %v2874
      %v3013 = vpack.c.b16 %v2877, %v2876
      %v3014 = vpack.c.b16 %v2879, %v2878
      %v3015 = vpack.c.b16 %v2881, %v2880
      %v3016 = vpack.c.b16 %v2883, %v2882
      %v3017 = vpack.c.b16 %v2885, %v2884
      %v3018 = vpack.c.b16 %v2887, %v2886
      %v3019 = vpack.c.b16 %v2889, %v2888
      %v3020 = vpack.c.b16 %v2891, %v2890
      %v3021 = vpack.c.b16 %v2893, %v2892
      %v3022 = vpack.c.b16 %v2895, %v2894
      %v3023 = vpack.c.b16 %v2897, %v2896
      %v3024 = vpack.c.b16 %v2899, %v2898
      %v3025 = vpack.c.b16 %v2901, %v2900
      %v3026 = vpack.c.b16 %v2903, %v2902
      %v3027 = vpack.c.b16 %v2905, %v2904
      %v3028 = vpack.c.b16 %v2907, %v2906
      %v3029 = vpack.c.b16 %v2909, %v2908
      %v3030 = vpack.c.b16 %v2911, %v2910
      %v3031 = vpack.c.b16 %v2913, %v2912
      %v3032 = vpack.c.b16 %v2915, %v2914
      %v3033 = vpack.c.b16 %v2917, %v2916
      %v3034 = vpack.c.b16 %v2919, %v2918
      %v3035 = vpack.c.b16 %v2921, %v2920
      %v3036 = vpack.c.b16 %v2923, %v2922
      %v3037 = vpack.c.b16 %v2925, %v2924
      %v3038 = vpack.c.b16 %v2927, %v2926
      %v3039 = vpack.c.b16 %v2929, %v2928
      %v3040 = vpack.c.b16 %v2931, %v2930
      %v3041 = vpack.c.b16 %v2933, %v2932
      %v3042 = vpack.c.b16 %v2935, %v2934
      %v3043 = vpack.c.b16 %v2937, %v2936
      %v3044 = vpack.c.b16 %v2939, %v2938
      %v3045 = vpack.c.b16 %v2941, %v2940
      %v3046 = vpack.c.b16 %v2943, %v2942
      %v3047 = vpack.c.b16 %v2945, %v2944
      %v3048 = vpack.c.b16 %v2947, %v2946
      %v3049 = vpack.c.b16 %v2949, %v2948
      %v3050 = vpack.c.b16 %v2951, %v2950
      %v3051 = vpack.c.b16 %v2953, %v2952
      %v3052 = vpack.c.b16 %v2955, %v2954
      %v3053 = vpack.c.b16 %v2957, %v2956
      %v3054 = vpack.c.b16 %v2959, %v2958
      %v3055 = vpack.c.b16 %v2961, %v2960
      %v3056 = vpack.c.b16 %v2963, %v2962
      %v3057 = vpack.c.b16 %v2965, %v2964
      %v3058 = vpack.c.b16 %v2967, %v2966
      %v3059 = vpack.c.b16 %v2969, %v2968
      %v3060 = vpack.c.b16 %v2971, %v2970
      %v3061 = vpack.c.b16 %v2973, %v2972
      %v3062 = vpack.c.b16 %v2975, %v2974
      %v3063 = vpack.c.b16 %v2977, %v2976
      %v3064 = vpack.c.b16 %v2979, %v2978
      %v3065 = vpack.c.b16 %v2981, %v2980
      %v3066 = vpack.c.b16 %v2983, %v2982
      %v3067 = vpack.c.b16 %v2985, %v2984
      %v3068 = vpack.c.b16 %v2987, %v2986
      %v3069 = vpack.c.b16 %v2989, %v2988
      %v3070 = vpack.c.b16 %v2991, %v2990
      %v3071 = vpack.c.b16 %v2993, %v2992
      %v3072 = vpack.c.b16 %v2995, %v2994
      %v3073 = vpack.c.b16 %v2997, %v2996
      %v3074 = vpack.c.b16 %v2999, %v2998
      %v3075 = vpack.c.b16 %v3001, %v3000
      %v3076 = vpack.c.b16 %v3003, %v3002
      %v3077 = vpack.c.b16 %v3005, %v3004
      %3150 = vmatprep.subr.bf16.mxu0 0
      %3151 = vmatpush1.bf16.msra.mxu0 %v3006
      %3152 = vmatprep.subr.bf16.mxu0 0
      %3153 = vmatpush1.bf16.msra.mxu0 %v3007
      %3154 = vmatprep.subr.bf16.mxu0 0
      %3155 = vmatpush1.bf16.msra.mxu0 %v3008
      %3156 = vmatprep.subr.bf16.mxu0 0
      %3157 = vmatpush1.bf16.msra.mxu0 %v3009
      %3158 = vmatprep.subr.bf16.mxu0 0
      %3159 = vmatpush1.bf16.msra.mxu0 %v3010
      %3160 = vmatprep.subr.bf16.mxu0 0
      %3161 = vmatpush1.bf16.msra.mxu0 %v3011
      %3162 = vmatprep.subr.bf16.mxu0 0
      %3163 = vmatpush1.bf16.msra.mxu0 %v3012
      %3164 = vmatprep.subr.bf16.mxu0 0
      %3165 = vmatpush1.bf16.msra.mxu0 %v3013
      %3166 = vmatprep.subr.bf16.mxu0 0
      %3167 = vmatpush1.bf16.msra.mxu0 %v3014
      %3168 = vmatprep.subr.bf16.mxu0 0
      %3169 = vmatpush1.bf16.msra.mxu0 %v3015
      %3170 = vmatprep.subr.bf16.mxu0 0
      %3171 = vmatpush1.bf16.msra.mxu0 %v3016
      %3172 = vmatprep.subr.bf16.mxu0 0
      %3173 = vmatpush1.bf16.msra.mxu0 %v3017
      %3174 = vmatprep.subr.bf16.mxu0 0
      %3175 = vmatpush1.bf16.msra.mxu0 %v3018
      %3176 = vmatprep.subr.bf16.mxu0 0
      %3177 = vmatpush1.bf16.msra.mxu0 %v3019
      %3178 = vmatprep.subr.bf16.mxu0 0
      %3179 = vmatpush1.bf16.msra.mxu0 %v3020
      %3180 = vmatprep.subr.bf16.mxu0 0
      %3181 = vmatpush1.bf16.msra.mxu0 %v3021
      %3182 = vmatprep.mubr.bf16.mxu0 %v2311
      %3183 = vmatmul.mubr.bf16.gmra.mrb[0].mxu0 %v2287
      %v3184 = vpop.f32.mrb[0].mxu0
      %v3185 = vadd.f32 %v2716, %v3184
      %v3186 = vpop.f32.mrb[0].mxu0
      %v3187 = vpop.f32.mrb[0].mxu0
      %v3188 = vadd.f32 %v2716, %v3187
      %v3189 = vpop.f32.mrb[0].mxu0
      %3190 = vmatprep.mubr.bf16.mxu0 %v2319
      %3191 = vmatmul.mubr.bf16.gmra.mrb[0].mxu0 %v2288
      %v3192 = vpop.f32.mrb[0].mxu0
      %v3193 = vadd.f32 %v2716, %v3192
      %v3194 = vpop.f32.mrb[0].mxu0
      %v3195 = vpop.f32.mrb[0].mxu0
      %v3196 = vadd.f32 %v2716, %v3195
      %v3197 = vpop.f32.mrb[0].mxu0
      %3198 = vmatprep.mubr.bf16.mxu0 %v2327
      %3199 = vmatmul.mubr.bf16.gmra.mrb[0].mxu0 %v2289
      %v3200 = vpop.f32.mrb[0].mxu0
      %v3201 = vadd.f32 %v2716, %v3200
      %v3202 = vpop.f32.mrb[0].mxu0
      %v3203 = vpop.f32.mrb[0].mxu0
      %v3204 = vadd.f32 %v2716, %v3203
      %v3205 = vpop.f32.mrb[0].mxu0
      %3206 = vmatprep.mubr.bf16.mxu0 %v2335
      %3207 = vmatmul.mubr.bf16.gmra.mrb[0].mxu0 %v2290
      %v3208 = vpop.f32.mrb[0].mxu0
      %v3209 = vadd.f32 %v2716, %v3208
      %v3210 = vpop.f32.mrb[0].mxu0
      %v3211 = vpop.f32.mrb[0].mxu0
      %v3212 = vadd.f32 %v2716, %v3211
      %v3213 = vpop.f32.mrb[0].mxu0
      %3214 = vmatprep.mubr.bf16.mxu0 %v2343
      %3215 = vmatmul.mubr.bf16.gmra.mrb[0].mxu0 %v2291
      %v3216 = vpop.f32.mrb[0].mxu0
      %v3217 = vadd.f32 %v2716, %v3216
      %v3218 = vpop.f32.mrb[0].mxu0
      %v3219 = vpop.f32.mrb[0].mxu0
      %v3220 = vadd.f32 %v2716, %v3219
      %v3221 = vpop.f32.mrb[0].mxu0
      %3222 = vdwg.mxu0
      %3223 = vmatprep.subr.bf16.mxu0 0
      %3224 = vmatpush1.bf16.msra.mxu0 %v3022
      %3225 = vmatprep.subr.bf16.mxu0 0
      %3226 = vmatpush1.bf16.msra.mxu0 %v3023
      %3227 = vmatprep.subr.bf16.mxu0 0
      %3228 = vmatpush1.bf16.msra.mxu0 %v3024
      %3229 = vmatprep.subr.bf16.mxu0 0
      %3230 = vmatpush1.bf16.msra.mxu0 %v3025
      %3231 = vmatprep.subr.bf16.mxu0 0
      %3232 = vmatpush1.bf16.msra.mxu0 %v3026
      %3233 = vmatprep.subr.bf16.mxu0 0
      %3234 = vmatpush1.bf16.msra.mxu0 %v3027
      %3235 = vmatprep.subr.bf16.mxu0 0
      %3236 = vmatpush1.bf16.msra.mxu0 %v3028
      %3237 = vmatprep.subr.bf16.mxu0 0
      %3238 = vmatpush1.bf16.msra.mxu0 %v3029
      %3239 = vmatprep.subr.bf16.mxu0 0
      %3240 = vmatpush1.bf16.msra.mxu0 %v3030
      %3241 = vmatprep.subr.bf16.mxu0 0
      %3242 = vmatpush1.bf16.msra.mxu0 %v3031
      %3243 = vmatprep.subr.bf16.mxu0 0
      %3244 = vmatpush1.bf16.msra.mxu0 %v3032
      %3245 = vmatprep.subr.bf16.mxu0 0
      %3246 = vmatpush1.bf16.msra.mxu0 %v3033
      %3247 = vmatprep.subr.bf16.mxu0 0
      %3248 = vmatpush1.bf16.msra.mxu0 %v3034
      %3249 = vmatprep.subr.bf16.mxu0 0
      %3250 = vmatpush1.bf16.msra.mxu0 %v3035
      %3251 = vmatprep.subr.bf16.mxu0 0
      %3252 = vmatpush1.bf16.msra.mxu0 %v3036
      %3253 = vmatprep.subr.bf16.mxu0 0
      %3254 = vmatpush1.bf16.msra.mxu0 %v3037
      %3255 = vmatprep.mubr.bf16.mxu0 %v2382
      %3256 = vmatmul.mubr.bf16.gmra.mrb[0].mxu0 %v2354
      %v3257 = vpop.f32.mrb[0].mxu0
      %v3258 = vadd.f32 %v3185, %v3257
      %v3259 = vpop.f32.mrb[0].mxu0
      %v3260 = vpop.f32.mrb[0].mxu0
      %v3261 = vadd.f32 %v3188, %v3260
      %v3262 = vpop.f32.mrb[0].mxu0
      %3263 = vmatprep.mubr.bf16.mxu0 %v2384
      %3264 = vmatmul.mubr.bf16.gmra.mrb[0].mxu0 %v2356
      %v3265 = vpop.f32.mrb[0].mxu0
      %v3266 = vadd.f32 %v3193, %v3265
      %v3267 = vpop.f32.mrb[0].mxu0
      %v3268 = vpop.f32.mrb[0].mxu0
      %v3269 = vadd.f32 %v3196, %v3268
      %v3270 = vpop.f32.mrb[0].mxu0
      %3271 = vmatprep.mubr.bf16.mxu0 %v2386
      %3272 = vmatmul.mubr.bf16.gmra.mrb[0].mxu0 %v2358
      %v3273 = vpop.f32.mrb[0].mxu0
      %v3274 = vadd.f32 %v3201, %v3273
      %v3275 = vpop.f32.mrb[0].mxu0
      %v3276 = vpop.f32.mrb[0].mxu0
      %v3277 = vadd.f32 %v3204, %v3276
      %v3278 = vpop.f32.mrb[0].mxu0
      %3279 = vmatprep.mubr.bf16.mxu0 %v2388
      %3280 = vmatmul.mubr.bf16.gmra.mrb[0].mxu0 %v2360
      %v3281 = vpop.f32.mrb[0].mxu0
      %v3282 = vadd.f32 %v3209, %v3281
      %v3283 = vpop.f32.mrb[0].mxu0
      %v3284 = vpop.f32.mrb[0].mxu0
      %v3285 = vadd.f32 %v3212, %v3284
      %v3286 = vpop.f32.mrb[0].mxu0
      %3287 = vmatprep.mubr.bf16.mxu0 %v2390
      %3288 = vmatmul.mubr.bf16.gmra.mrb[0].mxu0 %v2362
      %v3289 = vpop.f32.mrb[0].mxu0
      %v3290 = vadd.f32 %v3217, %v3289
      %v3291 = vpop.f32.mrb[0].mxu0
      %v3292 = vpop.f32.mrb[0].mxu0
      %v3293 = vadd.f32 %v3220, %v3292
      %v3294 = vpop.f32.mrb[0].mxu0
      %3295 = vdwg.mxu0
      %3296 = vmatprep.subr.bf16.mxu0 0
      %3297 = vmatpush1.bf16.msra.mxu0 %v3038
      %3298 = vmatprep.subr.bf16.mxu0 0
      %3299 = vmatpush1.bf16.msra.mxu0 %v3039
      %3300 = vmatprep.subr.bf16.mxu0 0
      %3301 = vmatpush1.bf16.msra.mxu0 %v3040
      %3302 = vmatprep.subr.bf16.mxu0 0
      %3303 = vmatpush1.bf16.msra.mxu0 %v3041
      %3304 = vmatprep.subr.bf16.mxu0 0
      %3305 = vmatpush1.bf16.msra.mxu0 %v3042
      %3306 = vmatprep.subr.bf16.mxu0 0
      %3307 = vmatpush1.bf16.msra.mxu0 %v3043
      %3308 = vmatprep.subr.bf16.mxu0 0
      %3309 = vmatpush1.bf16.msra.mxu0 %v3044
      %3310 = vmatprep.subr.bf16.mxu0 0
      %3311 = vmatpush1.bf16.msra.mxu0 %v3045
      %3312 = vmatprep.subr.bf16.mxu0 0
      %3313 = vmatpush1.bf16.msra.mxu0 %v3046
      %3314 = vmatprep.subr.bf16.mxu0 0
      %3315 = vmatpush1.bf16.msra.mxu0 %v3047
      %3316 = vmatprep.subr.bf16.mxu0 0
      %3317 = vmatpush1.bf16.msra.mxu0 %v3048
      %3318 = vmatprep.subr.bf16.mxu0 0
      %3319 = vmatpush1.bf16.msra.mxu0 %v3049
      %3320 = vmatprep.subr.bf16.mxu0 0
      %3321 = vmatpush1.bf16.msra.mxu0 %v3050
      %3322 = vmatprep.subr.bf16.mxu0 0
      %3323 = vmatpush1.bf16.msra.mxu0 %v3051
      %3324 = vmatprep.subr.bf16.mxu0 0
      %3325 = vmatpush1.bf16.msra.mxu0 %v3052
      %3326 = vmatprep.subr.bf16.mxu0 0
      %3327 = vmatpush1.bf16.msra.mxu0 %v3053
      %3328 = vmatprep.mubr.bf16.mxu0 %v2462
      %3329 = vmatmul.mubr.bf16.gmra.mrb[0].mxu0 %v2415
      %v3330 = vpop.f32.mrb[0].mxu0
      %v3331 = vadd.f32 %v3258, %v3330
      %v3332 = vpop.f32.mrb[0].mxu0
      %v3333 = vpop.f32.mrb[0].mxu0
      %v3334 = vadd.f32 %v3261, %v3333
      %v3335 = vpop.f32.mrb[0].mxu0
      %3336 = vmatprep.mubr.bf16.mxu0 %v2464
      %3337 = vmatmul.mubr.bf16.gmra.mrb[0].mxu0 %v2424
      %v3338 = vpop.f32.mrb[0].mxu0
      %v3339 = vadd.f32 %v3266, %v3338
      %v3340 = vpop.f32.mrb[0].mxu0
      %v3341 = vpop.f32.mrb[0].mxu0
      %v3342 = vadd.f32 %v3269, %v3341
      %v3343 = vpop.f32.mrb[0].mxu0
      %3344 = vmatprep.mubr.bf16.mxu0 %v2466
      %3345 = vmatmul.mubr.bf16.gmra.mrb[0].mxu0 %v2433
      %v3346 = vpop.f32.mrb[0].mxu0
      %v3347 = vadd.f32 %v3274, %v3346
      %v3348 = vpop.f32.mrb[0].mxu0
      %v3349 = vpop.f32.mrb[0].mxu0
      %v3350 = vadd.f32 %v3277, %v3349
      %v3351 = vpop.f32.mrb[0].mxu0
      %3352 = vmatprep.mubr.bf16.mxu0 %v2468
      %3353 = vmatmul.mubr.bf16.gmra.mrb[0].mxu0 %v2442
      %v3354 = vpop.f32.mrb[0].mxu0
      %v3355 = vadd.f32 %v3282, %v3354
      %v3356 = vpop.f32.mrb[0].mxu0
      %v3357 = vpop.f32.mrb[0].mxu0
      %v3358 = vadd.f32 %v3285, %v3357
      %v3359 = vpop.f32.mrb[0].mxu0
      %3360 = vmatprep.mubr.bf16.mxu0 %v2470
      %3361 = vmatmul.mubr.bf16.gmra.mrb[0].mxu0 %v2451
      %v3362 = vpop.f32.mrb[0].mxu0
      %v3363 = vadd.f32 %v3290, %v3362
      %v3364 = vpop.f32.mrb[0].mxu0
      %v3365 = vpop.f32.mrb[0].mxu0
      %v3366 = vadd.f32 %v3293, %v3365
      %v3367 = vpop.f32.mrb[0].mxu0
      %3368 = vdwg.mxu0
      %3369 = vmatprep.subr.bf16.mxu0 0
      %3370 = vmatpush1.bf16.msra.mxu0 %v3054
      %3371 = vmatprep.subr.bf16.mxu0 0
      %3372 = vmatpush1.bf16.msra.mxu0 %v3055
      %3373 = vmatprep.subr.bf16.mxu0 0
      %3374 = vmatpush1.bf16.msra.mxu0 %v3056
      %3375 = vmatprep.subr.bf16.mxu0 0
      %3376 = vmatpush1.bf16.msra.mxu0 %v3057
      %3377 = vmatprep.subr.bf16.mxu0 0
      %3378 = vmatpush1.bf16.msra.mxu0 %v3058
      %3379 = vmatprep.subr.bf16.mxu0 0
      %3380 = vmatpush1.bf16.msra.mxu0 %v3059
      %3381 = vmatprep.subr.bf16.mxu0 0
      %3382 = vmatpush1.bf16.msra.mxu0 %v3060
      %3383 = vmatprep.subr.bf16.mxu0 0
      %3384 = vmatpush1.bf16.msra.mxu0 %v3061
      %3385 = vmatprep.subr.bf16.mxu0 0
      %3386 = vmatpush1.bf16.msra.mxu0 %v3062
      %3387 = vmatprep.subr.bf16.mxu0 0
      %3388 = vmatpush1.bf16.msra.mxu0 %v3063
      %3389 = vmatprep.subr.bf16.mxu0 0
      %3390 = vmatpush1.bf16.msra.mxu0 %v3064
      %3391 = vmatprep.subr.bf16.mxu0 0
      %3392 = vmatpush1.bf16.msra.mxu0 %v3065
      %3393 = vmatprep.subr.bf16.mxu0 0
      %3394 = vmatpush1.bf16.msra.mxu0 %v3066
      %3395 = vmatprep.subr.bf16.mxu0 0
      %3396 = vmatpush1.bf16.msra.mxu0 %v3067
      %3397 = vmatprep.subr.bf16.mxu0 0
      %3398 = vmatpush1.bf16.msra.mxu0 %v3068
      %3399 = vmatprep.subr.bf16.mxu0 0
      %3400 = vmatpush1.bf16.msra.mxu0 %v3069
      %3401 = vmatprep.mubr.bf16.mxu0 %v2516
      %3402 = vmatmul.mubr.bf16.gmra.mrb[0].mxu0 %v2487
      %v3403 = vpop.f32.mrb[0].mxu0
      %v3404 = vadd.f32 %v3331, %v3403
      %v3405 = vpop.f32.mrb[0].mxu0
      %v3406 = vpop.f32.mrb[0].mxu0
      %v3407 = vadd.f32 %v3334, %v3406
      %v3408 = vpop.f32.mrb[0].mxu0
      %3409 = vmatprep.mubr.bf16.mxu0 %v2520
      %3410 = vmatmul.mubr.bf16.gmra.mrb[0].mxu0 %v2489
      %v3411 = vpop.f32.mrb[0].mxu0
      %v3412 = vadd.f32 %v3339, %v3411
      %v3413 = vpop.f32.mrb[0].mxu0
      %v3414 = vpop.f32.mrb[0].mxu0
      %v3415 = vadd.f32 %v3342, %v3414
      %v3416 = vpop.f32.mrb[0].mxu0
      %3417 = vmatprep.mubr.bf16.mxu0 %v2524
      %3418 = vmatmul.mubr.bf16.gmra.mrb[0].mxu0 %v2491
      %v3419 = vpop.f32.mrb[0].mxu0
      %v3420 = vadd.f32 %v3347, %v3419
      %v3421 = vpop.f32.mrb[0].mxu0
      %v3422 = vpop.f32.mrb[0].mxu0
      %v3423 = vadd.f32 %v3350, %v3422
      %v3424 = vpop.f32.mrb[0].mxu0
      %3425 = vmatprep.mubr.bf16.mxu0 %v2533
      %3426 = vmatmul.mubr.bf16.gmra.mrb[0].mxu0 %v2493
      %v3427 = vpop.f32.mrb[0].mxu0
      %v3428 = vadd.f32 %v3355, %v3427
      %v3429 = vpop.f32.mrb[0].mxu0
      %v3430 = vpop.f32.mrb[0].mxu0
      %v3431 = vadd.f32 %v3358, %v3430
      %v3432 = vpop.f32.mrb[0].mxu0
      %3433 = vmatprep.mubr.bf16.mxu0 %v2542
      %3434 = vmatmul.mubr.bf16.gmra.mrb[0].mxu0 %v2495
      %v3435 = vpop.f32.mrb[0].mxu0
      %v3436 = vadd.f32 %v3363, %v3435
      %v3437 = vpop.f32.mrb[0].mxu0
      %v3438 = vpop.f32.mrb[0].mxu0
      %v3439 = vadd.f32 %v3366, %v3438
      %v3440 = vpop.f32.mrb[0].mxu0
      %3441 = vdwg.mxu0
      %3442 = vmatprep.subr.bf16.mxu0 0
      %3443 = vmatpush1.bf16.msra.mxu0 %v3070
      %3444 = vmatprep.subr.bf16.mxu0 0
      %3445 = vmatpush1.bf16.msra.mxu0 %v3071
      %3446 = vmatprep.subr.bf16.mxu0 0
      %3447 = vmatpush1.bf16.msra.mxu0 %v3072
      %3448 = vmatprep.subr.bf16.mxu0 0
      %3449 = vmatpush1.bf16.msra.mxu0 %v3073
      %3450 = vmatprep.subr.bf16.mxu0 0
      %3451 = vmatpush1.bf16.msra.mxu0 %v3074
      %3452 = vmatprep.subr.bf16.mxu0 0
      %3453 = vmatpush1.bf16.msra.mxu0 %v3075
      %3454 = vmatprep.subr.bf16.mxu0 0
      %3455 = vmatpush1.bf16.msra.mxu0 %v3076
      %3456 = vmatprep.subr.bf16.mxu0 0
      %3457 = vmatpush1.bf16.msra.mxu0 %v3077
      %3458 = vmatprep.subr.bf16.mxu0 0
      %3459 = vmatpush1.bf16.msra.mxu0 0
      %3460 = vmatprep.subr.bf16.mxu0 0
      %3461 = vmatpush1.bf16.msra.mxu0 0
      %3462 = vmatprep.subr.bf16.mxu0 0
      %3463 = vmatpush1.bf16.msra.mxu0 0
      %3464 = vmatprep.subr.bf16.mxu0 0
      %3465 = vmatpush1.bf16.msra.mxu0 0
      %3466 = vmatprep.subr.bf16.mxu0 0
      %3467 = vmatpush1.bf16.msra.mxu0 0
      %3468 = vmatprep.subr.bf16.mxu0 0
      %3469 = vmatpush1.bf16.msra.mxu0 0
      %3470 = vmatprep.subr.bf16.mxu0 0
      %3471 = vmatpush1.bf16.msra.mxu0 0
      %3472 = vmatprep.subr.bf16.mxu0 0
      %3473 = vmatpush1.bf16.msra.mxu0 0
      %3474 = vmatprep.mubr.bf16.mxu0 0
      %3475 = vmatmul.mubr.bf16.gmra.mrb[0].mxu0 %v2553
      %v3476 = vpop.f32.mrb[0].mxu0
      %v3477 = vadd.f32 %v3404, %v3476
      %v3478 = vpop.f32.mrb[0].mxu0
      %v3479 = vpop.f32.mrb[0].mxu0
      %v3480 = vadd.f32 %v3407, %v3479
      %v3481 = vpop.f32.mrb[0].mxu0
      %3482 = vmatprep.mubr.bf16.mxu0 0
      %3483 = vmatmul.mubr.bf16.gmra.mrb[0].mxu0 %v2555
      %v3484 = vpop.f32.mrb[0].mxu0
      %v3485 = vadd.f32 %v3412, %v3484
      %v3486 = vpop.f32.mrb[0].mxu0
      %v3487 = vpop.f32.mrb[0].mxu0
      %v3488 = vadd.f32 %v3415, %v3487
      %v3489 = vpop.f32.mrb[0].mxu0
      %3490 = vmatprep.mubr.bf16.mxu0 0
      %3491 = vmatmul.mubr.bf16.gmra.mrb[0].mxu0 %v2557
      %v3492 = vpop.f32.mrb[0].mxu0
      %v3493 = vadd.f32 %v3420, %v3492
      %v3494 = vpop.f32.mrb[0].mxu0
      %v3495 = vpop.f32.mrb[0].mxu0
      %v3496 = vadd.f32 %v3423, %v3495
      %v3497 = vpop.f32.mrb[0].mxu0
      %3498 = vmatprep.mubr.bf16.mxu0 0
      %3499 = vmatmul.mubr.bf16.gmra.mrb[0].mxu0 %v2559
      %v3500 = vpop.f32.mrb[0].mxu0
      %v3501 = vadd.f32 %v3428, %v3500
      %v3502 = vpop.f32.mrb[0].mxu0
      %v3503 = vpop.f32.mrb[0].mxu0
      %v3504 = vadd.f32 %v3431, %v3503
      %v3505 = vpop.f32.mrb[0].mxu0
      %3506 = vmatprep.mubr.bf16.mxu0 0
      %3507 = vmatmul.mubr.bf16.gmra.mrb[0].mxu0 %v2561
      %v3508 = vpop.f32.mrb[0].mxu0
      %v3509 = vadd.f32 %v3436, %v3508
      %v3510 = vpop.f32.mrb[0].mxu0
      %v3511 = vpop.f32.mrb[0].mxu0
      %v3512 = vadd.f32 %v3439, %v3511
      %v3513 = vpop.f32.mrb[0].mxu0
      %3514 = vdwg.mxu0
      %v3515 = vadd.f32 %v3477, %v2207
      %v3516 = vadd.f32 %v3480, %v2210
      %v3517 = vadd.f32 %v3485, %v2215
      %v3518 = vadd.f32 %v3488, %v2218
      %v3519 = vadd.f32 %v3493, %v2223
      %v3520 = vadd.f32 %v3496, %v2226
      %v3521 = vadd.f32 %v3501, %v2231
      %v3522 = vadd.f32 %v3504, %v2234
      %v3523 = vadd.f32 %v3509, %v2239
      %v3524 = vadd.f32 %v3512, %v2242
      %v3525 = vmax.f32 %v3515, 0.0
      %v3526 = vmax.f32 %v3516, 0.0
      %v3527 = vmax.f32 %v3517, 0.0
      %v3528 = vmax.f32 %v3518, 0.0
      %v3529 = vmax.f32 %v3519, 0.0
      %v3530 = vmax.f32 %v3520, 0.0
      %v3531 = vmax.f32 %v3521, 0.0
      %v3532 = vmax.f32 %v3522, 0.0
      %v3533 = vmax.f32 %v3523, 0.0
      %v3534 = vmax.f32 %v3524, 0.0
      %v3535 = vpack.c.bf16 %v3526, %v3525
      %v3536 = vpack.c.bf16 %v3528, %v3527
      %v3537 = vpack.c.bf16 %v3530, %v3529
      %v3538 = vpack.c.bf16 %v3532, %v3531
      %v3539 = vpack.c.bf16 %v3534, %v3533
      %v3545 = vunpack.c.l.b16 %v3535
      %v3546 = vunpack.c.h.b16 %v3535
      %v3547 = vunpack.c.l.b16 %v3536
      %v3548 = vunpack.c.h.b16 %v3536
      %v3549 = vunpack.c.l.b16 %v3537
      %v3550 = vunpack.c.h.b16 %v3537
      %v3551 = vunpack.c.l.b16 %v3538
      %v3552 = vunpack.c.h.b16 %v3538
      %v3553 = vunpack.c.l.b16 %v3539
      %v3554 = vunpack.c.h.b16 %v3539
      %v3555 = vpack.c.b16 %v3545, %v3545
      %v3556 = vpack.c.b16 %v3546, %v3546
      %v3557 = vpack.c.b16 %v3547, %v3547
      %v3558 = vpack.c.b16 %v3548, %v3548
      %v3559 = vpack.c.b16 %v3549, %v3549
      %v3560 = vpack.c.b16 %v3550, %v3550
      %v3561 = vpack.c.b16 %v3551, %v3551
      %v3562 = vpack.c.b16 %v3552, %v3552
      %v3563 = vpack.c.b16 %v3553, %v3553
      %v3564 = vpack.c.b16 %v3554, %v3554
      %3575 = vst [vmem:[%s278] sm:$0xf] %v3555
      %3576 = vst [vmem:[%s278 + $0x4] sm:$0xf] %v3556
      %3577 = vst [vmem:[%s278 + $0x8] sm:$0xf] %v3557
      %3578 = vst [vmem:[%s278 + $0xc] sm:$0xf] %v3558
      %3579 = vst [vmem:[%s278 + $0x10] sm:$0xf] %v3559
      %3580 = vst [vmem:[%s278 + $0x14] sm:$0xf] %v3560
      %3581 = vst [vmem:[%s278 + $0x18] sm:$0xf] %v3561
      %3582 = vst [vmem:[%s278 + $0x1c] sm:$0xf] %v3562
      %3583 = vst [vmem:[%s278 + $0x20] sm:$0xf] %v3563
      %3584 = vst [vmem:[%s278 + $0x24] sm:$0xf] %v3564
      %p3585 = scmp.lt.s32.totalorder %s18, 1
      %s3586 = scalar_select %p3585, %s18, 1
      %s3587 = smul.addr %s3586, 10
      %s3588 = smul.addr %s3587, 4
      %s3589 = scalar_lea.vmem %s7, %s3588
      // Predicated region
      $region49: #{basic_block_forward.1} parent=47 // pred_check
        %p3590 = pneg %p188
      $region50: #{basic_block_forward.1} parent=47 // pred_check_branch
        %3592 = sbr.rel (%p3590) target = $region52
      $region51: #{basic_block_forward.1} parent=47 // pred_region
        _
      $region52: #{basic_block_forward.1} parent=47 // pred_fallthru
        _
    $region48: #{basic_block_forward.1} parent=5 // pred_fallthru
      _
    %p3593 = scmp.le.s32.totalorder 2, %s13
    // Predicated region
    $region53: #{basic_block_forward.1} parent=5 // pred_check
      %p3594 = pneg %p3593
    $region54: #{basic_block_forward.1} parent=5 // pred_check_branch
      %3596 = sbr.rel (%p3594) target = $region56
    $region55: #{basic_block_forward.1} parent=5 // pred_region
      %s3597 = ssub.s32 %s13, 2
      // Predicated region
      $region57: #{basic_block_forward.1} parent=55 // pred_check
        %p3598 = pneg %p194
      $region58: #{basic_block_forward.1} parent=55 // pred_check_branch
        %3600 = sbr.rel (%p3598) target = $region60
      $region59: #{basic_block_forward.1} parent=55 // pred_region
        %p3601 = scmp.lt.s32.totalorder %s19, 1
        %s3602 = scalar_select %p3601, %s19, 1
        %s3603 = smul.addr %s3602, 10
        %s3604 = smul.addr %s3603, 4
        %s3605 = scalar_lea.vmem %s7, %s3604
      $region60: #{basic_block_forward.1} parent=55 // pred_fallthru
        _
    $region56: #{basic_block_forward.1} parent=5 // pred_fallthru
      _
  $region6: #{basic_block_forward.1} parent=0 // loop_footer
    %s17 = sadd.s32 1, %s13
  $region7: #{basic_block_forward.1} parent=0 // loop_footer_branch
    %12 = sbr.rel target = $region3
  $region8: #{basic_block_forward.1} parent=0 // loop_exit
    _

</llo_original>
